<compile_context>
chip_gen: v5e
topology: v5e:2x2
jax: 0.10.0
libtpu: 0.0.40
codegen_flags: <defaults>
</compile_context>

<pallas_src>
import math
from functools import partial

import jax
import jax.numpy as jnp
from jax.experimental import pallas as pl
from jax.experimental.pallas import tpu as pltpu


# ----------------------------- in-kernel helpers -----------------------------

def _layernorm(x, w, b, eps=1e-5):
    mu = jnp.mean(x, axis=-1, keepdims=True)
    xc = x - mu
    var = jnp.mean(xc * xc, axis=-1, keepdims=True)
    return xc * jax.lax.rsqrt(var + eps) * w + b


def _attn_core(q, k, v, n_head, B, Sq, Sk, dh):
    """Scaled-dot-product attention on already-projected q/k/v.

    q: (B*Sq, E), k/v: (B*Sk, E) with heads = contiguous dh-wide feature
    chunks (PyTorch layout).  Heads and batch are folded into one batch dim
    so the score / PV matmuls are each a single batched einsum.
    Returns the merged-head context: (B*Sq, E).
    """
    scale = 1.0 / math.sqrt(dh)

    def split_heads(x, S):  # (B*S, E) -> (B*n_head, S, dh)
        return jnp.stack(
            [x[b * S:(b + 1) * S, h * dh:(h + 1) * dh]
             for b in range(B) for h in range(n_head)],
            axis=0)

    qh = split_heads(q, Sq)
    kh = split_heads(k, Sk)
    vh = split_heads(v, Sk)

    s = jnp.einsum('bqd,bkd->bqk', qh, kh,
                   preferred_element_type=jnp.float32) * scale
    s = s - jnp.max(s, axis=-1, keepdims=True)
    p = jnp.exp(s)
    p = p * pl.reciprocal(jnp.sum(p, axis=-1, keepdims=True), approx=True)
    o = jnp.einsum('bqk,bkd->bqd', p, vh,
                   preferred_element_type=jnp.float32)       # (B*nh, Sq, dh)

    # merge heads back to (B*Sq, E): lane-concat heads, sublane-concat batches
    rows = [jnp.concatenate([o[b * n_head + h] for h in range(n_head)], axis=-1)
            for b in range(B)]
    return jnp.concatenate(rows, axis=0)


def _cross_mha(q_in, kv_in, w_refs, n_head, B, Sq, Sk, E):
    """nn.MultiheadAttention(query=q_in, key=kv_in, value=kv_in)."""
    wq, bq, wkv, bkv, wo, bo = [r[...] for r in w_refs]
    q = jnp.dot(q_in, wq, preferred_element_type=jnp.float32) + bq
    kv = jnp.dot(kv_in, wkv, preferred_element_type=jnp.float32) + bkv
    ctx = _attn_core(q, kv[:, :E], kv[:, E:], n_head, B, Sq, Sk, E // n_head)
    return jnp.dot(ctx, wo, preferred_element_type=jnp.float32) + bo


def _encoder_layer(x, w_refs, n_head, B, S, E):
    """nn.TransformerEncoderLayer defaults: post-norm, ReLU, eps=1e-5."""
    (wqkv, bqkv, wo, bo, w1, b1, w2, b2, g1, be1, g2, be2) = [r[...] for r in w_refs]
    qkv = jnp.dot(x, wqkv, preferred_element_type=jnp.float32) + bqkv
    ctx = _attn_core(qkv[:, :E], qkv[:, E:2 * E], qkv[:, 2 * E:],
                     n_head, B, S, S, E // n_head)
    attn = jnp.dot(ctx, wo, preferred_element_type=jnp.float32) + bo
    y = _layernorm(x + attn, g1, be1)
    h = jnp.maximum(jnp.dot(y, w1, preferred_element_type=jnp.float32) + b1, 0.0)
    ff = jnp.dot(h, w2, preferred_element_type=jnp.float32) + b2
    return _layernorm(y + ff, g2, be2)


# --------------------------------- kernel ------------------------------------

def _cross_layer_kernel(n_head, B, S1, S2, E, *refs):
    # inputs: x1, x2, 6 cross1 weights, 6 cross2 weights, 12 enc1, 12 enc2
    x1_ref, x2_ref = refs[0], refs[1]
    c1 = refs[2:8]
    c2 = refs[8:14]
    e1 = refs[14:26]
    e2 = refs[26:38]
    out1_ref, out2_ref = refs[38], refs[39]

    x1 = x1_ref[...]          # (B*S1, E)
    x2 = x2_ref[...]          # (B*S2, E)

    # cross_attention1(query=x2, key=x1, value=x1)
    ca1 = _cross_mha(x2, x1, c1, n_head, B, S2, S1, E)
    # cross_attention2(query=x1, key=x2, value=x2)
    ca2 = _cross_mha(x1, x2, c2, n_head, B, S1, S2, E)

    out1_ref[...] = _encoder_layer(ca1, e1, n_head, B, S2, E)
    out2_ref[...] = _encoder_layer(ca2, e2, n_head, B, S1, E)


# -------------------------------- wrapper ------------------------------------

def cross_layer_forward(x1, x2, c1_w, c2_w, e1_w, e2_w, *, n_head):
    """x1: (B, S1, E), x2: (B, S2, E) -> (alignment_1 (B,S2,E), alignment_2 (B,S1,E))."""
    B, S1, E = x1.shape
    S2 = x2.shape[1]
    x1f = x1.reshape(B * S1, E)
    x2f = x2.reshape(B * S2, E)
    # Single fused pallas_call, no grid: everything (a few KB) fits one
    # VMEM-resident block.  (On v7x one could split the two independent
    # branches onto a size-2 parallel grid axis to use both TensorCores.)
    out1f, out2f = pl.pallas_call(
        partial(_cross_layer_kernel, n_head, B, S1, S2, E),
        out_shape=(jax.ShapeDtypeStruct((B * S2, E), jnp.float32),
                   jax.ShapeDtypeStruct((B * S1, E), jnp.float32)),
    )(x1f, x2f, *c1_w, *c2_w, *e1_w, *e2_w)
    return out1f.reshape(B, S2, E), out2f.reshape(B, S1, E)


# ---------------------- parameter init (PyTorch layout) -----------------------

def init_mha_params(key, E):
    ks = jax.random.split(key, 4)
    s = 0.05
    return {
        "in_proj_weight": jax.random.normal(ks[0], (3 * E, E), jnp.float32) * s,
        "in_proj_bias": jax.random.normal(ks[1], (3 * E,), jnp.float32) * s,
        "out_proj_weight": jax.random.normal(ks[2], (E, E), jnp.float32) * s,
        "out_proj_bias": jax.random.normal(ks[3], (E,), jnp.float32) * s,
    }


def init_encoder_params(key, E, H):
    ka, kb = jax.random.split(key)
    ks = jax.random.split(kb, 4)
    s = 0.05
    return {
        "mha": init_mha_params(ka, E),
        "linear1_weight": jax.random.normal(ks[0], (H, E), jnp.float32) * s,
        "linear1_bias": jax.random.normal(ks[1], (H,), jnp.float32) * s,
        "linear2_weight": jax.random.normal(ks[2], (E, H), jnp.float32) * s,
        "linear2_bias": jax.random.normal(ks[3], (E,), jnp.float32) * s,
        "norm1_weight": jnp.ones((E,), jnp.float32),
        "norm1_bias": jnp.zeros((E,), jnp.float32),
        "norm2_weight": jnp.ones((E,), jnp.float32),
        "norm2_bias": jnp.zeros((E,), jnp.float32),
    }


# ------------------ host-side packing into kernel layout ----------------------
# Pre-transpose weights to [in, out] and fuse the q/k/v projections so the
# kernel never transposes and issues one wide projection matmul.

def pack_cross_mha(p, E):
    w, b = p["in_proj_weight"], p["in_proj_bias"]
    wq = w[:E].T                                                 # (E, E)
    wkv = jnp.concatenate([w[E:2 * E].T, w[2 * E:].T], axis=1)   # (E, 2E)
    bq = b[:E].reshape(1, E)
    bkv = b[E:].reshape(1, 2 * E)
    wo = p["out_proj_weight"].T                                  # (E, E)
    bo = p["out_proj_bias"].reshape(1, E)
    return [wq, bq, wkv, bkv, wo, bo]


def pack_encoder(p, E, H):
    m = p["mha"]
    wqkv = m["in_proj_weight"].T                                 # (E, 3E)
    bqkv = m["in_proj_bias"].reshape(1, 3 * E)
    wo = m["out_proj_weight"].T
    bo = m["out_proj_bias"].reshape(1, E)
    return [wqkv, bqkv, wo, bo,
            p["linear1_weight"].T, p["linear1_bias"].reshape(1, H),
            p["linear2_weight"].T, p["linear2_bias"].reshape(1, E),
            p["norm1_weight"].reshape(1, E), p["norm1_bias"].reshape(1, E),
            p["norm2_weight"].reshape(1, E), p["norm2_bias"].reshape(1, E)]


# -------------------------- pure-JAX reference --------------------------------

def _ref_mha(q_in, k_in, v_in, p, n_head):
    E = q_in.shape[-1]
    w, b = p["in_proj_weight"], p["in_proj_bias"]
    q = q_in @ w[:E].T + b[:E]
    k = k_in @ w[E:2 * E].T + b[E:2 * E]
    v = v_in @ w[2 * E:].T + b[2 * E:]
    B, Sq, _ = q.shape
    Sk = k.shape[1]
    dh = E // n_head
    qh = q.reshape(B, Sq, n_head, dh).transpose(0, 2, 1, 3)
    kh = k.reshape(B, Sk, n_head, dh).transpose(0, 2, 1, 3)
    vh = v.reshape(B, Sk, n_head, dh).transpose(0, 2, 1, 3)
    s = jnp.einsum('bhqd,bhkd->bhqk', qh, kh) / math.sqrt(dh)
    a = jax.nn.softmax(s, axis=-1)
    o = jnp.einsum('bhqk,bhkd->bhqd', a, vh).transpose(0, 2, 1, 3).reshape(B, Sq, E)
    return o @ p["out_proj_weight"].T + p["out_proj_bias"]


def _ref_layernorm(x, w, b, eps=1e-5):
    mu = x.mean(-1, keepdims=True)
    var = ((x - mu) ** 2).mean(-1, keepdims=True)
    return (x - mu) / jnp.sqrt(var + eps) * w + b


def _ref_encoder(x, p, n_head):
    attn = _ref_mha(x, x, x, p["mha"], n_head)
    y = _ref_layernorm(x + attn, p["norm1_weight"], p["norm1_bias"])
    h = jax.nn.relu(y @ p["linear1_weight"].T + p["linear1_bias"])
    ff = h @ p["linear2_weight"].T + p["linear2_bias"]
    return _ref_layernorm(y + ff, p["norm2_weight"], p["norm2_bias"])


# ----------------------------------- main --------------------------------------

if __name__ == "__main__":
    B, S1, S2 = 2, 8, 16
    embed_size, n_head, hidden_size = 32, 4, 64

    key = jax.random.PRNGKey(0)
    kx1, kx2, kc1, kc2, ke1, ke2 = jax.random.split(key, 6)

    x1 = jax.random.normal(kx1, (B, S1, embed_size), jnp.float32)
    x2 = jax.random.normal(kx2, (B, S2, embed_size), jnp.float32)

    cross1_p = init_mha_params(kc1, embed_size)
    cross2_p = init_mha_params(kc2, embed_size)
    enc1_p = init_encoder_params(ke1, embed_size, hidden_size)
    enc2_p = init_encoder_params(ke2, embed_size, hidden_size)

    # pack once (pre-transposed / fused) for the kernel
    c1_w = pack_cross_mha(cross1_p, embed_size)
    c2_w = pack_cross_mha(cross2_p, embed_size)
    e1_w = pack_encoder(enc1_p, embed_size, hidden_size)
    e2_w = pack_encoder(enc2_p, embed_size, hidden_size)

    fwd = jax.jit(partial(cross_layer_forward, n_head=n_head))
    a1, a2 = fwd(x1, x2, c1_w, c2_w, e1_w, e2_w)
    jax.block_until_ready((a1, a2))

    assert a1.shape == (B, S2, embed_size)
    assert a2.shape == (B, S1, embed_size)
    assert bool(jnp.all(jnp.isfinite(a1))) and bool(jnp.all(jnp.isfinite(a2)))

    # correctness vs. pure-JAX reference (loose tol: approx reciprocal in softmax)
    r1 = _ref_encoder(_ref_mha(x2, x1, x1, cross1_p, n_head), enc1_p, n_head)
    r2 = _ref_encoder(_ref_mha(x1, x2, x2, cross2_p, n_head), enc2_p, n_head)
    assert bool(jnp.allclose(a1, r1, atol=2e-2, rtol=2e-2))
    assert bool(jnp.allclose(a2, r2, atol=2e-2, rtol=2e-2))

    print("KERNEL_OK")
</pallas_src>

<mosaic_0001>
module attributes {stable_mosaic.version = 11 : i64} {
  func.func @_cross_layer_kernel(%arg0: memref<16x32xf32, #tpu.memory_space<vmem>>, %arg1: memref<32x32xf32, #tpu.memory_space<vmem>>, %arg2: memref<32x32xf32, #tpu.memory_space<vmem>>, %arg3: memref<1x32xf32, #tpu.memory_space<vmem>>, %arg4: memref<32x64xf32, #tpu.memory_space<vmem>>, %arg5: memref<1x64xf32, #tpu.memory_space<vmem>>, %arg6: memref<32x32xf32, #tpu.memory_space<vmem>>, %arg7: memref<1x32xf32, #tpu.memory_space<vmem>>, %arg8: memref<32x32xf32, #tpu.memory_space<vmem>>, %arg9: memref<1x32xf32, #tpu.memory_space<vmem>>, %arg10: memref<32x64xf32, #tpu.memory_space<vmem>>, %arg11: memref<1x64xf32, #tpu.memory_space<vmem>>, %arg12: memref<32x32xf32, #tpu.memory_space<vmem>>, %arg13: memref<1x32xf32, #tpu.memory_space<vmem>>, %arg14: memref<32x96xf32, #tpu.memory_space<vmem>>, %arg15: memref<1x96xf32, #tpu.memory_space<vmem>>, %arg16: memref<32x32xf32, #tpu.memory_space<vmem>>, %arg17: memref<1x32xf32, #tpu.memory_space<vmem>>, %arg18: memref<32x64xf32, #tpu.memory_space<vmem>>, %arg19: memref<1x64xf32, #tpu.memory_space<vmem>>, %arg20: memref<64x32xf32, #tpu.memory_space<vmem>>, %arg21: memref<1x32xf32, #tpu.memory_space<vmem>>, %arg22: memref<1x32xf32, #tpu.memory_space<vmem>>, %arg23: memref<1x32xf32, #tpu.memory_space<vmem>>, %arg24: memref<1x32xf32, #tpu.memory_space<vmem>>, %arg25: memref<1x32xf32, #tpu.memory_space<vmem>>, %arg26: memref<32x96xf32, #tpu.memory_space<vmem>>, %arg27: memref<1x96xf32, #tpu.memory_space<vmem>>, %arg28: memref<32x32xf32, #tpu.memory_space<vmem>>, %arg29: memref<1x32xf32, #tpu.memory_space<vmem>>, %arg30: memref<32x64xf32, #tpu.memory_space<vmem>>, %arg31: memref<1x64xf32, #tpu.memory_space<vmem>>, %arg32: memref<64x32xf32, #tpu.memory_space<vmem>>, %arg33: memref<1x32xf32, #tpu.memory_space<vmem>>, %arg34: memref<1x32xf32, #tpu.memory_space<vmem>>, %arg35: memref<1x32xf32, #tpu.memory_space<vmem>>, %arg36: memref<1x32xf32, #tpu.memory_space<vmem>>, %arg37: memref<1x32xf32, #tpu.memory_space<vmem>>, %arg38: memref<32x32xf32, #tpu.memory_space<vmem>>, %arg39: memref<16x32xf32, #tpu.memory_space<vmem>>) attributes {dimension_semantics = [], scalar_prefetch = 0 : i64, scratch_operands = 0 : i64, tpu.core_type = #tpu.core_type<tc>} {
    %c0 = arith.constant 0 : index
    %c0_0 = arith.constant 0 : index
    %0 = vector.load %arg0[%c0, %c0_0] : memref<16x32xf32, #tpu.memory_space<vmem>>, vector<16x32xf32>
    %c0_1 = arith.constant 0 : index
    %c0_2 = arith.constant 0 : index
    %1 = vector.load %arg1[%c0_1, %c0_2] : memref<32x32xf32, #tpu.memory_space<vmem>>, vector<32x32xf32>
    %c0_3 = arith.constant 0 : index
    %c0_4 = arith.constant 0 : index
    %2 = vector.load %arg2[%c0_3, %c0_4] : memref<32x32xf32, #tpu.memory_space<vmem>>, vector<32x32xf32>
    %c0_5 = arith.constant 0 : index
    %c0_6 = arith.constant 0 : index
    %3 = vector.load %arg3[%c0_5, %c0_6] : memref<1x32xf32, #tpu.memory_space<vmem>>, vector<1x32xf32>
    %c0_7 = arith.constant 0 : index
    %c0_8 = arith.constant 0 : index
    %4 = vector.load %arg4[%c0_7, %c0_8] : memref<32x64xf32, #tpu.memory_space<vmem>>, vector<32x64xf32>
    %c0_9 = arith.constant 0 : index
    %c0_10 = arith.constant 0 : index
    %5 = vector.load %arg5[%c0_9, %c0_10] : memref<1x64xf32, #tpu.memory_space<vmem>>, vector<1x64xf32>
    %c0_11 = arith.constant 0 : index
    %c0_12 = arith.constant 0 : index
    %6 = vector.load %arg6[%c0_11, %c0_12] : memref<32x32xf32, #tpu.memory_space<vmem>>, vector<32x32xf32>
    %c0_13 = arith.constant 0 : index
    %c0_14 = arith.constant 0 : index
    %7 = vector.load %arg7[%c0_13, %c0_14] : memref<1x32xf32, #tpu.memory_space<vmem>>, vector<1x32xf32>
    %cst = arith.constant dense<0.000000e+00> : vector<32x32xf32>
    %8 = tpu.matmul %1, %2, %cst {dimension_numbers = #tpu.dot_dimension_numbers<[1], [0], [0], [1], [0, 0, 1, 1], [], []>} : vector<32x32xf32>, vector<32x32xf32>, vector<32x32xf32> -> vector<32x32xf32>
    %9 = vector.broadcast %3 : vector<1x32xf32> to vector<32x32xf32>
    %10 = arith.addf %8, %9 : vector<32x32xf32>
    %cst_15 = arith.constant dense<0.000000e+00> : vector<16x64xf32>
    %11 = tpu.matmul %0, %4, %cst_15 {dimension_numbers = #tpu.dot_dimension_numbers<[1], [0], [0], [1], [0, 0, 1, 1], [], []>} : vector<16x32xf32>, vector<32x64xf32>, vector<16x64xf32> -> vector<16x64xf32>
    %12 = vector.broadcast %5 : vector<1x64xf32> to vector<16x64xf32>
    %13 = arith.addf %11, %12 : vector<16x64xf32>
    %14 = vector.extract_strided_slice %13 {offsets = [0, 0], sizes = [16, 32], strides = [1, 1]} : vector<16x64xf32> to vector<16x32xf32>
    %15 = vector.extract_strided_slice %13 {offsets = [0, 32], sizes = [16, 32], strides = [1, 1]} : vector<16x64xf32> to vector<16x32xf32>
    %16 = vector.extract_strided_slice %10 {offsets = [0, 0], sizes = [16, 8], strides = [1, 1]} : vector<32x32xf32> to vector<16x8xf32>
    %17 = vector.extract_strided_slice %10 {offsets = [0, 8], sizes = [16, 8], strides = [1, 1]} : vector<32x32xf32> to vector<16x8xf32>
    %18 = vector.extract_strided_slice %10 {offsets = [0, 16], sizes = [16, 8], strides = [1, 1]} : vector<32x32xf32> to vector<16x8xf32>
    %19 = vector.extract_strided_slice %10 {offsets = [0, 24], sizes = [16, 8], strides = [1, 1]} : vector<32x32xf32> to vector<16x8xf32>
    %20 = vector.extract_strided_slice %10 {offsets = [16, 0], sizes = [16, 8], strides = [1, 1]} : vector<32x32xf32> to vector<16x8xf32>
    %21 = vector.extract_strided_slice %10 {offsets = [16, 8], sizes = [16, 8], strides = [1, 1]} : vector<32x32xf32> to vector<16x8xf32>
    %22 = vector.extract_strided_slice %10 {offsets = [16, 16], sizes = [16, 8], strides = [1, 1]} : vector<32x32xf32> to vector<16x8xf32>
    %23 = vector.extract_strided_slice %10 {offsets = [16, 24], sizes = [16, 8], strides = [1, 1]} : vector<32x32xf32> to vector<16x8xf32>
    %24 = vector.shape_cast %16 : vector<16x8xf32> to vector<1x16x8xf32>
    %25 = vector.shape_cast %17 : vector<16x8xf32> to vector<1x16x8xf32>
    %26 = vector.shape_cast %18 : vector<16x8xf32> to vector<1x16x8xf32>
    %27 = vector.shape_cast %19 : vector<16x8xf32> to vector<1x16x8xf32>
    %28 = vector.shape_cast %20 : vector<16x8xf32> to vector<1x16x8xf32>
    %29 = vector.shape_cast %21 : vector<16x8xf32> to vector<1x16x8xf32>
    %30 = vector.shape_cast %22 : vector<16x8xf32> to vector<1x16x8xf32>
    %31 = vector.shape_cast %23 : vector<16x8xf32> to vector<1x16x8xf32>
    %32 = tpu.concatenate %24, %25, %26, %27, %28, %29, %30, %31 in 0 : vector<1x16x8xf32>, vector<1x16x8xf32>, vector<1x16x8xf32>, vector<1x16x8xf32>, vector<1x16x8xf32>, vector<1x16x8xf32>, vector<1x16x8xf32>, vector<1x16x8xf32> -> vector<8x16x8xf32>
    %33 = vector.extract_strided_slice %14 {offsets = [0, 0], sizes = [8, 8], strides = [1, 1]} : vector<16x32xf32> to vector<8x8xf32>
    %34 = vector.extract_strided_slice %14 {offsets = [0, 8], sizes = [8, 8], strides = [1, 1]} : vector<16x32xf32> to vector<8x8xf32>
    %35 = vector.extract_strided_slice %14 {offsets = [0, 16], sizes = [8, 8], strides = [1, 1]} : vector<16x32xf32> to vector<8x8xf32>
    %36 = vector.extract_strided_slice %14 {offsets = [0, 24], sizes = [8, 8], strides = [1, 1]} : vector<16x32xf32> to vector<8x8xf32>
    %37 = vector.extract_strided_slice %14 {offsets = [8, 0], sizes = [8, 8], strides = [1, 1]} : vector<16x32xf32> to vector<8x8xf32>
    %38 = vector.extract_strided_slice %14 {offsets = [8, 8], sizes = [8, 8], strides = [1, 1]} : vector<16x32xf32> to vector<8x8xf32>
    %39 = vector.extract_strided_slice %14 {offsets = [8, 16], sizes = [8, 8], strides = [1, 1]} : vector<16x32xf32> to vector<8x8xf32>
    %40 = vector.extract_strided_slice %14 {offsets = [8, 24], sizes = [8, 8], strides = [1, 1]} : vector<16x32xf32> to vector<8x8xf32>
    %41 = vector.shape_cast %33 : vector<8x8xf32> to vector<1x8x8xf32>
    %42 = vector.shape_cast %34 : vector<8x8xf32> to vector<1x8x8xf32>
    %43 = vector.shape_cast %35 : vector<8x8xf32> to vector<1x8x8xf32>
    %44 = vector.shape_cast %36 : vector<8x8xf32> to vector<1x8x8xf32>
    %45 = vector.shape_cast %37 : vector<8x8xf32> to vector<1x8x8xf32>
    %46 = vector.shape_cast %38 : vector<8x8xf32> to vector<1x8x8xf32>
    %47 = vector.shape_cast %39 : vector<8x8xf32> to vector<1x8x8xf32>
    %48 = vector.shape_cast %40 : vector<8x8xf32> to vector<1x8x8xf32>
    %49 = tpu.concatenate %41, %42, %43, %44, %45, %46, %47, %48 in 0 : vector<1x8x8xf32>, vector<1x8x8xf32>, vector<1x8x8xf32>, vector<1x8x8xf32>, vector<1x8x8xf32>, vector<1x8x8xf32>, vector<1x8x8xf32>, vector<1x8x8xf32> -> vector<8x8x8xf32>
    %50 = vector.extract_strided_slice %15 {offsets = [0, 0], sizes = [8, 8], strides = [1, 1]} : vector<16x32xf32> to vector<8x8xf32>
    %51 = vector.extract_strided_slice %15 {offsets = [0, 8], sizes = [8, 8], strides = [1, 1]} : vector<16x32xf32> to vector<8x8xf32>
    %52 = vector.extract_strided_slice %15 {offsets = [0, 16], sizes = [8, 8], strides = [1, 1]} : vector<16x32xf32> to vector<8x8xf32>
    %53 = vector.extract_strided_slice %15 {offsets = [0, 24], sizes = [8, 8], strides = [1, 1]} : vector<16x32xf32> to vector<8x8xf32>
    %54 = vector.extract_strided_slice %15 {offsets = [8, 0], sizes = [8, 8], strides = [1, 1]} : vector<16x32xf32> to vector<8x8xf32>
    %55 = vector.extract_strided_slice %15 {offsets = [8, 8], sizes = [8, 8], strides = [1, 1]} : vector<16x32xf32> to vector<8x8xf32>
    %56 = vector.extract_strided_slice %15 {offsets = [8, 16], sizes = [8, 8], strides = [1, 1]} : vector<16x32xf32> to vector<8x8xf32>
    %57 = vector.extract_strided_slice %15 {offsets = [8, 24], sizes = [8, 8], strides = [1, 1]} : vector<16x32xf32> to vector<8x8xf32>
    %58 = vector.shape_cast %50 : vector<8x8xf32> to vector<1x8x8xf32>
    %59 = vector.shape_cast %51 : vector<8x8xf32> to vector<1x8x8xf32>
    %60 = vector.shape_cast %52 : vector<8x8xf32> to vector<1x8x8xf32>
    %61 = vector.shape_cast %53 : vector<8x8xf32> to vector<1x8x8xf32>
    %62 = vector.shape_cast %54 : vector<8x8xf32> to vector<1x8x8xf32>
    %63 = vector.shape_cast %55 : vector<8x8xf32> to vector<1x8x8xf32>
    %64 = vector.shape_cast %56 : vector<8x8xf32> to vector<1x8x8xf32>
    %65 = vector.shape_cast %57 : vector<8x8xf32> to vector<1x8x8xf32>
    %66 = tpu.concatenate %58, %59, %60, %61, %62, %63, %64, %65 in 0 : vector<1x8x8xf32>, vector<1x8x8xf32>, vector<1x8x8xf32>, vector<1x8x8xf32>, vector<1x8x8xf32>, vector<1x8x8xf32>, vector<1x8x8xf32>, vector<1x8x8xf32> -> vector<8x8x8xf32>
    "tpu.trace_start"() <{level = 10 : i32, message = "bqd,bkd->bqk"}> : () -> ()
    %cst_16 = arith.constant dense<0.000000e+00> : vector<8x16x8xf32>
    %67 = tpu.matmul %32, %49, %cst_16 {dimension_numbers = #tpu.dot_dimension_numbers<[2], [2], [1], [1], [0, 0, 0, 1, 1, 1], [0], [0]>} : vector<8x16x8xf32>, vector<8x8x8xf32>, vector<8x16x8xf32> -> vector<8x16x8xf32>
    "tpu.trace_stop"() : () -> ()
    %cst_17 = arith.constant 0.353553385 : f32
    %68 = vector.broadcast %cst_17 : f32 to vector<8x16x8xf32>
    %69 = arith.mulf %67, %68 : vector<8x16x8xf32>
    %cst_18 = arith.constant dense<0xFF800000> : vector<8x16xf32>
    %70 = vector.multi_reduction <maximumf>, %69, %cst_18 [2] : vector<8x16x8xf32> to vector<8x16xf32>
    %71 = vector.shape_cast %70 : vector<8x16xf32> to vector<8x16x1xf32>
    %72 = vector.broadcast %71 : vector<8x16x1xf32> to vector<8x16x8xf32>
    %73 = arith.subf %69, %72 : vector<8x16x8xf32>
    %74 = math.exp %73 : vector<8x16x8xf32>
    %cst_19 = arith.constant dense<0.000000e+00> : vector<8x16xf32>
    %75 = vector.multi_reduction <add>, %74, %cst_19 [2] : vector<8x16x8xf32> to vector<8x16xf32>
    %76 = vector.shape_cast %75 : vector<8x16xf32> to vector<8x16x1xf32>
    %77 = tpu.reciprocal %76 {approx = true} : vector<8x16x1xf32> -> vector<8x16x1xf32>
    %78 = vector.broadcast %77 : vector<8x16x1xf32> to vector<8x16x8xf32>
    %79 = arith.mulf %74, %78 : vector<8x16x8xf32>
    "tpu.trace_start"() <{level = 10 : i32, message = "bqk,bkd->bqd"}> : () -> ()
    %cst_20 = arith.constant dense<0.000000e+00> : vector<8x16x8xf32>
    %80 = tpu.matmul %79, %66, %cst_20 {dimension_numbers = #tpu.dot_dimension_numbers<[2], [1], [1], [2], [0, 0, 0, 1, 1, 2], [0], [0]>} : vector<8x16x8xf32>, vector<8x8x8xf32>, vector<8x16x8xf32> -> vector<8x16x8xf32>
    "tpu.trace_stop"() : () -> ()
    %81 = vector.extract_strided_slice %80 {offsets = [0, 0, 0], sizes = [1, 16, 8], strides = [1, 1, 1]} : vector<8x16x8xf32> to vector<1x16x8xf32>
    %82 = vector.shape_cast %81 : vector<1x16x8xf32> to vector<16x8xf32>
    %83 = vector.extract_strided_slice %80 {offsets = [1, 0, 0], sizes = [1, 16, 8], strides = [1, 1, 1]} : vector<8x16x8xf32> to vector<1x16x8xf32>
    %84 = vector.shape_cast %83 : vector<1x16x8xf32> to vector<16x8xf32>
    %85 = vector.extract_strided_slice %80 {offsets = [2, 0, 0], sizes = [1, 16, 8], strides = [1, 1, 1]} : vector<8x16x8xf32> to vector<1x16x8xf32>
    %86 = vector.shape_cast %85 : vector<1x16x8xf32> to vector<16x8xf32>
    %87 = vector.extract_strided_slice %80 {offsets = [3, 0, 0], sizes = [1, 16, 8], strides = [1, 1, 1]} : vector<8x16x8xf32> to vector<1x16x8xf32>
    %88 = vector.shape_cast %87 : vector<1x16x8xf32> to vector<16x8xf32>
    %89 = tpu.concatenate %82, %84, %86, %88 in 1 : vector<16x8xf32>, vector<16x8xf32>, vector<16x8xf32>, vector<16x8xf32> -> vector<16x32xf32>
    %90 = vector.extract_strided_slice %80 {offsets = [4, 0, 0], sizes = [1, 16, 8], strides = [1, 1, 1]} : vector<8x16x8xf32> to vector<1x16x8xf32>
    %91 = vector.shape_cast %90 : vector<1x16x8xf32> to vector<16x8xf32>
    %92 = vector.extract_strided_slice %80 {offsets = [5, 0, 0], sizes = [1, 16, 8], strides = [1, 1, 1]} : vector<8x16x8xf32> to vector<1x16x8xf32>
    %93 = vector.shape_cast %92 : vector<1x16x8xf32> to vector<16x8xf32>
    %94 = vector.extract_strided_slice %80 {offsets = [6, 0, 0], sizes = [1, 16, 8], strides = [1, 1, 1]} : vector<8x16x8xf32> to vector<1x16x8xf32>
    %95 = vector.shape_cast %94 : vector<1x16x8xf32> to vector<16x8xf32>
    %96 = vector.extract_strided_slice %80 {offsets = [7, 0, 0], sizes = [1, 16, 8], strides = [1, 1, 1]} : vector<8x16x8xf32> to vector<1x16x8xf32>
    %97 = vector.shape_cast %96 : vector<1x16x8xf32> to vector<16x8xf32>
    %98 = tpu.concatenate %91, %93, %95, %97 in 1 : vector<16x8xf32>, vector<16x8xf32>, vector<16x8xf32>, vector<16x8xf32> -> vector<16x32xf32>
    %99 = tpu.concatenate %89, %98 in 0 : vector<16x32xf32>, vector<16x32xf32> -> vector<32x32xf32>
    %cst_21 = arith.constant dense<0.000000e+00> : vector<32x32xf32>
    %100 = tpu.matmul %99, %6, %cst_21 {dimension_numbers = #tpu.dot_dimension_numbers<[1], [0], [0], [1], [0, 0, 1, 1], [], []>} : vector<32x32xf32>, vector<32x32xf32>, vector<32x32xf32> -> vector<32x32xf32>
    %101 = vector.broadcast %7 : vector<1x32xf32> to vector<32x32xf32>
    %102 = arith.addf %100, %101 : vector<32x32xf32>
    %c0_22 = arith.constant 0 : index
    %c0_23 = arith.constant 0 : index
    %103 = vector.load %arg8[%c0_22, %c0_23] : memref<32x32xf32, #tpu.memory_space<vmem>>, vector<32x32xf32>
    %c0_24 = arith.constant 0 : index
    %c0_25 = arith.constant 0 : index
    %104 = vector.load %arg9[%c0_24, %c0_25] : memref<1x32xf32, #tpu.memory_space<vmem>>, vector<1x32xf32>
    %c0_26 = arith.constant 0 : index
    %c0_27 = arith.constant 0 : index
    %105 = vector.load %arg10[%c0_26, %c0_27] : memref<32x64xf32, #tpu.memory_space<vmem>>, vector<32x64xf32>
    %c0_28 = arith.constant 0 : index
    %c0_29 = arith.constant 0 : index
    %106 = vector.load %arg11[%c0_28, %c0_29] : memref<1x64xf32, #tpu.memory_space<vmem>>, vector<1x64xf32>
    %c0_30 = arith.constant 0 : index
    %c0_31 = arith.constant 0 : index
    %107 = vector.load %arg12[%c0_30, %c0_31] : memref<32x32xf32, #tpu.memory_space<vmem>>, vector<32x32xf32>
    %c0_32 = arith.constant 0 : index
    %c0_33 = arith.constant 0 : index
    %108 = vector.load %arg13[%c0_32, %c0_33] : memref<1x32xf32, #tpu.memory_space<vmem>>, vector<1x32xf32>
    %cst_34 = arith.constant dense<0.000000e+00> : vector<16x32xf32>
    %109 = tpu.matmul %0, %103, %cst_34 {dimension_numbers = #tpu.dot_dimension_numbers<[1], [0], [0], [1], [0, 0, 1, 1], [], []>} : vector<16x32xf32>, vector<32x32xf32>, vector<16x32xf32> -> vector<16x32xf32>
    %110 = vector.broadcast %104 : vector<1x32xf32> to vector<16x32xf32>
    %111 = arith.addf %109, %110 : vector<16x32xf32>
    %cst_35 = arith.constant dense<0.000000e+00> : vector<32x64xf32>
    %112 = tpu.matmul %1, %105, %cst_35 {dimension_numbers = #tpu.dot_dimension_numbers<[1], [0], [0], [1], [0, 0, 1, 1], [], []>} : vector<32x32xf32>, vector<32x64xf32>, vector<32x64xf32> -> vector<32x64xf32>
    %113 = vector.broadcast %106 : vector<1x64xf32> to vector<32x64xf32>
    %114 = arith.addf %112, %113 : vector<32x64xf32>
    %115 = vector.extract_strided_slice %114 {offsets = [0, 0], sizes = [32, 32], strides = [1, 1]} : vector<32x64xf32> to vector<32x32xf32>
    %116 = vector.extract_strided_slice %114 {offsets = [0, 32], sizes = [32, 32], strides = [1, 1]} : vector<32x64xf32> to vector<32x32xf32>
    %117 = vector.extract_strided_slice %111 {offsets = [0, 0], sizes = [8, 8], strides = [1, 1]} : vector<16x32xf32> to vector<8x8xf32>
    %118 = vector.extract_strided_slice %111 {offsets = [0, 8], sizes = [8, 8], strides = [1, 1]} : vector<16x32xf32> to vector<8x8xf32>
    %119 = vector.extract_strided_slice %111 {offsets = [0, 16], sizes = [8, 8], strides = [1, 1]} : vector<16x32xf32> to vector<8x8xf32>
    %120 = vector.extract_strided_slice %111 {offsets = [0, 24], sizes = [8, 8], strides = [1, 1]} : vector<16x32xf32> to vector<8x8xf32>
    %121 = vector.extract_strided_slice %111 {offsets = [8, 0], sizes = [8, 8], strides = [1, 1]} : vector<16x32xf32> to vector<8x8xf32>
    %122 = vector.extract_strided_slice %111 {offsets = [8, 8], sizes = [8, 8], strides = [1, 1]} : vector<16x32xf32> to vector<8x8xf32>
    %123 = vector.extract_strided_slice %111 {offsets = [8, 16], sizes = [8, 8], strides = [1, 1]} : vector<16x32xf32> to vector<8x8xf32>
    %124 = vector.extract_strided_slice %111 {offsets = [8, 24], sizes = [8, 8], strides = [1, 1]} : vector<16x32xf32> to vector<8x8xf32>
    %125 = vector.shape_cast %117 : vector<8x8xf32> to vector<1x8x8xf32>
    %126 = vector.shape_cast %118 : vector<8x8xf32> to vector<1x8x8xf32>
    %127 = vector.shape_cast %119 : vector<8x8xf32> to vector<1x8x8xf32>
    %128 = vector.shape_cast %120 : vector<8x8xf32> to vector<1x8x8xf32>
    %129 = vector.shape_cast %121 : vector<8x8xf32> to vector<1x8x8xf32>
    %130 = vector.shape_cast %122 : vector<8x8xf32> to vector<1x8x8xf32>
    %131 = vector.shape_cast %123 : vector<8x8xf32> to vector<1x8x8xf32>
    %132 = vector.shape_cast %124 : vector<8x8xf32> to vector<1x8x8xf32>
    %133 = tpu.concatenate %125, %126, %127, %128, %129, %130, %131, %132 in 0 : vector<1x8x8xf32>, vector<1x8x8xf32>, vector<1x8x8xf32>, vector<1x8x8xf32>, vector<1x8x8xf32>, vector<1x8x8xf32>, vector<1x8x8xf32>, vector<1x8x8xf32> -> vector<8x8x8xf32>
    %134 = vector.extract_strided_slice %115 {offsets = [0, 0], sizes = [16, 8], strides = [1, 1]} : vector<32x32xf32> to vector<16x8xf32>
    %135 = vector.extract_strided_slice %115 {offsets = [0, 8], sizes = [16, 8], strides = [1, 1]} : vector<32x32xf32> to vector<16x8xf32>
    %136 = vector.extract_strided_slice %115 {offsets = [0, 16], sizes = [16, 8], strides = [1, 1]} : vector<32x32xf32> to vector<16x8xf32>
    %137 = vector.extract_strided_slice %115 {offsets = [0, 24], sizes = [16, 8], strides = [1, 1]} : vector<32x32xf32> to vector<16x8xf32>
    %138 = vector.extract_strided_slice %115 {offsets = [16, 0], sizes = [16, 8], strides = [1, 1]} : vector<32x32xf32> to vector<16x8xf32>
    %139 = vector.extract_strided_slice %115 {offsets = [16, 8], sizes = [16, 8], strides = [1, 1]} : vector<32x32xf32> to vector<16x8xf32>
    %140 = vector.extract_strided_slice %115 {offsets = [16, 16], sizes = [16, 8], strides = [1, 1]} : vector<32x32xf32> to vector<16x8xf32>
    %141 = vector.extract_strided_slice %115 {offsets = [16, 24], sizes = [16, 8], strides = [1, 1]} : vector<32x32xf32> to vector<16x8xf32>
    %142 = vector.shape_cast %134 : vector<16x8xf32> to vector<1x16x8xf32>
    %143 = vector.shape_cast %135 : vector<16x8xf32> to vector<1x16x8xf32>
    %144 = vector.shape_cast %136 : vector<16x8xf32> to vector<1x16x8xf32>
    %145 = vector.shape_cast %137 : vector<16x8xf32> to vector<1x16x8xf32>
    %146 = vector.shape_cast %138 : vector<16x8xf32> to vector<1x16x8xf32>
    %147 = vector.shape_cast %139 : vector<16x8xf32> to vector<1x16x8xf32>
    %148 = vector.shape_cast %140 : vector<16x8xf32> to vector<1x16x8xf32>
    %149 = vector.shape_cast %141 : vector<16x8xf32> to vector<1x16x8xf32>
    %150 = tpu.concatenate %142, %143, %144, %145, %146, %147, %148, %149 in 0 : vector<1x16x8xf32>, vector<1x16x8xf32>, vector<1x16x8xf32>, vector<1x16x8xf32>, vector<1x16x8xf32>, vector<1x16x8xf32>, vector<1x16x8xf32>, vector<1x16x8xf32> -> vector<8x16x8xf32>
    %151 = vector.extract_strided_slice %116 {offsets = [0, 0], sizes = [16, 8], strides = [1, 1]} : vector<32x32xf32> to vector<16x8xf32>
    %152 = vector.extract_strided_slice %116 {offsets = [0, 8], sizes = [16, 8], strides = [1, 1]} : vector<32x32xf32> to vector<16x8xf32>
    %153 = vector.extract_strided_slice %116 {offsets = [0, 16], sizes = [16, 8], strides = [1, 1]} : vector<32x32xf32> to vector<16x8xf32>
    %154 = vector.extract_strided_slice %116 {offsets = [0, 24], sizes = [16, 8], strides = [1, 1]} : vector<32x32xf32> to vector<16x8xf32>
    %155 = vector.extract_strided_slice %116 {offsets = [16, 0], sizes = [16, 8], strides = [1, 1]} : vector<32x32xf32> to vector<16x8xf32>
    %156 = vector.extract_strided_slice %116 {offsets = [16, 8], sizes = [16, 8], strides = [1, 1]} : vector<32x32xf32> to vector<16x8xf32>
    %157 = vector.extract_strided_slice %116 {offsets = [16, 16], sizes = [16, 8], strides = [1, 1]} : vector<32x32xf32> to vector<16x8xf32>
    %158 = vector.extract_strided_slice %116 {offsets = [16, 24], sizes = [16, 8], strides = [1, 1]} : vector<32x32xf32> to vector<16x8xf32>
    %159 = vector.shape_cast %151 : vector<16x8xf32> to vector<1x16x8xf32>
    %160 = vector.shape_cast %152 : vector<16x8xf32> to vector<1x16x8xf32>
    %161 = vector.shape_cast %153 : vector<16x8xf32> to vector<1x16x8xf32>
    %162 = vector.shape_cast %154 : vector<16x8xf32> to vector<1x16x8xf32>
    %163 = vector.shape_cast %155 : vector<16x8xf32> to vector<1x16x8xf32>
    %164 = vector.shape_cast %156 : vector<16x8xf32> to vector<1x16x8xf32>
    %165 = vector.shape_cast %157 : vector<16x8xf32> to vector<1x16x8xf32>
    %166 = vector.shape_cast %158 : vector<16x8xf32> to vector<1x16x8xf32>
    %167 = tpu.concatenate %159, %160, %161, %162, %163, %164, %165, %166 in 0 : vector<1x16x8xf32>, vector<1x16x8xf32>, vector<1x16x8xf32>, vector<1x16x8xf32>, vector<1x16x8xf32>, vector<1x16x8xf32>, vector<1x16x8xf32>, vector<1x16x8xf32> -> vector<8x16x8xf32>
    "tpu.trace_start"() <{level = 10 : i32, message = "bqd,bkd->bqk"}> : () -> ()
    %cst_36 = arith.constant dense<0.000000e+00> : vector<8x8x16xf32>
    %168 = tpu.matmul %133, %150, %cst_36 {dimension_numbers = #tpu.dot_dimension_numbers<[2], [2], [1], [1], [0, 0, 0, 1, 1, 1], [0], [0]>} : vector<8x8x8xf32>, vector<8x16x8xf32>, vector<8x8x16xf32> -> vector<8x8x16xf32>
    "tpu.trace_stop"() : () -> ()
    %cst_37 = arith.constant 0.353553385 : f32
    %169 = vector.broadcast %cst_37 : f32 to vector<8x8x16xf32>
    %170 = arith.mulf %168, %169 : vector<8x8x16xf32>
    %cst_38 = arith.constant dense<0xFF800000> : vector<8x8xf32>
    %171 = vector.multi_reduction <maximumf>, %170, %cst_38 [2] : vector<8x8x16xf32> to vector<8x8xf32>
    %172 = vector.shape_cast %171 : vector<8x8xf32> to vector<8x8x1xf32>
    %173 = vector.broadcast %172 : vector<8x8x1xf32> to vector<8x8x16xf32>
    %174 = arith.subf %170, %173 : vector<8x8x16xf32>
    %175 = math.exp %174 : vector<8x8x16xf32>
    %cst_39 = arith.constant dense<0.000000e+00> : vector<8x8xf32>
    %176 = vector.multi_reduction <add>, %175, %cst_39 [2] : vector<8x8x16xf32> to vector<8x8xf32>
    %177 = vector.shape_cast %176 : vector<8x8xf32> to vector<8x8x1xf32>
    %178 = tpu.reciprocal %177 {approx = true} : vector<8x8x1xf32> -> vector<8x8x1xf32>
    %179 = vector.broadcast %178 : vector<8x8x1xf32> to vector<8x8x16xf32>
    %180 = arith.mulf %175, %179 : vector<8x8x16xf32>
    "tpu.trace_start"() <{level = 10 : i32, message = "bqk,bkd->bqd"}> : () -> ()
    %cst_40 = arith.constant dense<0.000000e+00> : vector<8x8x8xf32>
    %181 = tpu.matmul %180, %167, %cst_40 {dimension_numbers = #tpu.dot_dimension_numbers<[2], [1], [1], [2], [0, 0, 0, 1, 1, 2], [0], [0]>} : vector<8x8x16xf32>, vector<8x16x8xf32>, vector<8x8x8xf32> -> vector<8x8x8xf32>
    "tpu.trace_stop"() : () -> ()
    %182 = vector.extract_strided_slice %181 {offsets = [0, 0, 0], sizes = [1, 8, 8], strides = [1, 1, 1]} : vector<8x8x8xf32> to vector<1x8x8xf32>
    %183 = vector.shape_cast %182 : vector<1x8x8xf32> to vector<8x8xf32>
    %184 = vector.extract_strided_slice %181 {offsets = [1, 0, 0], sizes = [1, 8, 8], strides = [1, 1, 1]} : vector<8x8x8xf32> to vector<1x8x8xf32>
    %185 = vector.shape_cast %184 : vector<1x8x8xf32> to vector<8x8xf32>
    %186 = vector.extract_strided_slice %181 {offsets = [2, 0, 0], sizes = [1, 8, 8], strides = [1, 1, 1]} : vector<8x8x8xf32> to vector<1x8x8xf32>
    %187 = vector.shape_cast %186 : vector<1x8x8xf32> to vector<8x8xf32>
    %188 = vector.extract_strided_slice %181 {offsets = [3, 0, 0], sizes = [1, 8, 8], strides = [1, 1, 1]} : vector<8x8x8xf32> to vector<1x8x8xf32>
    %189 = vector.shape_cast %188 : vector<1x8x8xf32> to vector<8x8xf32>
    %190 = tpu.concatenate %183, %185, %187, %189 in 1 : vector<8x8xf32>, vector<8x8xf32>, vector<8x8xf32>, vector<8x8xf32> -> vector<8x32xf32>
    %191 = vector.extract_strided_slice %181 {offsets = [4, 0, 0], sizes = [1, 8, 8], strides = [1, 1, 1]} : vector<8x8x8xf32> to vector<1x8x8xf32>
    %192 = vector.shape_cast %191 : vector<1x8x8xf32> to vector<8x8xf32>
    %193 = vector.extract_strided_slice %181 {offsets = [5, 0, 0], sizes = [1, 8, 8], strides = [1, 1, 1]} : vector<8x8x8xf32> to vector<1x8x8xf32>
    %194 = vector.shape_cast %193 : vector<1x8x8xf32> to vector<8x8xf32>
    %195 = vector.extract_strided_slice %181 {offsets = [6, 0, 0], sizes = [1, 8, 8], strides = [1, 1, 1]} : vector<8x8x8xf32> to vector<1x8x8xf32>
    %196 = vector.shape_cast %195 : vector<1x8x8xf32> to vector<8x8xf32>
    %197 = vector.extract_strided_slice %181 {offsets = [7, 0, 0], sizes = [1, 8, 8], strides = [1, 1, 1]} : vector<8x8x8xf32> to vector<1x8x8xf32>
    %198 = vector.shape_cast %197 : vector<1x8x8xf32> to vector<8x8xf32>
    %199 = tpu.concatenate %192, %194, %196, %198 in 1 : vector<8x8xf32>, vector<8x8xf32>, vector<8x8xf32>, vector<8x8xf32> -> vector<8x32xf32>
    %200 = tpu.concatenate %190, %199 in 0 : vector<8x32xf32>, vector<8x32xf32> -> vector<16x32xf32>
    %cst_41 = arith.constant dense<0.000000e+00> : vector<16x32xf32>
    %201 = tpu.matmul %200, %107, %cst_41 {dimension_numbers = #tpu.dot_dimension_numbers<[1], [0], [0], [1], [0, 0, 1, 1], [], []>} : vector<16x32xf32>, vector<32x32xf32>, vector<16x32xf32> -> vector<16x32xf32>
    %202 = vector.broadcast %108 : vector<1x32xf32> to vector<16x32xf32>
    %203 = arith.addf %201, %202 : vector<16x32xf32>
    %c0_42 = arith.constant 0 : index
    %c0_43 = arith.constant 0 : index
    %204 = vector.load %arg14[%c0_42, %c0_43] : memref<32x96xf32, #tpu.memory_space<vmem>>, vector<32x96xf32>
    %c0_44 = arith.constant 0 : index
    %c0_45 = arith.constant 0 : index
    %205 = vector.load %arg15[%c0_44, %c0_45] : memref<1x96xf32, #tpu.memory_space<vmem>>, vector<1x96xf32>
    %c0_46 = arith.constant 0 : index
    %c0_47 = arith.constant 0 : index
    %206 = vector.load %arg16[%c0_46, %c0_47] : memref<32x32xf32, #tpu.memory_space<vmem>>, vector<32x32xf32>
    %c0_48 = arith.constant 0 : index
    %c0_49 = arith.constant 0 : index
    %207 = vector.load %arg17[%c0_48, %c0_49] : memref<1x32xf32, #tpu.memory_space<vmem>>, vector<1x32xf32>
    %c0_50 = arith.constant 0 : index
    %c0_51 = arith.constant 0 : index
    %208 = vector.load %arg18[%c0_50, %c0_51] : memref<32x64xf32, #tpu.memory_space<vmem>>, vector<32x64xf32>
    %c0_52 = arith.constant 0 : index
    %c0_53 = arith.constant 0 : index
    %209 = vector.load %arg19[%c0_52, %c0_53] : memref<1x64xf32, #tpu.memory_space<vmem>>, vector<1x64xf32>
    %c0_54 = arith.constant 0 : index
    %c0_55 = arith.constant 0 : index
    %210 = vector.load %arg20[%c0_54, %c0_55] : memref<64x32xf32, #tpu.memory_space<vmem>>, vector<64x32xf32>
    %c0_56 = arith.constant 0 : index
    %c0_57 = arith.constant 0 : index
    %211 = vector.load %arg21[%c0_56, %c0_57] : memref<1x32xf32, #tpu.memory_space<vmem>>, vector<1x32xf32>
    %c0_58 = arith.constant 0 : index
    %c0_59 = arith.constant 0 : index
    %212 = vector.load %arg22[%c0_58, %c0_59] : memref<1x32xf32, #tpu.memory_space<vmem>>, vector<1x32xf32>
    %c0_60 = arith.constant 0 : index
    %c0_61 = arith.constant 0 : index
    %213 = vector.load %arg23[%c0_60, %c0_61] : memref<1x32xf32, #tpu.memory_space<vmem>>, vector<1x32xf32>
    %c0_62 = arith.constant 0 : index
    %c0_63 = arith.constant 0 : index
    %214 = vector.load %arg24[%c0_62, %c0_63] : memref<1x32xf32, #tpu.memory_space<vmem>>, vector<1x32xf32>
    %c0_64 = arith.constant 0 : index
    %c0_65 = arith.constant 0 : index
    %215 = vector.load %arg25[%c0_64, %c0_65] : memref<1x32xf32, #tpu.memory_space<vmem>>, vector<1x32xf32>
    %cst_66 = arith.constant dense<0.000000e+00> : vector<32x96xf32>
    %216 = tpu.matmul %102, %204, %cst_66 {dimension_numbers = #tpu.dot_dimension_numbers<[1], [0], [0], [1], [0, 0, 1, 1], [], []>} : vector<32x32xf32>, vector<32x96xf32>, vector<32x96xf32> -> vector<32x96xf32>
    %217 = vector.broadcast %205 : vector<1x96xf32> to vector<32x96xf32>
    %218 = arith.addf %216, %217 : vector<32x96xf32>
    %219 = vector.extract_strided_slice %218 {offsets = [0, 0], sizes = [32, 32], strides = [1, 1]} : vector<32x96xf32> to vector<32x32xf32>
    %220 = vector.extract_strided_slice %218 {offsets = [0, 32], sizes = [32, 32], strides = [1, 1]} : vector<32x96xf32> to vector<32x32xf32>
    %221 = vector.extract_strided_slice %218 {offsets = [0, 64], sizes = [32, 32], strides = [1, 1]} : vector<32x96xf32> to vector<32x32xf32>
    %222 = vector.extract_strided_slice %219 {offsets = [0, 0], sizes = [16, 8], strides = [1, 1]} : vector<32x32xf32> to vector<16x8xf32>
    %223 = vector.extract_strided_slice %219 {offsets = [0, 8], sizes = [16, 8], strides = [1, 1]} : vector<32x32xf32> to vector<16x8xf32>
    %224 = vector.extract_strided_slice %219 {offsets = [0, 16], sizes = [16, 8], strides = [1, 1]} : vector<32x32xf32> to vector<16x8xf32>
    %225 = vector.extract_strided_slice %219 {offsets = [0, 24], sizes = [16, 8], strides = [1, 1]} : vector<32x32xf32> to vector<16x8xf32>
    %226 = vector.extract_strided_slice %219 {offsets = [16, 0], sizes = [16, 8], strides = [1, 1]} : vector<32x32xf32> to vector<16x8xf32>
    %227 = vector.extract_strided_slice %219 {offsets = [16, 8], sizes = [16, 8], strides = [1, 1]} : vector<32x32xf32> to vector<16x8xf32>
    %228 = vector.extract_strided_slice %219 {offsets = [16, 16], sizes = [16, 8], strides = [1, 1]} : vector<32x32xf32> to vector<16x8xf32>
    %229 = vector.extract_strided_slice %219 {offsets = [16, 24], sizes = [16, 8], strides = [1, 1]} : vector<32x32xf32> to vector<16x8xf32>
    %230 = vector.shape_cast %222 : vector<16x8xf32> to vector<1x16x8xf32>
    %231 = vector.shape_cast %223 : vector<16x8xf32> to vector<1x16x8xf32>
    %232 = vector.shape_cast %224 : vector<16x8xf32> to vector<1x16x8xf32>
    %233 = vector.shape_cast %225 : vector<16x8xf32> to vector<1x16x8xf32>
    %234 = vector.shape_cast %226 : vector<16x8xf32> to vector<1x16x8xf32>
    %235 = vector.shape_cast %227 : vector<16x8xf32> to vector<1x16x8xf32>
    %236 = vector.shape_cast %228 : vector<16x8xf32> to vector<1x16x8xf32>
    %237 = vector.shape_cast %229 : vector<16x8xf32> to vector<1x16x8xf32>
    %238 = tpu.concatenate %230, %231, %232, %233, %234, %235, %236, %237 in 0 : vector<1x16x8xf32>, vector<1x16x8xf32>, vector<1x16x8xf32>, vector<1x16x8xf32>, vector<1x16x8xf32>, vector<1x16x8xf32>, vector<1x16x8xf32>, vector<1x16x8xf32> -> vector<8x16x8xf32>
    %239 = vector.extract_strided_slice %220 {offsets = [0, 0], sizes = [16, 8], strides = [1, 1]} : vector<32x32xf32> to vector<16x8xf32>
    %240 = vector.extract_strided_slice %220 {offsets = [0, 8], sizes = [16, 8], strides = [1, 1]} : vector<32x32xf32> to vector<16x8xf32>
    %241 = vector.extract_strided_slice %220 {offsets = [0, 16], sizes = [16, 8], strides = [1, 1]} : vector<32x32xf32> to vector<16x8xf32>
    %242 = vector.extract_strided_slice %220 {offsets = [0, 24], sizes = [16, 8], strides = [1, 1]} : vector<32x32xf32> to vector<16x8xf32>
    %243 = vector.extract_strided_slice %220 {offsets = [16, 0], sizes = [16, 8], strides = [1, 1]} : vector<32x32xf32> to vector<16x8xf32>
    %244 = vector.extract_strided_slice %220 {offsets = [16, 8], sizes = [16, 8], strides = [1, 1]} : vector<32x32xf32> to vector<16x8xf32>
    %245 = vector.extract_strided_slice %220 {offsets = [16, 16], sizes = [16, 8], strides = [1, 1]} : vector<32x32xf32> to vector<16x8xf32>
    %246 = vector.extract_strided_slice %220 {offsets = [16, 24], sizes = [16, 8], strides = [1, 1]} : vector<32x32xf32> to vector<16x8xf32>
    %247 = vector.shape_cast %239 : vector<16x8xf32> to vector<1x16x8xf32>
    %248 = vector.shape_cast %240 : vector<16x8xf32> to vector<1x16x8xf32>
    %249 = vector.shape_cast %241 : vector<16x8xf32> to vector<1x16x8xf32>
    %250 = vector.shape_cast %242 : vector<16x8xf32> to vector<1x16x8xf32>
    %251 = vector.shape_cast %243 : vector<16x8xf32> to vector<1x16x8xf32>
    %252 = vector.shape_cast %244 : vector<16x8xf32> to vector<1x16x8xf32>
    %253 = vector.shape_cast %245 : vector<16x8xf32> to vector<1x16x8xf32>
    %254 = vector.shape_cast %246 : vector<16x8xf32> to vector<1x16x8xf32>
    %255 = tpu.concatenate %247, %248, %249, %250, %251, %252, %253, %254 in 0 : vector<1x16x8xf32>, vector<1x16x8xf32>, vector<1x16x8xf32>, vector<1x16x8xf32>, vector<1x16x8xf32>, vector<1x16x8xf32>, vector<1x16x8xf32>, vector<1x16x8xf32> -> vector<8x16x8xf32>
    %256 = vector.extract_strided_slice %221 {offsets = [0, 0], sizes = [16, 8], strides = [1, 1]} : vector<32x32xf32> to vector<16x8xf32>
    %257 = vector.extract_strided_slice %221 {offsets = [0, 8], sizes = [16, 8], strides = [1, 1]} : vector<32x32xf32> to vector<16x8xf32>
    %258 = vector.extract_strided_slice %221 {offsets = [0, 16], sizes = [16, 8], strides = [1, 1]} : vector<32x32xf32> to vector<16x8xf32>
    %259 = vector.extract_strided_slice %221 {offsets = [0, 24], sizes = [16, 8], strides = [1, 1]} : vector<32x32xf32> to vector<16x8xf32>
    %260 = vector.extract_strided_slice %221 {offsets = [16, 0], sizes = [16, 8], strides = [1, 1]} : vector<32x32xf32> to vector<16x8xf32>
    %261 = vector.extract_strided_slice %221 {offsets = [16, 8], sizes = [16, 8], strides = [1, 1]} : vector<32x32xf32> to vector<16x8xf32>
    %262 = vector.extract_strided_slice %221 {offsets = [16, 16], sizes = [16, 8], strides = [1, 1]} : vector<32x32xf32> to vector<16x8xf32>
    %263 = vector.extract_strided_slice %221 {offsets = [16, 24], sizes = [16, 8], strides = [1, 1]} : vector<32x32xf32> to vector<16x8xf32>
    %264 = vector.shape_cast %256 : vector<16x8xf32> to vector<1x16x8xf32>
    %265 = vector.shape_cast %257 : vector<16x8xf32> to vector<1x16x8xf32>
    %266 = vector.shape_cast %258 : vector<16x8xf32> to vector<1x16x8xf32>
    %267 = vector.shape_cast %259 : vector<16x8xf32> to vector<1x16x8xf32>
    %268 = vector.shape_cast %260 : vector<16x8xf32> to vector<1x16x8xf32>
    %269 = vector.shape_cast %261 : vector<16x8xf32> to vector<1x16x8xf32>
    %270 = vector.shape_cast %262 : vector<16x8xf32> to vector<1x16x8xf32>
    %271 = vector.shape_cast %263 : vector<16x8xf32> to vector<1x16x8xf32>
    %272 = tpu.concatenate %264, %265, %266, %267, %268, %269, %270, %271 in 0 : vector<1x16x8xf32>, vector<1x16x8xf32>, vector<1x16x8xf32>, vector<1x16x8xf32>, vector<1x16x8xf32>, vector<1x16x8xf32>, vector<1x16x8xf32>, vector<1x16x8xf32> -> vector<8x16x8xf32>
    "tpu.trace_start"() <{level = 10 : i32, message = "bqd,bkd->bqk"}> : () -> ()
    %cst_67 = arith.constant dense<0.000000e+00> : vector<8x16x16xf32>
    %273 = tpu.matmul %238, %255, %cst_67 {dimension_numbers = #tpu.dot_dimension_numbers<[2], [2], [1], [1], [0, 0, 0, 1, 1, 1], [0], [0]>} : vector<8x16x8xf32>, vector<8x16x8xf32>, vector<8x16x16xf32> -> vector<8x16x16xf32>
    "tpu.trace_stop"() : () -> ()
    %cst_68 = arith.constant 0.353553385 : f32
    %274 = vector.broadcast %cst_68 : f32 to vector<8x16x16xf32>
    %275 = arith.mulf %273, %274 : vector<8x16x16xf32>
    %cst_69 = arith.constant dense<0xFF800000> : vector<8x16xf32>
    %276 = vector.multi_reduction <maximumf>, %275, %cst_69 [2] : vector<8x16x16xf32> to vector<8x16xf32>
    %277 = vector.shape_cast %276 : vector<8x16xf32> to vector<8x16x1xf32>
    %278 = vector.broadcast %277 : vector<8x16x1xf32> to vector<8x16x16xf32>
    %279 = arith.subf %275, %278 : vector<8x16x16xf32>
    %280 = math.exp %279 : vector<8x16x16xf32>
    %cst_70 = arith.constant dense<0.000000e+00> : vector<8x16xf32>
    %281 = vector.multi_reduction <add>, %280, %cst_70 [2] : vector<8x16x16xf32> to vector<8x16xf32>
    %282 = vector.shape_cast %281 : vector<8x16xf32> to vector<8x16x1xf32>
    %283 = tpu.reciprocal %282 {approx = true} : vector<8x16x1xf32> -> vector<8x16x1xf32>
    %284 = vector.broadcast %283 : vector<8x16x1xf32> to vector<8x16x16xf32>
    %285 = arith.mulf %280, %284 : vector<8x16x16xf32>
    "tpu.trace_start"() <{level = 10 : i32, message = "bqk,bkd->bqd"}> : () -> ()
    %cst_71 = arith.constant dense<0.000000e+00> : vector<8x16x8xf32>
    %286 = tpu.matmul %285, %272, %cst_71 {dimension_numbers = #tpu.dot_dimension_numbers<[2], [1], [1], [2], [0, 0, 0, 1, 1, 2], [0], [0]>} : vector<8x16x16xf32>, vector<8x16x8xf32>, vector<8x16x8xf32> -> vector<8x16x8xf32>
    "tpu.trace_stop"() : () -> ()
    %287 = vector.extract_strided_slice %286 {offsets = [0, 0, 0], sizes = [1, 16, 8], strides = [1, 1, 1]} : vector<8x16x8xf32> to vector<1x16x8xf32>
    %288 = vector.shape_cast %287 : vector<1x16x8xf32> to vector<16x8xf32>
    %289 = vector.extract_strided_slice %286 {offsets = [1, 0, 0], sizes = [1, 16, 8], strides = [1, 1, 1]} : vector<8x16x8xf32> to vector<1x16x8xf32>
    %290 = vector.shape_cast %289 : vector<1x16x8xf32> to vector<16x8xf32>
    %291 = vector.extract_strided_slice %286 {offsets = [2, 0, 0], sizes = [1, 16, 8], strides = [1, 1, 1]} : vector<8x16x8xf32> to vector<1x16x8xf32>
    %292 = vector.shape_cast %291 : vector<1x16x8xf32> to vector<16x8xf32>
    %293 = vector.extract_strided_slice %286 {offsets = [3, 0, 0], sizes = [1, 16, 8], strides = [1, 1, 1]} : vector<8x16x8xf32> to vector<1x16x8xf32>
    %294 = vector.shape_cast %293 : vector<1x16x8xf32> to vector<16x8xf32>
    %295 = tpu.concatenate %288, %290, %292, %294 in 1 : vector<16x8xf32>, vector<16x8xf32>, vector<16x8xf32>, vector<16x8xf32> -> vector<16x32xf32>
    %296 = vector.extract_strided_slice %286 {offsets = [4, 0, 0], sizes = [1, 16, 8], strides = [1, 1, 1]} : vector<8x16x8xf32> to vector<1x16x8xf32>
    %297 = vector.shape_cast %296 : vector<1x16x8xf32> to vector<16x8xf32>
    %298 = vector.extract_strided_slice %286 {offsets = [5, 0, 0], sizes = [1, 16, 8], strides = [1, 1, 1]} : vector<8x16x8xf32> to vector<1x16x8xf32>
    %299 = vector.shape_cast %298 : vector<1x16x8xf32> to vector<16x8xf32>
    %300 = vector.extract_strided_slice %286 {offsets = [6, 0, 0], sizes = [1, 16, 8], strides = [1, 1, 1]} : vector<8x16x8xf32> to vector<1x16x8xf32>
    %301 = vector.shape_cast %300 : vector<1x16x8xf32> to vector<16x8xf32>
    %302 = vector.extract_strided_slice %286 {offsets = [7, 0, 0], sizes = [1, 16, 8], strides = [1, 1, 1]} : vector<8x16x8xf32> to vector<1x16x8xf32>
    %303 = vector.shape_cast %302 : vector<1x16x8xf32> to vector<16x8xf32>
    %304 = tpu.concatenate %297, %299, %301, %303 in 1 : vector<16x8xf32>, vector<16x8xf32>, vector<16x8xf32>, vector<16x8xf32> -> vector<16x32xf32>
    %305 = tpu.concatenate %295, %304 in 0 : vector<16x32xf32>, vector<16x32xf32> -> vector<32x32xf32>
    %cst_72 = arith.constant dense<0.000000e+00> : vector<32x32xf32>
    %306 = tpu.matmul %305, %206, %cst_72 {dimension_numbers = #tpu.dot_dimension_numbers<[1], [0], [0], [1], [0, 0, 1, 1], [], []>} : vector<32x32xf32>, vector<32x32xf32>, vector<32x32xf32> -> vector<32x32xf32>
    %307 = vector.broadcast %207 : vector<1x32xf32> to vector<32x32xf32>
    %308 = arith.addf %306, %307 : vector<32x32xf32>
    %309 = arith.addf %102, %308 : vector<32x32xf32>
    %cst_73 = arith.constant dense<0.000000e+00> : vector<32xf32>
    %310 = vector.multi_reduction <add>, %309, %cst_73 [1] : vector<32x32xf32> to vector<32xf32>
    %311 = vector.shape_cast %310 : vector<32xf32> to vector<32x1xf32>
    %cst_74 = arith.constant 3.200000e+01 : f32
    %312 = vector.broadcast %cst_74 : f32 to vector<32x1xf32>
    %313 = arith.divf %311, %312 : vector<32x1xf32>
    %314 = vector.broadcast %313 : vector<32x1xf32> to vector<32x32xf32>
    %315 = arith.subf %309, %314 : vector<32x32xf32>
    %316 = arith.mulf %315, %315 : vector<32x32xf32>
    %cst_75 = arith.constant dense<0.000000e+00> : vector<32xf32>
    %317 = vector.multi_reduction <add>, %316, %cst_75 [1] : vector<32x32xf32> to vector<32xf32>
    %318 = vector.shape_cast %317 : vector<32xf32> to vector<32x1xf32>
    %cst_76 = arith.constant 3.200000e+01 : f32
    %319 = vector.broadcast %cst_76 : f32 to vector<32x1xf32>
    %320 = arith.divf %318, %319 : vector<32x1xf32>
    %cst_77 = arith.constant 9.99999974E-6 : f32
    %321 = vector.broadcast %cst_77 : f32 to vector<32x1xf32>
    %322 = arith.addf %320, %321 : vector<32x1xf32>
    %323 = math.rsqrt %322 : vector<32x1xf32>
    %324 = vector.broadcast %323 : vector<32x1xf32> to vector<32x32xf32>
    %325 = arith.mulf %315, %324 : vector<32x32xf32>
    %326 = vector.broadcast %212 : vector<1x32xf32> to vector<32x32xf32>
    %327 = arith.mulf %325, %326 : vector<32x32xf32>
    %328 = vector.broadcast %213 : vector<1x32xf32> to vector<32x32xf32>
    %329 = arith.addf %327, %328 : vector<32x32xf32>
    %cst_78 = arith.constant dense<0.000000e+00> : vector<32x64xf32>
    %330 = tpu.matmul %329, %208, %cst_78 {dimension_numbers = #tpu.dot_dimension_numbers<[1], [0], [0], [1], [0, 0, 1, 1], [], []>} : vector<32x32xf32>, vector<32x64xf32>, vector<32x64xf32> -> vector<32x64xf32>
    %331 = vector.broadcast %209 : vector<1x64xf32> to vector<32x64xf32>
    %332 = arith.addf %330, %331 : vector<32x64xf32>
    %cst_79 = arith.constant 0.000000e+00 : f32
    %333 = vector.broadcast %cst_79 : f32 to vector<32x64xf32>
    %334 = arith.maximumf %332, %333 : vector<32x64xf32>
    %cst_80 = arith.constant dense<0.000000e+00> : vector<32x32xf32>
    %335 = tpu.matmul %334, %210, %cst_80 {dimension_numbers = #tpu.dot_dimension_numbers<[1], [0], [0], [1], [0, 0, 1, 1], [], []>} : vector<32x64xf32>, vector<64x32xf32>, vector<32x32xf32> -> vector<32x32xf32>
    %336 = vector.broadcast %211 : vector<1x32xf32> to vector<32x32xf32>
    %337 = arith.addf %335, %336 : vector<32x32xf32>
    %338 = arith.addf %329, %337 : vector<32x32xf32>
    %cst_81 = arith.constant dense<0.000000e+00> : vector<32xf32>
    %339 = vector.multi_reduction <add>, %338, %cst_81 [1] : vector<32x32xf32> to vector<32xf32>
    %340 = vector.shape_cast %339 : vector<32xf32> to vector<32x1xf32>
    %cst_82 = arith.constant 3.200000e+01 : f32
    %341 = vector.broadcast %cst_82 : f32 to vector<32x1xf32>
    %342 = arith.divf %340, %341 : vector<32x1xf32>
    %343 = vector.broadcast %342 : vector<32x1xf32> to vector<32x32xf32>
    %344 = arith.subf %338, %343 : vector<32x32xf32>
    %345 = arith.mulf %344, %344 : vector<32x32xf32>
    %cst_83 = arith.constant dense<0.000000e+00> : vector<32xf32>
    %346 = vector.multi_reduction <add>, %345, %cst_83 [1] : vector<32x32xf32> to vector<32xf32>
    %347 = vector.shape_cast %346 : vector<32xf32> to vector<32x1xf32>
    %cst_84 = arith.constant 3.200000e+01 : f32
    %348 = vector.broadcast %cst_84 : f32 to vector<32x1xf32>
    %349 = arith.divf %347, %348 : vector<32x1xf32>
    %cst_85 = arith.constant 9.99999974E-6 : f32
    %350 = vector.broadcast %cst_85 : f32 to vector<32x1xf32>
    %351 = arith.addf %349, %350 : vector<32x1xf32>
    %352 = math.rsqrt %351 : vector<32x1xf32>
    %353 = vector.broadcast %352 : vector<32x1xf32> to vector<32x32xf32>
    %354 = arith.mulf %344, %353 : vector<32x32xf32>
    %355 = vector.broadcast %214 : vector<1x32xf32> to vector<32x32xf32>
    %356 = arith.mulf %354, %355 : vector<32x32xf32>
    %357 = vector.broadcast %215 : vector<1x32xf32> to vector<32x32xf32>
    %358 = arith.addf %356, %357 : vector<32x32xf32>
    %c0_86 = arith.constant 0 : index
    %c0_87 = arith.constant 0 : index
    %359 = vector.load %arg38[%c0_86, %c0_87] : memref<32x32xf32, #tpu.memory_space<vmem>>, vector<32x32xf32>
    tpu.vector_store %arg38[%c0_86, %c0_87], %358 {strides = array<i32>} : memref<32x32xf32, #tpu.memory_space<vmem>>, vector<32x32xf32>,
    %c0_88 = arith.constant 0 : index
    %c0_89 = arith.constant 0 : index
    %360 = vector.load %arg26[%c0_88, %c0_89] : memref<32x96xf32, #tpu.memory_space<vmem>>, vector<32x96xf32>
    %c0_90 = arith.constant 0 : index
    %c0_91 = arith.constant 0 : index
    %361 = vector.load %arg27[%c0_90, %c0_91] : memref<1x96xf32, #tpu.memory_space<vmem>>, vector<1x96xf32>
    %c0_92 = arith.constant 0 : index
    %c0_93 = arith.constant 0 : index
    %362 = vector.load %arg28[%c0_92, %c0_93] : memref<32x32xf32, #tpu.memory_space<vmem>>, vector<32x32xf32>
    %c0_94 = arith.constant 0 : index
    %c0_95 = arith.constant 0 : index
    %363 = vector.load %arg29[%c0_94, %c0_95] : memref<1x32xf32, #tpu.memory_space<vmem>>, vector<1x32xf32>
    %c0_96 = arith.constant 0 : index
    %c0_97 = arith.constant 0 : index
    %364 = vector.load %arg30[%c0_96, %c0_97] : memref<32x64xf32, #tpu.memory_space<vmem>>, vector<32x64xf32>
    %c0_98 = arith.constant 0 : index
    %c0_99 = arith.constant 0 : index
    %365 = vector.load %arg31[%c0_98, %c0_99] : memref<1x64xf32, #tpu.memory_space<vmem>>, vector<1x64xf32>
    %c0_100 = arith.constant 0 : index
    %c0_101 = arith.constant 0 : index
    %366 = vector.load %arg32[%c0_100, %c0_101] : memref<64x32xf32, #tpu.memory_space<vmem>>, vector<64x32xf32>
    %c0_102 = arith.constant 0 : index
    %c0_103 = arith.constant 0 : index
    %367 = vector.load %arg33[%c0_102, %c0_103] : memref<1x32xf32, #tpu.memory_space<vmem>>, vector<1x32xf32>
    %c0_104 = arith.constant 0 : index
    %c0_105 = arith.constant 0 : index
    %368 = vector.load %arg34[%c0_104, %c0_105] : memref<1x32xf32, #tpu.memory_space<vmem>>, vector<1x32xf32>
    %c0_106 = arith.constant 0 : index
    %c0_107 = arith.constant 0 : index
    %369 = vector.load %arg35[%c0_106, %c0_107] : memref<1x32xf32, #tpu.memory_space<vmem>>, vector<1x32xf32>
    %c0_108 = arith.constant 0 : index
    %c0_109 = arith.constant 0 : index
    %370 = vector.load %arg36[%c0_108, %c0_109] : memref<1x32xf32, #tpu.memory_space<vmem>>, vector<1x32xf32>
    %c0_110 = arith.constant 0 : index
    %c0_111 = arith.constant 0 : index
    %371 = vector.load %arg37[%c0_110, %c0_111] : memref<1x32xf32, #tpu.memory_space<vmem>>, vector<1x32xf32>
    %cst_112 = arith.constant dense<0.000000e+00> : vector<16x96xf32>
    %372 = tpu.matmul %203, %360, %cst_112 {dimension_numbers = #tpu.dot_dimension_numbers<[1], [0], [0], [1], [0, 0, 1, 1], [], []>} : vector<16x32xf32>, vector<32x96xf32>, vector<16x96xf32> -> vector<16x96xf32>
    %373 = vector.broadcast %361 : vector<1x96xf32> to vector<16x96xf32>
    %374 = arith.addf %372, %373 : vector<16x96xf32>
    %375 = vector.extract_strided_slice %374 {offsets = [0, 0], sizes = [16, 32], strides = [1, 1]} : vector<16x96xf32> to vector<16x32xf32>
    %376 = vector.extract_strided_slice %374 {offsets = [0, 32], sizes = [16, 32], strides = [1, 1]} : vector<16x96xf32> to vector<16x32xf32>
    %377 = vector.extract_strided_slice %374 {offsets = [0, 64], sizes = [16, 32], strides = [1, 1]} : vector<16x96xf32> to vector<16x32xf32>
    %378 = vector.extract_strided_slice %375 {offsets = [0, 0], sizes = [8, 8], strides = [1, 1]} : vector<16x32xf32> to vector<8x8xf32>
    %379 = vector.extract_strided_slice %375 {offsets = [0, 8], sizes = [8, 8], strides = [1, 1]} : vector<16x32xf32> to vector<8x8xf32>
    %380 = vector.extract_strided_slice %375 {offsets = [0, 16], sizes = [8, 8], strides = [1, 1]} : vector<16x32xf32> to vector<8x8xf32>
    %381 = vector.extract_strided_slice %375 {offsets = [0, 24], sizes = [8, 8], strides = [1, 1]} : vector<16x32xf32> to vector<8x8xf32>
    %382 = vector.extract_strided_slice %375 {offsets = [8, 0], sizes = [8, 8], strides = [1, 1]} : vector<16x32xf32> to vector<8x8xf32>
    %383 = vector.extract_strided_slice %375 {offsets = [8, 8], sizes = [8, 8], strides = [1, 1]} : vector<16x32xf32> to vector<8x8xf32>
    %384 = vector.extract_strided_slice %375 {offsets = [8, 16], sizes = [8, 8], strides = [1, 1]} : vector<16x32xf32> to vector<8x8xf32>
    %385 = vector.extract_strided_slice %375 {offsets = [8, 24], sizes = [8, 8], strides = [1, 1]} : vector<16x32xf32> to vector<8x8xf32>
    %386 = vector.shape_cast %378 : vector<8x8xf32> to vector<1x8x8xf32>
    %387 = vector.shape_cast %379 : vector<8x8xf32> to vector<1x8x8xf32>
    %388 = vector.shape_cast %380 : vector<8x8xf32> to vector<1x8x8xf32>
    %389 = vector.shape_cast %381 : vector<8x8xf32> to vector<1x8x8xf32>
    %390 = vector.shape_cast %382 : vector<8x8xf32> to vector<1x8x8xf32>
    %391 = vector.shape_cast %383 : vector<8x8xf32> to vector<1x8x8xf32>
    %392 = vector.shape_cast %384 : vector<8x8xf32> to vector<1x8x8xf32>
    %393 = vector.shape_cast %385 : vector<8x8xf32> to vector<1x8x8xf32>
    %394 = tpu.concatenate %386, %387, %388, %389, %390, %391, %392, %393 in 0 : vector<1x8x8xf32>, vector<1x8x8xf32>, vector<1x8x8xf32>, vector<1x8x8xf32>, vector<1x8x8xf32>, vector<1x8x8xf32>, vector<1x8x8xf32>, vector<1x8x8xf32> -> vector<8x8x8xf32>
    %395 = vector.extract_strided_slice %376 {offsets = [0, 0], sizes = [8, 8], strides = [1, 1]} : vector<16x32xf32> to vector<8x8xf32>
    %396 = vector.extract_strided_slice %376 {offsets = [0, 8], sizes = [8, 8], strides = [1, 1]} : vector<16x32xf32> to vector<8x8xf32>
    %397 = vector.extract_strided_slice %376 {offsets = [0, 16], sizes = [8, 8], strides = [1, 1]} : vector<16x32xf32> to vector<8x8xf32>
    %398 = vector.extract_strided_slice %376 {offsets = [0, 24], sizes = [8, 8], strides = [1, 1]} : vector<16x32xf32> to vector<8x8xf32>
    %399 = vector.extract_strided_slice %376 {offsets = [8, 0], sizes = [8, 8], strides = [1, 1]} : vector<16x32xf32> to vector<8x8xf32>
    %400 = vector.extract_strided_slice %376 {offsets = [8, 8], sizes = [8, 8], strides = [1, 1]} : vector<16x32xf32> to vector<8x8xf32>
    %401 = vector.extract_strided_slice %376 {offsets = [8, 16], sizes = [8, 8], strides = [1, 1]} : vector<16x32xf32> to vector<8x8xf32>
    %402 = vector.extract_strided_slice %376 {offsets = [8, 24], sizes = [8, 8], strides = [1, 1]} : vector<16x32xf32> to vector<8x8xf32>
    %403 = vector.shape_cast %395 : vector<8x8xf32> to vector<1x8x8xf32>
    %404 = vector.shape_cast %396 : vector<8x8xf32> to vector<1x8x8xf32>
    %405 = vector.shape_cast %397 : vector<8x8xf32> to vector<1x8x8xf32>
    %406 = vector.shape_cast %398 : vector<8x8xf32> to vector<1x8x8xf32>
    %407 = vector.shape_cast %399 : vector<8x8xf32> to vector<1x8x8xf32>
    %408 = vector.shape_cast %400 : vector<8x8xf32> to vector<1x8x8xf32>
    %409 = vector.shape_cast %401 : vector<8x8xf32> to vector<1x8x8xf32>
    %410 = vector.shape_cast %402 : vector<8x8xf32> to vector<1x8x8xf32>
    %411 = tpu.concatenate %403, %404, %405, %406, %407, %408, %409, %410 in 0 : vector<1x8x8xf32>, vector<1x8x8xf32>, vector<1x8x8xf32>, vector<1x8x8xf32>, vector<1x8x8xf32>, vector<1x8x8xf32>, vector<1x8x8xf32>, vector<1x8x8xf32> -> vector<8x8x8xf32>
    %412 = vector.extract_strided_slice %377 {offsets = [0, 0], sizes = [8, 8], strides = [1, 1]} : vector<16x32xf32> to vector<8x8xf32>
    %413 = vector.extract_strided_slice %377 {offsets = [0, 8], sizes = [8, 8], strides = [1, 1]} : vector<16x32xf32> to vector<8x8xf32>
    %414 = vector.extract_strided_slice %377 {offsets = [0, 16], sizes = [8, 8], strides = [1, 1]} : vector<16x32xf32> to vector<8x8xf32>
    %415 = vector.extract_strided_slice %377 {offsets = [0, 24], sizes = [8, 8], strides = [1, 1]} : vector<16x32xf32> to vector<8x8xf32>
    %416 = vector.extract_strided_slice %377 {offsets = [8, 0], sizes = [8, 8], strides = [1, 1]} : vector<16x32xf32> to vector<8x8xf32>
    %417 = vector.extract_strided_slice %377 {offsets = [8, 8], sizes = [8, 8], strides = [1, 1]} : vector<16x32xf32> to vector<8x8xf32>
    %418 = vector.extract_strided_slice %377 {offsets = [8, 16], sizes = [8, 8], strides = [1, 1]} : vector<16x32xf32> to vector<8x8xf32>
    %419 = vector.extract_strided_slice %377 {offsets = [8, 24], sizes = [8, 8], strides = [1, 1]} : vector<16x32xf32> to vector<8x8xf32>
    %420 = vector.shape_cast %412 : vector<8x8xf32> to vector<1x8x8xf32>
    %421 = vector.shape_cast %413 : vector<8x8xf32> to vector<1x8x8xf32>
    %422 = vector.shape_cast %414 : vector<8x8xf32> to vector<1x8x8xf32>
    %423 = vector.shape_cast %415 : vector<8x8xf32> to vector<1x8x8xf32>
    %424 = vector.shape_cast %416 : vector<8x8xf32> to vector<1x8x8xf32>
    %425 = vector.shape_cast %417 : vector<8x8xf32> to vector<1x8x8xf32>
    %426 = vector.shape_cast %418 : vector<8x8xf32> to vector<1x8x8xf32>
    %427 = vector.shape_cast %419 : vector<8x8xf32> to vector<1x8x8xf32>
    %428 = tpu.concatenate %420, %421, %422, %423, %424, %425, %426, %427 in 0 : vector<1x8x8xf32>, vector<1x8x8xf32>, vector<1x8x8xf32>, vector<1x8x8xf32>, vector<1x8x8xf32>, vector<1x8x8xf32>, vector<1x8x8xf32>, vector<1x8x8xf32> -> vector<8x8x8xf32>
    "tpu.trace_start"() <{level = 10 : i32, message = "bqd,bkd->bqk"}> : () -> ()
    %cst_113 = arith.constant dense<0.000000e+00> : vector<8x8x8xf32>
    %429 = tpu.matmul %394, %411, %cst_113 {dimension_numbers = #tpu.dot_dimension_numbers<[2], [2], [1], [1], [0, 0, 0, 1, 1, 1], [0], [0]>} : vector<8x8x8xf32>, vector<8x8x8xf32>, vector<8x8x8xf32> -> vector<8x8x8xf32>
    "tpu.trace_stop"() : () -> ()
    %cst_114 = arith.constant 0.353553385 : f32
    %430 = vector.broadcast %cst_114 : f32 to vector<8x8x8xf32>
    %431 = arith.mulf %429, %430 : vector<8x8x8xf32>
    %cst_115 = arith.constant dense<0xFF800000> : vector<8x8xf32>
    %432 = vector.multi_reduction <maximumf>, %431, %cst_115 [2] : vector<8x8x8xf32> to vector<8x8xf32>
    %433 = vector.shape_cast %432 : vector<8x8xf32> to vector<8x8x1xf32>
    %434 = vector.broadcast %433 : vector<8x8x1xf32> to vector<8x8x8xf32>
    %435 = arith.subf %431, %434 : vector<8x8x8xf32>
    %436 = math.exp %435 : vector<8x8x8xf32>
    %cst_116 = arith.constant dense<0.000000e+00> : vector<8x8xf32>
    %437 = vector.multi_reduction <add>, %436, %cst_116 [2] : vector<8x8x8xf32> to vector<8x8xf32>
    %438 = vector.shape_cast %437 : vector<8x8xf32> to vector<8x8x1xf32>
    %439 = tpu.reciprocal %438 {approx = true} : vector<8x8x1xf32> -> vector<8x8x1xf32>
    %440 = vector.broadcast %439 : vector<8x8x1xf32> to vector<8x8x8xf32>
    %441 = arith.mulf %436, %440 : vector<8x8x8xf32>
    "tpu.trace_start"() <{level = 10 : i32, message = "bqk,bkd->bqd"}> : () -> ()
    %cst_117 = arith.constant dense<0.000000e+00> : vector<8x8x8xf32>
    %442 = tpu.matmul %441, %428, %cst_117 {dimension_numbers = #tpu.dot_dimension_numbers<[2], [1], [1], [2], [0, 0, 0, 1, 1, 2], [0], [0]>} : vector<8x8x8xf32>, vector<8x8x8xf32>, vector<8x8x8xf32> -> vector<8x8x8xf32>
    "tpu.trace_stop"() : () -> ()
    %443 = vector.extract_strided_slice %442 {offsets = [0, 0, 0], sizes = [1, 8, 8], strides = [1, 1, 1]} : vector<8x8x8xf32> to vector<1x8x8xf32>
    %444 = vector.shape_cast %443 : vector<1x8x8xf32> to vector<8x8xf32>
    %445 = vector.extract_strided_slice %442 {offsets = [1, 0, 0], sizes = [1, 8, 8], strides = [1, 1, 1]} : vector<8x8x8xf32> to vector<1x8x8xf32>
    %446 = vector.shape_cast %445 : vector<1x8x8xf32> to vector<8x8xf32>
    %447 = vector.extract_strided_slice %442 {offsets = [2, 0, 0], sizes = [1, 8, 8], strides = [1, 1, 1]} : vector<8x8x8xf32> to vector<1x8x8xf32>
    %448 = vector.shape_cast %447 : vector<1x8x8xf32> to vector<8x8xf32>
    %449 = vector.extract_strided_slice %442 {offsets = [3, 0, 0], sizes = [1, 8, 8], strides = [1, 1, 1]} : vector<8x8x8xf32> to vector<1x8x8xf32>
    %450 = vector.shape_cast %449 : vector<1x8x8xf32> to vector<8x8xf32>
    %451 = tpu.concatenate %444, %446, %448, %450 in 1 : vector<8x8xf32>, vector<8x8xf32>, vector<8x8xf32>, vector<8x8xf32> -> vector<8x32xf32>
    %452 = vector.extract_strided_slice %442 {offsets = [4, 0, 0], sizes = [1, 8, 8], strides = [1, 1, 1]} : vector<8x8x8xf32> to vector<1x8x8xf32>
    %453 = vector.shape_cast %452 : vector<1x8x8xf32> to vector<8x8xf32>
    %454 = vector.extract_strided_slice %442 {offsets = [5, 0, 0], sizes = [1, 8, 8], strides = [1, 1, 1]} : vector<8x8x8xf32> to vector<1x8x8xf32>
    %455 = vector.shape_cast %454 : vector<1x8x8xf32> to vector<8x8xf32>
    %456 = vector.extract_strided_slice %442 {offsets = [6, 0, 0], sizes = [1, 8, 8], strides = [1, 1, 1]} : vector<8x8x8xf32> to vector<1x8x8xf32>
    %457 = vector.shape_cast %456 : vector<1x8x8xf32> to vector<8x8xf32>
    %458 = vector.extract_strided_slice %442 {offsets = [7, 0, 0], sizes = [1, 8, 8], strides = [1, 1, 1]} : vector<8x8x8xf32> to vector<1x8x8xf32>
    %459 = vector.shape_cast %458 : vector<1x8x8xf32> to vector<8x8xf32>
    %460 = tpu.concatenate %453, %455, %457, %459 in 1 : vector<8x8xf32>, vector<8x8xf32>, vector<8x8xf32>, vector<8x8xf32> -> vector<8x32xf32>
    %461 = tpu.concatenate %451, %460 in 0 : vector<8x32xf32>, vector<8x32xf32> -> vector<16x32xf32>
    %cst_118 = arith.constant dense<0.000000e+00> : vector<16x32xf32>
    %462 = tpu.matmul %461, %362, %cst_118 {dimension_numbers = #tpu.dot_dimension_numbers<[1], [0], [0], [1], [0, 0, 1, 1], [], []>} : vector<16x32xf32>, vector<32x32xf32>, vector<16x32xf32> -> vector<16x32xf32>
    %463 = vector.broadcast %363 : vector<1x32xf32> to vector<16x32xf32>
    %464 = arith.addf %462, %463 : vector<16x32xf32>
    %465 = arith.addf %203, %464 : vector<16x32xf32>
    %cst_119 = arith.constant dense<0.000000e+00> : vector<16xf32>
    %466 = vector.multi_reduction <add>, %465, %cst_119 [1] : vector<16x32xf32> to vector<16xf32>
    %467 = vector.shape_cast %466 : vector<16xf32> to vector<16x1xf32>
    %cst_120 = arith.constant 3.200000e+01 : f32
    %468 = vector.broadcast %cst_120 : f32 to vector<16x1xf32>
    %469 = arith.divf %467, %468 : vector<16x1xf32>
    %470 = vector.broadcast %469 : vector<16x1xf32> to vector<16x32xf32>
    %471 = arith.subf %465, %470 : vector<16x32xf32>
    %472 = arith.mulf %471, %471 : vector<16x32xf32>
    %cst_121 = arith.constant dense<0.000000e+00> : vector<16xf32>
    %473 = vector.multi_reduction <add>, %472, %cst_121 [1] : vector<16x32xf32> to vector<16xf32>
    %474 = vector.shape_cast %473 : vector<16xf32> to vector<16x1xf32>
    %cst_122 = arith.constant 3.200000e+01 : f32
    %475 = vector.broadcast %cst_122 : f32 to vector<16x1xf32>
    %476 = arith.divf %474, %475 : vector<16x1xf32>
    %cst_123 = arith.constant 9.99999974E-6 : f32
    %477 = vector.broadcast %cst_123 : f32 to vector<16x1xf32>
    %478 = arith.addf %476, %477 : vector<16x1xf32>
    %479 = math.rsqrt %478 : vector<16x1xf32>
    %480 = vector.broadcast %479 : vector<16x1xf32> to vector<16x32xf32>
    %481 = arith.mulf %471, %480 : vector<16x32xf32>
    %482 = vector.broadcast %368 : vector<1x32xf32> to vector<16x32xf32>
    %483 = arith.mulf %481, %482 : vector<16x32xf32>
    %484 = vector.broadcast %369 : vector<1x32xf32> to vector<16x32xf32>
    %485 = arith.addf %483, %484 : vector<16x32xf32>
    %cst_124 = arith.constant dense<0.000000e+00> : vector<16x64xf32>
    %486 = tpu.matmul %485, %364, %cst_124 {dimension_numbers = #tpu.dot_dimension_numbers<[1], [0], [0], [1], [0, 0, 1, 1], [], []>} : vector<16x32xf32>, vector<32x64xf32>, vector<16x64xf32> -> vector<16x64xf32>
    %487 = vector.broadcast %365 : vector<1x64xf32> to vector<16x64xf32>
    %488 = arith.addf %486, %487 : vector<16x64xf32>
    %cst_125 = arith.constant 0.000000e+00 : f32
    %489 = vector.broadcast %cst_125 : f32 to vector<16x64xf32>
    %490 = arith.maximumf %488, %489 : vector<16x64xf32>
    %cst_126 = arith.constant dense<0.000000e+00> : vector<16x32xf32>
    %491 = tpu.matmul %490, %366, %cst_126 {dimension_numbers = #tpu.dot_dimension_numbers<[1], [0], [0], [1], [0, 0, 1, 1], [], []>} : vector<16x64xf32>, vector<64x32xf32>, vector<16x32xf32> -> vector<16x32xf32>
    %492 = vector.broadcast %367 : vector<1x32xf32> to vector<16x32xf32>
    %493 = arith.addf %491, %492 : vector<16x32xf32>
    %494 = arith.addf %485, %493 : vector<16x32xf32>
    %cst_127 = arith.constant dense<0.000000e+00> : vector<16xf32>
    %495 = vector.multi_reduction <add>, %494, %cst_127 [1] : vector<16x32xf32> to vector<16xf32>
    %496 = vector.shape_cast %495 : vector<16xf32> to vector<16x1xf32>
    %cst_128 = arith.constant 3.200000e+01 : f32
    %497 = vector.broadcast %cst_128 : f32 to vector<16x1xf32>
    %498 = arith.divf %496, %497 : vector<16x1xf32>
    %499 = vector.broadcast %498 : vector<16x1xf32> to vector<16x32xf32>
    %500 = arith.subf %494, %499 : vector<16x32xf32>
    %501 = arith.mulf %500, %500 : vector<16x32xf32>
    %cst_129 = arith.constant dense<0.000000e+00> : vector<16xf32>
    %502 = vector.multi_reduction <add>, %501, %cst_129 [1] : vector<16x32xf32> to vector<16xf32>
    %503 = vector.shape_cast %502 : vector<16xf32> to vector<16x1xf32>
    %cst_130 = arith.constant 3.200000e+01 : f32
    %504 = vector.broadcast %cst_130 : f32 to vector<16x1xf32>
    %505 = arith.divf %503, %504 : vector<16x1xf32>
    %cst_131 = arith.constant 9.99999974E-6 : f32
    %506 = vector.broadcast %cst_131 : f32 to vector<16x1xf32>
    %507 = arith.addf %505, %506 : vector<16x1xf32>
    %508 = math.rsqrt %507 : vector<16x1xf32>
    %509 = vector.broadcast %508 : vector<16x1xf32> to vector<16x32xf32>
    %510 = arith.mulf %500, %509 : vector<16x32xf32>
    %511 = vector.broadcast %370 : vector<1x32xf32> to vector<16x32xf32>
    %512 = arith.mulf %510, %511 : vector<16x32xf32>
    %513 = vector.broadcast %371 : vector<1x32xf32> to vector<16x32xf32>
    %514 = arith.addf %512, %513 : vector<16x32xf32>
    %c0_132 = arith.constant 0 : index
    %c0_133 = arith.constant 0 : index
    %515 = vector.load %arg39[%c0_132, %c0_133] : memref<16x32xf32, #tpu.memory_space<vmem>>, vector<16x32xf32>
    tpu.vector_store %arg39[%c0_132, %c0_133], %514 {strides = array<i32>} : memref<16x32xf32, #tpu.memory_space<vmem>>, vector<16x32xf32>,
    return
  }
}

</mosaic_0001>

<llo_original>
// kernel: cross_layer_forward.1
$region0: #{cross_layer_forward.1}
  #allocation0 [shape = 'u32[]', space=smem, size = 0x4, offset = 0x4, fixed_abs, tag = 'smem constant byte address 0x4 - core index']
  #allocation1 [shape = 'u32[72,128]{1,0:T(1,128)}', space=vmem, size = 0x9000, scoped, tag = 'internal scratch']
  %s0 = inlined_call_operand.smem [shape: u32[40], index: -1, kind: input, shape index: {}]
  %s1 = sld [smem:[%s0]]
  %s2 = scalar_lea.smem %s0, 1
  %s3 = sld [smem:[%s2]]
  %s4 = scalar_lea.smem %s0, 2
  %s5 = sld [smem:[%s4]]
  %s6 = scalar_lea.smem %s0, 3
  %s7 = sld [smem:[%s6]]
  %s8 = scalar_lea.smem %s0, 4
  %s9 = sld [smem:[%s8]]
  %s10 = scalar_lea.smem %s0, 5
  %s11 = sld [smem:[%s10]]
  %s12 = scalar_lea.smem %s0, 6
  %s13 = sld [smem:[%s12]]
  %s14 = scalar_lea.smem %s0, 7
  %s15 = sld [smem:[%s14]]
  %s16 = scalar_lea.smem %s0, 8
  %s17 = sld [smem:[%s16]]
  %s18 = scalar_lea.smem %s0, 9
  %s19 = sld [smem:[%s18]]
  %s20 = scalar_lea.smem %s0, 10
  %s21 = sld [smem:[%s20]]
  %s22 = scalar_lea.smem %s0, 11
  %s23 = sld [smem:[%s22]]
  %s24 = scalar_lea.smem %s0, 12
  %s25 = sld [smem:[%s24]]
  %s26 = scalar_lea.smem %s0, 13
  %s27 = sld [smem:[%s26]]
  %s28 = scalar_lea.smem %s0, 14
  %s29 = sld [smem:[%s28]]
  %s30 = scalar_lea.smem %s0, 15
  %s31 = sld [smem:[%s30]]
  %s32 = scalar_lea.smem %s0, 16
  %s33 = sld [smem:[%s32]]
  %s34 = scalar_lea.smem %s0, 17
  %s35 = sld [smem:[%s34]]
  %s36 = scalar_lea.smem %s0, 18
  %s37 = sld [smem:[%s36]]
  %s38 = scalar_lea.smem %s0, 19
  %s39 = sld [smem:[%s38]]
  %s40 = scalar_lea.smem %s0, 20
  %s41 = sld [smem:[%s40]]
  %s42 = scalar_lea.smem %s0, 21
  %s43 = sld [smem:[%s42]]
  %s44 = scalar_lea.smem %s0, 22
  %s45 = sld [smem:[%s44]]
  %s46 = scalar_lea.smem %s0, 23
  %s47 = sld [smem:[%s46]]
  %s48 = scalar_lea.smem %s0, 24
  %s49 = sld [smem:[%s48]]
  %s50 = scalar_lea.smem %s0, 25
  %s51 = sld [smem:[%s50]]
  %s52 = scalar_lea.smem %s0, 26
  %s53 = sld [smem:[%s52]]
  %s54 = scalar_lea.smem %s0, 27
  %s55 = sld [smem:[%s54]]
  %s56 = scalar_lea.smem %s0, 28
  %s57 = sld [smem:[%s56]]
  %s58 = scalar_lea.smem %s0, 29
  %s59 = sld [smem:[%s58]]
  %s60 = scalar_lea.smem %s0, 30
  %s61 = sld [smem:[%s60]]
  %s62 = scalar_lea.smem %s0, 31
  %s63 = sld [smem:[%s62]]
  %s64 = scalar_lea.smem %s0, 32
  %s65 = sld [smem:[%s64]]
  %s66 = scalar_lea.smem %s0, 33
  %s67 = sld [smem:[%s66]]
  %s68 = scalar_lea.smem %s0, 34
  %s69 = sld [smem:[%s68]]
  %s70 = scalar_lea.smem %s0, 35
  %s71 = sld [smem:[%s70]]
  %s72 = scalar_lea.smem %s0, 36
  %s73 = sld [smem:[%s72]]
  %s74 = scalar_lea.smem %s0, 37
  %s75 = sld [smem:[%s74]]
  %s76 = scalar_lea.smem %s0, 38
  %s77 = sld [smem:[%s76]]
  %s78 = scalar_lea.smem %s0, 39
  %s79 = sld [smem:[%s78]]
  %80 = xla_tuple %s77, %s79
  %s81 = sld [smem:[#allocation0]]
  $region206: #{cross_layer_forward.1} parent=0
    _
  %s83 = ssub.s32 1, %s81
  %s84 = scalar_select 0, %s83, %s81
  $region1: #{cross_layer_forward.1} parent=0
    #allocation2 [shape = 'u8[8192]{0}', space=vmem, size = 0x2000, scoped, tag = 'input window, operand 0, single buffered']
    #allocation3 [shape = 's32[1]{0}', space=sflag, size = 0x4, scoped, tag = 'scoped memory for cross_layer_forward.1']
    #allocation4 [shape = 's32[1]{0}', space=sflag, size = 0x4, scoped, tag = 'scoped memory for cross_layer_forward.1']
    #allocation5 [shape = 'u8[16384]{0}', space=vmem, size = 0x4000, scoped, tag = 'input window, operand 10, single buffered']
    #allocation6 [shape = 's32[1]{0}', space=sflag, size = 0x4, scoped, tag = 'scoped memory for cross_layer_forward.1']
    #allocation7 [shape = 'u8[16384]{0}', space=vmem, size = 0x4000, scoped, tag = 'input window, operand 12, single buffered']
    #allocation8 [shape = 'u8[16384]{0}', space=vmem, size = 0x4000, scoped, tag = 'input window, operand 14, single buffered']
    #allocation9 [shape = 's32[1]{0}', space=sflag, size = 0x4, scoped, tag = 'scoped memory for cross_layer_forward.1']
    #allocation10 [shape = 'u8[16384]{0}', space=vmem, size = 0x4000, scoped, tag = 'input window, operand 16, single buffered']
    #allocation11 [shape = 'u8[16384]{0}', space=vmem, size = 0x4000, scoped, tag = 'input window, operand 18, single buffered']
    #allocation12 [shape = 's32[1]{0}', space=sflag, size = 0x4, scoped, tag = 'scoped memory for cross_layer_forward.1']
    #allocation13 [shape = 'u8[16384]{0}', space=vmem, size = 0x4000, scoped, tag = 'input window, operand 26, single buffered']
    #allocation14 [shape = 'u8[16384]{0}', space=vmem, size = 0x4000, scoped, tag = 'input window, operand 28, single buffered']
    #allocation15 [shape = 's32[1]{0}', space=sflag, size = 0x4, scoped, tag = 'scoped memory for cross_layer_forward.1']
    #allocation16 [shape = 'u8[16384]{0}', space=vmem, size = 0x4000, scoped, tag = 'input window, operand 30, single buffered']
    #allocation17 [shape = 'u8[16384]{0}', space=vmem, size = 0x4000, scoped, tag = 'output window, operand 0, single buffered']
    #allocation18 [shape = 'u8[8192]{0}', space=vmem, size = 0x2000, scoped, tag = 'output window, operand 1, single buffered']
    #allocation19 [shape = 's32[1]{0}', space=sflag, size = 0x4, scoped, tag = 'scoped memory for cross_layer_forward.1']
    %85 = vsyncpa [#allocation3], 0
    %86 = vsyncpa [#allocation6], 0
    %87 = vsyncpa [#allocation9], 0
    %88 = vsyncpa [#allocation12], 0
    %89 = vsyncpa [#allocation15], 0
    %90 = vsyncpa [#allocation4], 0
    %91 = vsyncpa [#allocation19], 0
    // Predicated region
    $region2: #{cross_layer_forward.1} parent=1 // pred_check
      _
    $region3: #{cross_layer_forward.1} parent=1 // pred_check_branch
      %93 = sbr.rel (0) target = $region5
    $region4: #{cross_layer_forward.1} parent=1 // pred_region
      %95 = vsyncadd [#allocation3], 0
      %s96 = sshll.u32 %s1, 4
      %s97 = int_to_ptr.hbm [resolvable:$true] %s96
      %s98 = sshll.u32 [#allocation2], 4
      %s99 = int_to_ptr.vmem [resolvable:$true] %s98
      %104 = dma.hbm_to_vmem [thread:$0]  %s97, 256, %s99, [#allocation3], 128, 128, 8
    $region5: #{cross_layer_forward.1} parent=1 // pred_fallthru
      _
    // Predicated region
    $region6: #{cross_layer_forward.1} parent=1 // pred_check
      _
    $region7: #{cross_layer_forward.1} parent=1 // pred_check_branch
      %106 = sbr.rel (0) target = $region9
    $region8: #{cross_layer_forward.1} parent=1 // pred_region
      _
    $region9: #{cross_layer_forward.1} parent=1 // pred_fallthru
      _
    // Predicated region
    $region10: #{cross_layer_forward.1} parent=1 // pred_check
      _
    $region11: #{cross_layer_forward.1} parent=1 // pred_check_branch
      %108 = sbr.rel (0) target = $region13
    $region12: #{cross_layer_forward.1} parent=1 // pred_region
      _
    $region13: #{cross_layer_forward.1} parent=1 // pred_fallthru
      _
    // Predicated region
    $region14: #{cross_layer_forward.1} parent=1 // pred_check
      _
    $region15: #{cross_layer_forward.1} parent=1 // pred_check_branch
      %110 = sbr.rel (0) target = $region17
    $region16: #{cross_layer_forward.1} parent=1 // pred_region
      _
    $region17: #{cross_layer_forward.1} parent=1 // pred_fallthru
      _
    // Predicated region
    $region18: #{cross_layer_forward.1} parent=1 // pred_check
      _
    $region19: #{cross_layer_forward.1} parent=1 // pred_check_branch
      %112 = sbr.rel (0) target = $region21
    $region20: #{cross_layer_forward.1} parent=1 // pred_region
      _
    $region21: #{cross_layer_forward.1} parent=1 // pred_fallthru
      _
    // Predicated region
    $region22: #{cross_layer_forward.1} parent=1 // pred_check
      _
    $region23: #{cross_layer_forward.1} parent=1 // pred_check_branch
      %114 = sbr.rel (0) target = $region25
    $region24: #{cross_layer_forward.1} parent=1 // pred_region
      _
    $region25: #{cross_layer_forward.1} parent=1 // pred_fallthru
      _
    // Predicated region
    $region26: #{cross_layer_forward.1} parent=1 // pred_check
      _
    $region27: #{cross_layer_forward.1} parent=1 // pred_check_branch
      %116 = sbr.rel (0) target = $region29
    $region28: #{cross_layer_forward.1} parent=1 // pred_region
      _
    $region29: #{cross_layer_forward.1} parent=1 // pred_fallthru
      _
    // Predicated region
    $region30: #{cross_layer_forward.1} parent=1 // pred_check
      _
    $region31: #{cross_layer_forward.1} parent=1 // pred_check_branch
      %118 = sbr.rel (0) target = $region33
    $region32: #{cross_layer_forward.1} parent=1 // pred_region
      _
    $region33: #{cross_layer_forward.1} parent=1 // pred_fallthru
      _
    // Predicated region
    $region34: #{cross_layer_forward.1} parent=1 // pred_check
      _
    $region35: #{cross_layer_forward.1} parent=1 // pred_check_branch
      %120 = sbr.rel (0) target = $region37
    $region36: #{cross_layer_forward.1} parent=1 // pred_region
      _
    $region37: #{cross_layer_forward.1} parent=1 // pred_fallthru
      _
    // Predicated region
    $region38: #{cross_layer_forward.1} parent=1 // pred_check
      _
    $region39: #{cross_layer_forward.1} parent=1 // pred_check_branch
      %122 = sbr.rel (0) target = $region41
    $region40: #{cross_layer_forward.1} parent=1 // pred_region
      _
    $region41: #{cross_layer_forward.1} parent=1 // pred_fallthru
      _
    // Predicated region
    $region42: #{cross_layer_forward.1} parent=1 // pred_check
      _
    $region43: #{cross_layer_forward.1} parent=1 // pred_check_branch
      %124 = sbr.rel (0) target = $region45
    $region44: #{cross_layer_forward.1} parent=1 // pred_region
      %126 = vsyncadd [#allocation6], 0
      %s127 = sshll.u32 %s21, 4
      %s128 = int_to_ptr.hbm [resolvable:$true] %s127
      %s129 = sshll.u32 [#allocation5], 4
      %s130 = int_to_ptr.vmem [resolvable:$true] %s129
      %135 = dma.hbm_to_vmem [thread:$0]  %s128, 512, %s130, [#allocation6], 128, 128, 8
    $region45: #{cross_layer_forward.1} parent=1 // pred_fallthru
      _
    // Predicated region
    $region46: #{cross_layer_forward.1} parent=1 // pred_check
      _
    $region47: #{cross_layer_forward.1} parent=1 // pred_check_branch
      %137 = sbr.rel (0) target = $region49
    $region48: #{cross_layer_forward.1} parent=1 // pred_region
      _
    $region49: #{cross_layer_forward.1} parent=1 // pred_fallthru
      _
    // Predicated region
    $region50: #{cross_layer_forward.1} parent=1 // pred_check
      _
    $region51: #{cross_layer_forward.1} parent=1 // pred_check_branch
      %139 = sbr.rel (0) target = $region53
    $region52: #{cross_layer_forward.1} parent=1 // pred_region
      %141 = vsyncadd [#allocation6], 0
      %s142 = sshll.u32 %s25, 4
      %s143 = int_to_ptr.hbm [resolvable:$true] %s142
      %s144 = sshll.u32 [#allocation7], 4
      %s145 = int_to_ptr.vmem [resolvable:$true] %s144
      %150 = dma.hbm_to_vmem [thread:$0]  %s143, 512, %s145, [#allocation6], 128, 128, 8
    $region53: #{cross_layer_forward.1} parent=1 // pred_fallthru
      _
    // Predicated region
    $region54: #{cross_layer_forward.1} parent=1 // pred_check
      _
    $region55: #{cross_layer_forward.1} parent=1 // pred_check_branch
      %152 = sbr.rel (0) target = $region57
    $region56: #{cross_layer_forward.1} parent=1 // pred_region
      _
    $region57: #{cross_layer_forward.1} parent=1 // pred_fallthru
      _
    // Predicated region
    $region58: #{cross_layer_forward.1} parent=1 // pred_check
      _
    $region59: #{cross_layer_forward.1} parent=1 // pred_check_branch
      %154 = sbr.rel (0) target = $region61
    $region60: #{cross_layer_forward.1} parent=1 // pred_region
      %156 = vsyncadd [#allocation9], 0
      %s157 = sshll.u32 %s29, 4
      %s158 = int_to_ptr.hbm [resolvable:$true] %s157
      %s159 = sshll.u32 [#allocation8], 4
      %s160 = int_to_ptr.vmem [resolvable:$true] %s159
      %165 = dma.hbm_to_vmem [thread:$0]  %s158, 512, %s160, [#allocation9], 128, 128, 8
    $region61: #{cross_layer_forward.1} parent=1 // pred_fallthru
      _
    // Predicated region
    $region62: #{cross_layer_forward.1} parent=1 // pred_check
      _
    $region63: #{cross_layer_forward.1} parent=1 // pred_check_branch
      %167 = sbr.rel (0) target = $region65
    $region64: #{cross_layer_forward.1} parent=1 // pred_region
      _
    $region65: #{cross_layer_forward.1} parent=1 // pred_fallthru
      _
    // Predicated region
    $region66: #{cross_layer_forward.1} parent=1 // pred_check
      _
    $region67: #{cross_layer_forward.1} parent=1 // pred_check_branch
      %169 = sbr.rel (0) target = $region69
    $region68: #{cross_layer_forward.1} parent=1 // pred_region
      %171 = vsyncadd [#allocation9], 0
      %s172 = sshll.u32 %s33, 4
      %s173 = int_to_ptr.hbm [resolvable:$true] %s172
      %s174 = sshll.u32 [#allocation10], 4
      %s175 = int_to_ptr.vmem [resolvable:$true] %s174
      %180 = dma.hbm_to_vmem [thread:$0]  %s173, 512, %s175, [#allocation9], 128, 128, 8
    $region69: #{cross_layer_forward.1} parent=1 // pred_fallthru
      _
    // Predicated region
    $region70: #{cross_layer_forward.1} parent=1 // pred_check
      _
    $region71: #{cross_layer_forward.1} parent=1 // pred_check_branch
      %182 = sbr.rel (0) target = $region73
    $region72: #{cross_layer_forward.1} parent=1 // pred_region
      _
    $region73: #{cross_layer_forward.1} parent=1 // pred_fallthru
      _
    // Predicated region
    $region74: #{cross_layer_forward.1} parent=1 // pred_check
      _
    $region75: #{cross_layer_forward.1} parent=1 // pred_check_branch
      %184 = sbr.rel (0) target = $region77
    $region76: #{cross_layer_forward.1} parent=1 // pred_region
      %186 = vsyncadd [#allocation12], 0
      %s187 = sshll.u32 %s37, 4
      %s188 = int_to_ptr.hbm [resolvable:$true] %s187
      %s189 = sshll.u32 [#allocation11], 4
      %s190 = int_to_ptr.vmem [resolvable:$true] %s189
      %195 = dma.hbm_to_vmem [thread:$0]  %s188, 512, %s190, [#allocation12], 128, 128, 8
    $region77: #{cross_layer_forward.1} parent=1 // pred_fallthru
      _
    // Predicated region
    $region78: #{cross_layer_forward.1} parent=1 // pred_check
      _
    $region79: #{cross_layer_forward.1} parent=1 // pred_check_branch
      %197 = sbr.rel (0) target = $region81
    $region80: #{cross_layer_forward.1} parent=1 // pred_region
      _
    $region81: #{cross_layer_forward.1} parent=1 // pred_fallthru
      _
    // Predicated region
    $region82: #{cross_layer_forward.1} parent=1 // pred_check
      _
    $region83: #{cross_layer_forward.1} parent=1 // pred_check_branch
      %199 = sbr.rel (0) target = $region85
    $region84: #{cross_layer_forward.1} parent=1 // pred_region
      _
    $region85: #{cross_layer_forward.1} parent=1 // pred_fallthru
      _
    // Predicated region
    $region86: #{cross_layer_forward.1} parent=1 // pred_check
      _
    $region87: #{cross_layer_forward.1} parent=1 // pred_check_branch
      %201 = sbr.rel (0) target = $region89
    $region88: #{cross_layer_forward.1} parent=1 // pred_region
      _
    $region89: #{cross_layer_forward.1} parent=1 // pred_fallthru
      _
    // Predicated region
    $region90: #{cross_layer_forward.1} parent=1 // pred_check
      _
    $region91: #{cross_layer_forward.1} parent=1 // pred_check_branch
      %203 = sbr.rel (0) target = $region93
    $region92: #{cross_layer_forward.1} parent=1 // pred_region
      _
    $region93: #{cross_layer_forward.1} parent=1 // pred_fallthru
      _
    // Predicated region
    $region94: #{cross_layer_forward.1} parent=1 // pred_check
      _
    $region95: #{cross_layer_forward.1} parent=1 // pred_check_branch
      %205 = sbr.rel (0) target = $region97
    $region96: #{cross_layer_forward.1} parent=1 // pred_region
      _
    $region97: #{cross_layer_forward.1} parent=1 // pred_fallthru
      _
    // Predicated region
    $region98: #{cross_layer_forward.1} parent=1 // pred_check
      _
    $region99: #{cross_layer_forward.1} parent=1 // pred_check_branch
      %207 = sbr.rel (0) target = $region101
    $region100: #{cross_layer_forward.1} parent=1 // pred_region
      _
    $region101: #{cross_layer_forward.1} parent=1 // pred_fallthru
      _
    // Predicated region
    $region102: #{cross_layer_forward.1} parent=1 // pred_check
      _
    $region103: #{cross_layer_forward.1} parent=1 // pred_check_branch
      %209 = sbr.rel (0) target = $region105
    $region104: #{cross_layer_forward.1} parent=1 // pred_region
      _
    $region105: #{cross_layer_forward.1} parent=1 // pred_fallthru
      _
    // Predicated region
    $region106: #{cross_layer_forward.1} parent=1 // pred_check
      _
    $region107: #{cross_layer_forward.1} parent=1 // pred_check_branch
      %211 = sbr.rel (0) target = $region109
    $region108: #{cross_layer_forward.1} parent=1 // pred_region
      %213 = vsyncadd [#allocation12], 0
      %s214 = sshll.u32 %s53, 4
      %s215 = int_to_ptr.hbm [resolvable:$true] %s214
      %s216 = sshll.u32 [#allocation13], 4
      %s217 = int_to_ptr.vmem [resolvable:$true] %s216
      %222 = dma.hbm_to_vmem [thread:$0]  %s215, 512, %s217, [#allocation12], 128, 128, 8
    $region109: #{cross_layer_forward.1} parent=1 // pred_fallthru
      _
    // Predicated region
    $region110: #{cross_layer_forward.1} parent=1 // pred_check
      _
    $region111: #{cross_layer_forward.1} parent=1 // pred_check_branch
      %224 = sbr.rel (0) target = $region113
    $region112: #{cross_layer_forward.1} parent=1 // pred_region
      _
    $region113: #{cross_layer_forward.1} parent=1 // pred_fallthru
      _
    // Predicated region
    $region114: #{cross_layer_forward.1} parent=1 // pred_check
      _
    $region115: #{cross_layer_forward.1} parent=1 // pred_check_branch
      %226 = sbr.rel (0) target = $region117
    $region116: #{cross_layer_forward.1} parent=1 // pred_region
      %228 = vsyncadd [#allocation15], 0
      %s229 = sshll.u32 %s57, 4
      %s230 = int_to_ptr.hbm [resolvable:$true] %s229
      %s231 = sshll.u32 [#allocation14], 4
      %s232 = int_to_ptr.vmem [resolvable:$true] %s231
      %237 = dma.hbm_to_vmem [thread:$0]  %s230, 512, %s232, [#allocation15], 128, 128, 8
    $region117: #{cross_layer_forward.1} parent=1 // pred_fallthru
      _
    // Predicated region
    $region118: #{cross_layer_forward.1} parent=1 // pred_check
      _
    $region119: #{cross_layer_forward.1} parent=1 // pred_check_branch
      %239 = sbr.rel (0) target = $region121
    $region120: #{cross_layer_forward.1} parent=1 // pred_region
      _
    $region121: #{cross_layer_forward.1} parent=1 // pred_fallthru
      _
    // Predicated region
    $region122: #{cross_layer_forward.1} parent=1 // pred_check
      _
    $region123: #{cross_layer_forward.1} parent=1 // pred_check_branch
      %241 = sbr.rel (0) target = $region125
    $region124: #{cross_layer_forward.1} parent=1 // pred_region
      %243 = vsyncadd [#allocation15], 0
      %s244 = sshll.u32 %s61, 4
      %s245 = int_to_ptr.hbm [resolvable:$true] %s244
      %s246 = sshll.u32 [#allocation16], 4
      %s247 = int_to_ptr.vmem [resolvable:$true] %s246
      %252 = dma.hbm_to_vmem [thread:$0]  %s245, 512, %s247, [#allocation15], 128, 128, 8
    $region125: #{cross_layer_forward.1} parent=1 // pred_fallthru
      _
    // Predicated region
    $region126: #{cross_layer_forward.1} parent=1 // pred_check
      _
    $region127: #{cross_layer_forward.1} parent=1 // pred_check_branch
      %254 = sbr.rel (0) target = $region129
    $region128: #{cross_layer_forward.1} parent=1 // pred_region
      _
    $region129: #{cross_layer_forward.1} parent=1 // pred_fallthru
      _
    // Predicated region
    $region130: #{cross_layer_forward.1} parent=1 // pred_check
      _
    $region131: #{cross_layer_forward.1} parent=1 // pred_check_branch
      %256 = sbr.rel (0) target = $region133
    $region132: #{cross_layer_forward.1} parent=1 // pred_region
      _
    $region133: #{cross_layer_forward.1} parent=1 // pred_fallthru
      _
    // Predicated region
    $region134: #{cross_layer_forward.1} parent=1 // pred_check
      _
    $region135: #{cross_layer_forward.1} parent=1 // pred_check_branch
      %258 = sbr.rel (0) target = $region137
    $region136: #{cross_layer_forward.1} parent=1 // pred_region
      _
    $region137: #{cross_layer_forward.1} parent=1 // pred_fallthru
      _
    // Predicated region
    $region138: #{cross_layer_forward.1} parent=1 // pred_check
      _
    $region139: #{cross_layer_forward.1} parent=1 // pred_check_branch
      %260 = sbr.rel (0) target = $region141
    $region140: #{cross_layer_forward.1} parent=1 // pred_region
      _
    $region141: #{cross_layer_forward.1} parent=1 // pred_fallthru
      _
    // Predicated region
    $region142: #{cross_layer_forward.1} parent=1 // pred_check
      _
    $region143: #{cross_layer_forward.1} parent=1 // pred_check_branch
      %262 = sbr.rel (0) target = $region145
    $region144: #{cross_layer_forward.1} parent=1 // pred_region
      _
    $region145: #{cross_layer_forward.1} parent=1 // pred_fallthru
      _
    // Predicated region
    $region146: #{cross_layer_forward.1} parent=1 // pred_check
      _
    $region147: #{cross_layer_forward.1} parent=1 // pred_check_branch
      %264 = sbr.rel (0) target = $region149
    $region148: #{cross_layer_forward.1} parent=1 // pred_region
      _
    $region149: #{cross_layer_forward.1} parent=1 // pred_fallthru
      _
    // Predicated region
    $region150: #{cross_layer_forward.1} parent=1 // pred_check
      _
    $region151: #{cross_layer_forward.1} parent=1 // pred_check_branch
      %266 = sbr.rel (0) target = $region153
    $region152: #{cross_layer_forward.1} parent=1 // pred_region
      _
    $region153: #{cross_layer_forward.1} parent=1 // pred_fallthru
      _
    // Predicated region
    $region154: #{cross_layer_forward.1} parent=1 // pred_check
      _
    $region155: #{cross_layer_forward.1} parent=1 // pred_check_branch
      %268 = sbr.rel (0) target = $region157
    $region156: #{cross_layer_forward.1} parent=1 // pred_region
      %270 = dma.done [#allocation3], 256
    $region157: #{cross_layer_forward.1} parent=1 // pred_fallthru
      _
    // Predicated region
    $region158: #{cross_layer_forward.1} parent=1 // pred_check
      _
    $region159: #{cross_layer_forward.1} parent=1 // pred_check_branch
      %272 = sbr.rel (0) target = $region161
    $region160: #{cross_layer_forward.1} parent=1 // pred_region
      %274 = dma.done [#allocation6], 512
    $region161: #{cross_layer_forward.1} parent=1 // pred_fallthru
      _
    // Predicated region
    $region162: #{cross_layer_forward.1} parent=1 // pred_check
      _
    $region163: #{cross_layer_forward.1} parent=1 // pred_check_branch
      %276 = sbr.rel (0) target = $region165
    $region164: #{cross_layer_forward.1} parent=1 // pred_region
      %278 = dma.done [#allocation6], 512
    $region165: #{cross_layer_forward.1} parent=1 // pred_fallthru
      _
    // Predicated region
    $region166: #{cross_layer_forward.1} parent=1 // pred_check
      _
    $region167: #{cross_layer_forward.1} parent=1 // pred_check_branch
      %280 = sbr.rel (0) target = $region169
    $region168: #{cross_layer_forward.1} parent=1 // pred_region
      %282 = dma.done [#allocation9], 512
    $region169: #{cross_layer_forward.1} parent=1 // pred_fallthru
      _
    // Predicated region
    $region170: #{cross_layer_forward.1} parent=1 // pred_check
      _
    $region171: #{cross_layer_forward.1} parent=1 // pred_check_branch
      %284 = sbr.rel (0) target = $region173
    $region172: #{cross_layer_forward.1} parent=1 // pred_region
      %286 = dma.done [#allocation9], 512
    $region173: #{cross_layer_forward.1} parent=1 // pred_fallthru
      _
    // Predicated region
    $region174: #{cross_layer_forward.1} parent=1 // pred_check
      _
    $region175: #{cross_layer_forward.1} parent=1 // pred_check_branch
      %288 = sbr.rel (0) target = $region177
    $region176: #{cross_layer_forward.1} parent=1 // pred_region
      %290 = dma.done [#allocation12], 512
    $region177: #{cross_layer_forward.1} parent=1 // pred_fallthru
      _
    // Predicated region
    $region178: #{cross_layer_forward.1} parent=1 // pred_check
      _
    $region179: #{cross_layer_forward.1} parent=1 // pred_check_branch
      %292 = sbr.rel (0) target = $region181
    $region180: #{cross_layer_forward.1} parent=1 // pred_region
      %294 = dma.done [#allocation12], 512
    $region181: #{cross_layer_forward.1} parent=1 // pred_fallthru
      _
    // Predicated region
    $region182: #{cross_layer_forward.1} parent=1 // pred_check
      _
    $region183: #{cross_layer_forward.1} parent=1 // pred_check_branch
      %296 = sbr.rel (0) target = $region185
    $region184: #{cross_layer_forward.1} parent=1 // pred_region
      %298 = dma.done [#allocation15], 512
    $region185: #{cross_layer_forward.1} parent=1 // pred_fallthru
      _
    // Predicated region
    $region186: #{cross_layer_forward.1} parent=1 // pred_check
      _
    $region187: #{cross_layer_forward.1} parent=1 // pred_check_branch
      %300 = sbr.rel (0) target = $region189
    $region188: #{cross_layer_forward.1} parent=1 // pred_region
      %302 = dma.done [#allocation15], 512
    $region189: #{cross_layer_forward.1} parent=1 // pred_fallthru
      _
    %v303 = vld [vmem:[#allocation2] sm:$0xff]
    %v304 = vld [vmem:[#allocation2 + $0x8] sm:$0xff]
    %v305 = vld [vmem:[%s3] sm:$0xff]
    %v306 = vld [vmem:[%s3 + $0x8] sm:$0xff]
    %v307 = vld [vmem:[%s3 + $0x10] sm:$0xff]
    %v308 = vld [vmem:[%s3 + $0x18] sm:$0xff]
    %v309 = vld [vmem:[%s5] sm:$0xff]
    %v310 = vld [vmem:[%s5 + $0x8] sm:$0xff]
    %v311 = vld [vmem:[%s5 + $0x10] sm:$0xff]
    %v312 = vld [vmem:[%s5 + $0x18] sm:$0xff]
    %v313 = vld [vmem:[%s7] sm:$0x1]
    %v314 = vld [vmem:[%s9] sm:$0xff]
    %v315 = vld [vmem:[%s9 + $0x8] sm:$0xff]
    %v316 = vld [vmem:[%s9 + $0x10] sm:$0xff]
    %v317 = vld [vmem:[%s9 + $0x18] sm:$0xff]
    %v318 = vld [vmem:[%s11] sm:$0x1]
    %v319 = vld [vmem:[%s13] sm:$0xff]
    %v320 = vld [vmem:[%s13 + $0x8] sm:$0xff]
    %v321 = vld [vmem:[%s13 + $0x10] sm:$0xff]
    %v322 = vld [vmem:[%s13 + $0x18] sm:$0xff]
    %v323 = vld [vmem:[%s15] sm:$0x1]
    %v325 = vperm.slane %v313, 0
    %vm327 = vcmask 261120
    %v329 = vsel %vm327, %v305, 0
    %v332 = vsel %vm327, %v306, 0
    %v335 = vsel %vm327, %v307, 0
    %v338 = vsel %vm327, %v308, 0
    %340 = vmatpush.msra.mxu0 0.0
    %341 = vmatpush.msra.mxu0 0.0
    %342 = vmatpush.msra.mxu0 0.0
    %343 = vmatpush.msra.mxu0 0.0
    %344 = vmatpush.msra.mxu0 0.0
    %345 = vmatpush.msra.mxu0 0.0
    %346 = vmatpush.msra.mxu0 0.0
    %347 = vmatpush.msra.mxu0 0.0
    %348 = vmatpush.msra.mxu0 0.0
    %349 = vmatpush.msra.mxu0 0.0
    %350 = vmatpush.msra.mxu0 0.0
    %351 = vmatpush.msra.mxu0 0.0
    %352 = vmatpush.msra.mxu0 %v312
    %353 = vmatpush.msra.mxu0 %v311
    %354 = vmatpush.msra.mxu0 %v310
    %355 = vmatpush.msra.mxu0 %v309
    %356 = vmatmul.f32.gmra.mxu0 %v329
    %v357 = vpop.f32.mrf.mxu0
    %v358 = vadd.f32 %v325, %v357
    %359 = vmatmul.f32.gmra.mxu0 %v332
    %v360 = vpop.f32.mrf.mxu0
    %v361 = vadd.f32 %v325, %v360
    %362 = vmatmul.f32.gmra.mxu0 %v335
    %v363 = vpop.f32.mrf.mxu0
    %v364 = vadd.f32 %v325, %v363
    %365 = vmatmul.f32.gmra.mxu0 %v338
    %v366 = vpop.f32.mrf.mxu0
    %v367 = vadd.f32 %v325, %v366
    %368 = vdwg.mxu0
    %v370 = vperm.slane %v318, 0
    %v373 = vsel %vm327, %v303, 0
    %v376 = vsel %vm327, %v304, 0
    %378 = vmatpush.msra.mxu0 0.0
    %379 = vmatpush.msra.mxu0 0.0
    %380 = vmatpush.msra.mxu0 0.0
    %381 = vmatpush.msra.mxu0 0.0
    %382 = vmatpush.msra.mxu0 0.0
    %383 = vmatpush.msra.mxu0 0.0
    %384 = vmatpush.msra.mxu0 0.0
    %385 = vmatpush.msra.mxu0 0.0
    %386 = vmatpush.msra.mxu0 0.0
    %387 = vmatpush.msra.mxu0 0.0
    %388 = vmatpush.msra.mxu0 0.0
    %389 = vmatpush.msra.mxu0 0.0
    %390 = vmatpush.msra.mxu0 %v317
    %391 = vmatpush.msra.mxu0 %v316
    %392 = vmatpush.msra.mxu0 %v315
    %393 = vmatpush.msra.mxu0 %v314
    %394 = vmatmul.f32.gmra.mxu0 %v373
    %v395 = vpop.f32.mrf.mxu0
    %v396 = vadd.f32 %v370, %v395
    %397 = vmatmul.f32.gmra.mxu0 %v376
    %v398 = vpop.f32.mrf.mxu0
    %v399 = vadd.f32 %v370, %v398
    %400 = vdwg.mxu0
    %403 = vrot.lane.b32.xlu0 %v358, 120
    %v404 = vpop.permute.xlu0 %403
    %405 = vrot.lane.b32.xlu0 %v361, 120
    %v406 = vpop.permute.xlu0 %405
    %407 = vrot.lane.b32.xlu0 %v358, 112
    %v408 = vpop.permute.xlu0 %407
    %409 = vrot.lane.b32.xlu0 %v361, 112
    %v410 = vpop.permute.xlu0 %409
    %411 = vrot.lane.b32.xlu0 %v358, 104
    %v412 = vpop.permute.xlu0 %411
    %413 = vrot.lane.b32.xlu0 %v361, 104
    %v414 = vpop.permute.xlu0 %413
    %417 = vrot.lane.b32.xlu0 %v364, 120
    %v418 = vpop.permute.xlu0 %417
    %419 = vrot.lane.b32.xlu0 %v367, 120
    %v420 = vpop.permute.xlu0 %419
    %421 = vrot.lane.b32.xlu0 %v364, 112
    %v422 = vpop.permute.xlu0 %421
    %423 = vrot.lane.b32.xlu0 %v367, 112
    %v424 = vpop.permute.xlu0 %423
    %425 = vrot.lane.b32.xlu0 %v364, 104
    %v426 = vpop.permute.xlu0 %425
    %427 = vrot.lane.b32.xlu0 %v367, 104
    %v428 = vpop.permute.xlu0 %427
    %430 = vrot.lane.b32.xlu0 %v396, 120
    %v431 = vpop.permute.xlu0 %430
    %432 = vrot.lane.b32.xlu0 %v396, 112
    %v433 = vpop.permute.xlu0 %432
    %434 = vrot.lane.b32.xlu0 %v396, 104
    %v435 = vpop.permute.xlu0 %434
    %437 = vrot.lane.b32.xlu0 %v399, 120
    %v438 = vpop.permute.xlu0 %437
    %439 = vrot.lane.b32.xlu0 %v399, 112
    %v440 = vpop.permute.xlu0 %439
    %441 = vrot.lane.b32.xlu0 %v399, 104
    %v442 = vpop.permute.xlu0 %441
    %vm443 = vcmask 64512
    %v444 = vsel %vm443, %v358, 0
    %v446 = vsel %vm443, %v361, 0
    %v448 = vsel %vm443, %v396, 0
    %450 = vmatpush.xpose.msra.mxu0 0.0
    %451 = vmatpush.xpose.msra.mxu0 0.0
    %452 = vmatpush.xpose.msra.mxu0 0.0
    %453 = vmatpush.xpose.msra.mxu0 0.0
    %454 = vmatpush.xpose.msra.mxu0 0.0
    %455 = vmatpush.xpose.msra.mxu0 0.0
    %456 = vmatpush.xpose.msra.mxu0 0.0
    %457 = vmatpush.xpose.msra.mxu0 0.0
    %458 = vmatpush.xpose.msra.mxu0 0.0
    %459 = vmatpush.xpose.msra.mxu0 0.0
    %460 = vmatpush.xpose.msra.mxu0 0.0
    %461 = vmatpush.xpose.msra.mxu0 0.0
    %462 = vmatpush.xpose.msra.mxu0 0.0
    %463 = vmatpush.xpose.msra.mxu0 0.0
    %464 = vmatpush.xpose.msra.mxu0 0.0
    %465 = vmatpush.xpose.msra.mxu0 %v448
    %466 = vmatmul.f32.gmra.mxu0 %v444
    %v467 = vpop.f32.mrf.mxu0
    %v468 = vadd.f32 0.0, %v467
    %469 = vmatmul.f32.gmra.mxu0 %v446
    %v470 = vpop.f32.mrf.mxu0
    %v471 = vadd.f32 0.0, %v470
    %472 = vdwg.mxu0
    %v473 = vsel %vm443, %v404, 0
    %v475 = vsel %vm443, %v406, 0
    %v477 = vsel %vm443, %v431, 0
    %479 = vmatpush.xpose.msra.mxu0 0.0
    %480 = vmatpush.xpose.msra.mxu0 0.0
    %481 = vmatpush.xpose.msra.mxu0 0.0
    %482 = vmatpush.xpose.msra.mxu0 0.0
    %483 = vmatpush.xpose.msra.mxu0 0.0
    %484 = vmatpush.xpose.msra.mxu0 0.0
    %485 = vmatpush.xpose.msra.mxu0 0.0
    %486 = vmatpush.xpose.msra.mxu0 0.0
    %487 = vmatpush.xpose.msra.mxu0 0.0
    %488 = vmatpush.xpose.msra.mxu0 0.0
    %489 = vmatpush.xpose.msra.mxu0 0.0
    %490 = vmatpush.xpose.msra.mxu0 0.0
    %491 = vmatpush.xpose.msra.mxu0 0.0
    %492 = vmatpush.xpose.msra.mxu0 0.0
    %493 = vmatpush.xpose.msra.mxu0 0.0
    %494 = vmatpush.xpose.msra.mxu0 %v477
    %495 = vmatmul.f32.gmra.mxu0 %v473
    %v496 = vpop.f32.mrf.mxu0
    %v497 = vadd.f32 0.0, %v496
    %498 = vmatmul.f32.gmra.mxu0 %v475
    %v499 = vpop.f32.mrf.mxu0
    %v500 = vadd.f32 0.0, %v499
    %501 = vdwg.mxu0
    %v502 = vsel %vm443, %v408, 0
    %v504 = vsel %vm443, %v410, 0
    %v506 = vsel %vm443, %v433, 0
    %508 = vmatpush.xpose.msra.mxu0 0.0
    %509 = vmatpush.xpose.msra.mxu0 0.0
    %510 = vmatpush.xpose.msra.mxu0 0.0
    %511 = vmatpush.xpose.msra.mxu0 0.0
    %512 = vmatpush.xpose.msra.mxu0 0.0
    %513 = vmatpush.xpose.msra.mxu0 0.0
    %514 = vmatpush.xpose.msra.mxu0 0.0
    %515 = vmatpush.xpose.msra.mxu0 0.0
    %516 = vmatpush.xpose.msra.mxu0 0.0
    %517 = vmatpush.xpose.msra.mxu0 0.0
    %518 = vmatpush.xpose.msra.mxu0 0.0
    %519 = vmatpush.xpose.msra.mxu0 0.0
    %520 = vmatpush.xpose.msra.mxu0 0.0
    %521 = vmatpush.xpose.msra.mxu0 0.0
    %522 = vmatpush.xpose.msra.mxu0 0.0
    %523 = vmatpush.xpose.msra.mxu0 %v506
    %524 = vmatmul.f32.gmra.mxu0 %v502
    %v525 = vpop.f32.mrf.mxu0
    %v526 = vadd.f32 0.0, %v525
    %527 = vmatmul.f32.gmra.mxu0 %v504
    %v528 = vpop.f32.mrf.mxu0
    %v529 = vadd.f32 0.0, %v528
    %530 = vdwg.mxu0
    %v531 = vsel %vm443, %v412, 0
    %v533 = vsel %vm443, %v414, 0
    %v535 = vsel %vm443, %v435, 0
    %537 = vmatpush.xpose.msra.mxu0 0.0
    %538 = vmatpush.xpose.msra.mxu0 0.0
    %539 = vmatpush.xpose.msra.mxu0 0.0
    %540 = vmatpush.xpose.msra.mxu0 0.0
    %541 = vmatpush.xpose.msra.mxu0 0.0
    %542 = vmatpush.xpose.msra.mxu0 0.0
    %543 = vmatpush.xpose.msra.mxu0 0.0
    %544 = vmatpush.xpose.msra.mxu0 0.0
    %545 = vmatpush.xpose.msra.mxu0 0.0
    %546 = vmatpush.xpose.msra.mxu0 0.0
    %547 = vmatpush.xpose.msra.mxu0 0.0
    %548 = vmatpush.xpose.msra.mxu0 0.0
    %549 = vmatpush.xpose.msra.mxu0 0.0
    %550 = vmatpush.xpose.msra.mxu0 0.0
    %551 = vmatpush.xpose.msra.mxu0 0.0
    %552 = vmatpush.xpose.msra.mxu0 %v535
    %553 = vmatmul.f32.gmra.mxu0 %v531
    %v554 = vpop.f32.mrf.mxu0
    %v555 = vadd.f32 0.0, %v554
    %556 = vmatmul.f32.gmra.mxu0 %v533
    %v557 = vpop.f32.mrf.mxu0
    %v558 = vadd.f32 0.0, %v557
    %559 = vdwg.mxu0
    %v560 = vsel %vm443, %v364, 0
    %v562 = vsel %vm443, %v367, 0
    %v564 = vsel %vm443, %v399, 0
    %566 = vmatpush.xpose.msra.mxu0 0.0
    %567 = vmatpush.xpose.msra.mxu0 0.0
    %568 = vmatpush.xpose.msra.mxu0 0.0
    %569 = vmatpush.xpose.msra.mxu0 0.0
    %570 = vmatpush.xpose.msra.mxu0 0.0
    %571 = vmatpush.xpose.msra.mxu0 0.0
    %572 = vmatpush.xpose.msra.mxu0 0.0
    %573 = vmatpush.xpose.msra.mxu0 0.0
    %574 = vmatpush.xpose.msra.mxu0 0.0
    %575 = vmatpush.xpose.msra.mxu0 0.0
    %576 = vmatpush.xpose.msra.mxu0 0.0
    %577 = vmatpush.xpose.msra.mxu0 0.0
    %578 = vmatpush.xpose.msra.mxu0 0.0
    %579 = vmatpush.xpose.msra.mxu0 0.0
    %580 = vmatpush.xpose.msra.mxu0 0.0
    %581 = vmatpush.xpose.msra.mxu0 %v564
    %582 = vmatmul.f32.gmra.mxu0 %v560
    %v583 = vpop.f32.mrf.mxu0
    %v584 = vadd.f32 0.0, %v583
    %585 = vmatmul.f32.gmra.mxu0 %v562
    %v586 = vpop.f32.mrf.mxu0
    %v587 = vadd.f32 0.0, %v586
    %588 = vdwg.mxu0
    %v589 = vsel %vm443, %v418, 0
    %v591 = vsel %vm443, %v420, 0
    %v593 = vsel %vm443, %v438, 0
    %595 = vmatpush.xpose.msra.mxu0 0.0
    %596 = vmatpush.xpose.msra.mxu0 0.0
    %597 = vmatpush.xpose.msra.mxu0 0.0
    %598 = vmatpush.xpose.msra.mxu0 0.0
    %599 = vmatpush.xpose.msra.mxu0 0.0
    %600 = vmatpush.xpose.msra.mxu0 0.0
    %601 = vmatpush.xpose.msra.mxu0 0.0
    %602 = vmatpush.xpose.msra.mxu0 0.0
    %603 = vmatpush.xpose.msra.mxu0 0.0
    %604 = vmatpush.xpose.msra.mxu0 0.0
    %605 = vmatpush.xpose.msra.mxu0 0.0
    %606 = vmatpush.xpose.msra.mxu0 0.0
    %607 = vmatpush.xpose.msra.mxu0 0.0
    %608 = vmatpush.xpose.msra.mxu0 0.0
    %609 = vmatpush.xpose.msra.mxu0 0.0
    %610 = vmatpush.xpose.msra.mxu0 %v593
    %611 = vmatmul.f32.gmra.mxu0 %v589
    %v612 = vpop.f32.mrf.mxu0
    %v613 = vadd.f32 0.0, %v612
    %614 = vmatmul.f32.gmra.mxu0 %v591
    %v615 = vpop.f32.mrf.mxu0
    %v616 = vadd.f32 0.0, %v615
    %617 = vdwg.mxu0
    %v618 = vsel %vm443, %v422, 0
    %v620 = vsel %vm443, %v424, 0
    %v622 = vsel %vm443, %v440, 0
    %624 = vmatpush.xpose.msra.mxu0 0.0
    %625 = vmatpush.xpose.msra.mxu0 0.0
    %626 = vmatpush.xpose.msra.mxu0 0.0
    %627 = vmatpush.xpose.msra.mxu0 0.0
    %628 = vmatpush.xpose.msra.mxu0 0.0
    %629 = vmatpush.xpose.msra.mxu0 0.0
    %630 = vmatpush.xpose.msra.mxu0 0.0
    %631 = vmatpush.xpose.msra.mxu0 0.0
    %632 = vmatpush.xpose.msra.mxu0 0.0
    %633 = vmatpush.xpose.msra.mxu0 0.0
    %634 = vmatpush.xpose.msra.mxu0 0.0
    %635 = vmatpush.xpose.msra.mxu0 0.0
    %636 = vmatpush.xpose.msra.mxu0 0.0
    %637 = vmatpush.xpose.msra.mxu0 0.0
    %638 = vmatpush.xpose.msra.mxu0 0.0
    %639 = vmatpush.xpose.msra.mxu0 %v622
    %640 = vmatmul.f32.gmra.mxu0 %v618
    %v641 = vpop.f32.mrf.mxu0
    %v642 = vadd.f32 0.0, %v641
    %643 = vmatmul.f32.gmra.mxu0 %v620
    %v644 = vpop.f32.mrf.mxu0
    %v645 = vadd.f32 0.0, %v644
    %646 = vdwg.mxu0
    %v647 = vsel %vm443, %v426, 0
    %v649 = vsel %vm443, %v428, 0
    %v651 = vsel %vm443, %v442, 0
    %653 = vmatpush.xpose.msra.mxu0 0.0
    %654 = vmatpush.xpose.msra.mxu0 0.0
    %655 = vmatpush.xpose.msra.mxu0 0.0
    %656 = vmatpush.xpose.msra.mxu0 0.0
    %657 = vmatpush.xpose.msra.mxu0 0.0
    %658 = vmatpush.xpose.msra.mxu0 0.0
    %659 = vmatpush.xpose.msra.mxu0 0.0
    %660 = vmatpush.xpose.msra.mxu0 0.0
    %661 = vmatpush.xpose.msra.mxu0 0.0
    %662 = vmatpush.xpose.msra.mxu0 0.0
    %663 = vmatpush.xpose.msra.mxu0 0.0
    %664 = vmatpush.xpose.msra.mxu0 0.0
    %665 = vmatpush.xpose.msra.mxu0 0.0
    %666 = vmatpush.xpose.msra.mxu0 0.0
    %667 = vmatpush.xpose.msra.mxu0 0.0
    %668 = vmatpush.xpose.msra.mxu0 %v651
    %669 = vmatmul.f32.gmra.mxu0 %v647
    %v670 = vpop.f32.mrf.mxu0
    %v671 = vadd.f32 0.0, %v670
    %672 = vmatmul.f32.gmra.mxu0 %v649
    %v673 = vpop.f32.mrf.mxu0
    %v674 = vadd.f32 0.0, %v673
    %675 = vdwg.mxu0
    %v676 = vmul.f32 %v468, 0.35355338
    %v677 = vmul.f32 %v471, 0.35355338
    %v678 = vmul.f32 %v497, 0.35355338
    %v679 = vmul.f32 %v500, 0.35355338
    %v680 = vmul.f32 %v526, 0.35355338
    %v681 = vmul.f32 %v529, 0.35355338
    %v682 = vmul.f32 %v555, 0.35355338
    %v683 = vmul.f32 %v558, 0.35355338
    %v684 = vmul.f32 %v584, 0.35355338
    %v685 = vmul.f32 %v587, 0.35355338
    %v686 = vmul.f32 %v613, 0.35355338
    %v687 = vmul.f32 %v616, 0.35355338
    %v688 = vmul.f32 %v642, 0.35355338
    %v689 = vmul.f32 %v645, 0.35355338
    %v690 = vmul.f32 %v671, 0.35355338
    %v691 = vmul.f32 %v674, 0.35355338
    %v692 = vsel %vm443, %v676, -inf
    %693 = vmax.xlane.f32.xlu0 %v692
    %v694 = vpop.xlane.xlu0 %693
    %v695 = vsel %vm443, %v677, -inf
    %696 = vmax.xlane.f32.xlu0 %v695
    %v697 = vpop.xlane.xlu0 %696
    %v698 = vsel %vm443, %v678, -inf
    %699 = vmax.xlane.f32.xlu0 %v698
    %v700 = vpop.xlane.xlu0 %699
    %v701 = vsel %vm443, %v679, -inf
    %702 = vmax.xlane.f32.xlu0 %v701
    %v703 = vpop.xlane.xlu0 %702
    %v704 = vsel %vm443, %v680, -inf
    %705 = vmax.xlane.f32.xlu0 %v704
    %v706 = vpop.xlane.xlu0 %705
    %v707 = vsel %vm443, %v681, -inf
    %708 = vmax.xlane.f32.xlu0 %v707
    %v709 = vpop.xlane.xlu0 %708
    %v710 = vsel %vm443, %v682, -inf
    %711 = vmax.xlane.f32.xlu0 %v710
    %v712 = vpop.xlane.xlu0 %711
    %v713 = vsel %vm443, %v683, -inf
    %714 = vmax.xlane.f32.xlu0 %v713
    %v715 = vpop.xlane.xlu0 %714
    %v716 = vsel %vm443, %v684, -inf
    %717 = vmax.xlane.f32.xlu0 %v716
    %v718 = vpop.xlane.xlu0 %717
    %v719 = vsel %vm443, %v685, -inf
    %720 = vmax.xlane.f32.xlu0 %v719
    %v721 = vpop.xlane.xlu0 %720
    %v722 = vsel %vm443, %v686, -inf
    %723 = vmax.xlane.f32.xlu0 %v722
    %v724 = vpop.xlane.xlu0 %723
    %v725 = vsel %vm443, %v687, -inf
    %726 = vmax.xlane.f32.xlu0 %v725
    %v727 = vpop.xlane.xlu0 %726
    %v728 = vsel %vm443, %v688, -inf
    %729 = vmax.xlane.f32.xlu0 %v728
    %v730 = vpop.xlane.xlu0 %729
    %v731 = vsel %vm443, %v689, -inf
    %732 = vmax.xlane.f32.xlu0 %v731
    %v733 = vpop.xlane.xlu0 %732
    %v734 = vsel %vm443, %v690, -inf
    %735 = vmax.xlane.f32.xlu0 %v734
    %v736 = vpop.xlane.xlu0 %735
    %v737 = vsel %vm443, %v691, -inf
    %738 = vmax.xlane.f32.xlu0 %v737
    %v739 = vpop.xlane.xlu0 %738
    %v740 = vsub.f32 %v676, %v694
    %v741 = vsub.f32 %v677, %v697
    %v742 = vsub.f32 %v678, %v700
    %v743 = vsub.f32 %v679, %v703
    %v744 = vsub.f32 %v680, %v706
    %v745 = vsub.f32 %v681, %v709
    %v746 = vsub.f32 %v682, %v712
    %v747 = vsub.f32 %v683, %v715
    %v748 = vsub.f32 %v684, %v718
    %v749 = vsub.f32 %v685, %v721
    %v750 = vsub.f32 %v686, %v724
    %v751 = vsub.f32 %v687, %v727
    %v752 = vsub.f32 %v688, %v730
    %v753 = vsub.f32 %v689, %v733
    %v754 = vsub.f32 %v690, %v736
    %v755 = vsub.f32 %v691, %v739
    %v756 = vmul.f32 %v740, 1.442695
    %v757 = vpow.pop %v756
    %v758 = vmul.f32 %v741, 1.442695
    %v759 = vpow.pop %v758
    %v760 = vmul.f32 %v742, 1.442695
    %v761 = vpow.pop %v760
    %v762 = vmul.f32 %v743, 1.442695
    %v763 = vpow.pop %v762
    %v764 = vmul.f32 %v744, 1.442695
    %v765 = vpow.pop %v764
    %v766 = vmul.f32 %v745, 1.442695
    %v767 = vpow.pop %v766
    %v768 = vmul.f32 %v746, 1.442695
    %v769 = vpow.pop %v768
    %v770 = vmul.f32 %v747, 1.442695
    %v771 = vpow.pop %v770
    %v772 = vmul.f32 %v748, 1.442695
    %v773 = vpow.pop %v772
    %v774 = vmul.f32 %v749, 1.442695
    %v775 = vpow.pop %v774
    %v776 = vmul.f32 %v750, 1.442695
    %v777 = vpow.pop %v776
    %v778 = vmul.f32 %v751, 1.442695
    %v779 = vpow.pop %v778
    %v780 = vmul.f32 %v752, 1.442695
    %v781 = vpow.pop %v780
    %v782 = vmul.f32 %v753, 1.442695
    %v783 = vpow.pop %v782
    %v784 = vmul.f32 %v754, 1.442695
    %v785 = vpow.pop %v784
    %v786 = vmul.f32 %v755, 1.442695
    %v787 = vpow.pop %v786
    %v788 = vsel %vm443, %v757, 0.0
    %789 = vadd.xlane.f32.xlu0 %v788
    %v790 = vpop.xlane.xlu0 %789
    %v791 = vsel %vm443, %v759, 0.0
    %792 = vadd.xlane.f32.xlu0 %v791
    %v793 = vpop.xlane.xlu0 %792
    %v794 = vsel %vm443, %v761, 0.0
    %795 = vadd.xlane.f32.xlu0 %v794
    %v796 = vpop.xlane.xlu0 %795
    %v797 = vsel %vm443, %v763, 0.0
    %798 = vadd.xlane.f32.xlu0 %v797
    %v799 = vpop.xlane.xlu0 %798
    %v800 = vsel %vm443, %v765, 0.0
    %801 = vadd.xlane.f32.xlu0 %v800
    %v802 = vpop.xlane.xlu0 %801
    %v803 = vsel %vm443, %v767, 0.0
    %804 = vadd.xlane.f32.xlu0 %v803
    %v805 = vpop.xlane.xlu0 %804
    %v806 = vsel %vm443, %v769, 0.0
    %807 = vadd.xlane.f32.xlu0 %v806
    %v808 = vpop.xlane.xlu0 %807
    %v809 = vsel %vm443, %v771, 0.0
    %810 = vadd.xlane.f32.xlu0 %v809
    %v811 = vpop.xlane.xlu0 %810
    %v812 = vsel %vm443, %v773, 0.0
    %813 = vadd.xlane.f32.xlu0 %v812
    %v814 = vpop.xlane.xlu0 %813
    %v815 = vsel %vm443, %v775, 0.0
    %816 = vadd.xlane.f32.xlu0 %v815
    %v817 = vpop.xlane.xlu0 %816
    %v818 = vsel %vm443, %v777, 0.0
    %819 = vadd.xlane.f32.xlu0 %v818
    %v820 = vpop.xlane.xlu0 %819
    %v821 = vsel %vm443, %v779, 0.0
    %822 = vadd.xlane.f32.xlu0 %v821
    %v823 = vpop.xlane.xlu0 %822
    %v824 = vsel %vm443, %v781, 0.0
    %825 = vadd.xlane.f32.xlu0 %v824
    %v826 = vpop.xlane.xlu0 %825
    %v827 = vsel %vm443, %v783, 0.0
    %828 = vadd.xlane.f32.xlu0 %v827
    %v829 = vpop.xlane.xlu0 %828
    %v830 = vsel %vm443, %v785, 0.0
    %831 = vadd.xlane.f32.xlu0 %v830
    %v832 = vpop.xlane.xlu0 %831
    %v833 = vsel %vm443, %v787, 0.0
    %834 = vadd.xlane.f32.xlu0 %v833
    %v835 = vpop.xlane.xlu0 %834
    %v836 = vrcp.pop %v790
    %v837 = vrcp.pop %v793
    %v838 = vrcp.pop %v796
    %v839 = vrcp.pop %v799
    %v840 = vrcp.pop %v802
    %v841 = vrcp.pop %v805
    %v842 = vrcp.pop %v808
    %v843 = vrcp.pop %v811
    %v844 = vrcp.pop %v814
    %v845 = vrcp.pop %v817
    %v846 = vrcp.pop %v820
    %v847 = vrcp.pop %v823
    %v848 = vrcp.pop %v826
    %v849 = vrcp.pop %v829
    %v850 = vrcp.pop %v832
    %v851 = vrcp.pop %v835
    %v852 = vmul.f32 %v757, %v836
    %v853 = vmul.f32 %v759, %v837
    %v854 = vmul.f32 %v761, %v838
    %v855 = vmul.f32 %v763, %v839
    %v856 = vmul.f32 %v765, %v840
    %v857 = vmul.f32 %v767, %v841
    %v858 = vmul.f32 %v769, %v842
    %v859 = vmul.f32 %v771, %v843
    %v860 = vmul.f32 %v773, %v844
    %v861 = vmul.f32 %v775, %v845
    %v862 = vmul.f32 %v777, %v846
    %v863 = vmul.f32 %v779, %v847
    %v864 = vmul.f32 %v781, %v848
    %v865 = vmul.f32 %v783, %v849
    %v866 = vmul.f32 %v785, %v850
    %v867 = vmul.f32 %v787, %v851
    %868 = vrot.lane.b32.xlu0 %v396, 96
    %v869 = vpop.permute.xlu0 %868
    %v872 = vsel %vm443, %v852, 0
    %v875 = vsel %vm443, %v853, 0
    %877 = vmatpush.msra.mxu0 0.0
    %878 = vmatpush.msra.mxu0 0.0
    %879 = vmatpush.msra.mxu0 0.0
    %880 = vmatpush.msra.mxu0 0.0
    %881 = vmatpush.msra.mxu0 0.0
    %882 = vmatpush.msra.mxu0 0.0
    %883 = vmatpush.msra.mxu0 0.0
    %884 = vmatpush.msra.mxu0 0.0
    %885 = vmatpush.msra.mxu0 0.0
    %886 = vmatpush.msra.mxu0 0.0
    %887 = vmatpush.msra.mxu0 0.0
    %888 = vmatpush.msra.mxu0 0.0
    %889 = vmatpush.msra.mxu0 0.0
    %890 = vmatpush.msra.mxu0 0.0
    %891 = vmatpush.msra.mxu0 0.0
    %892 = vmatpush.msra.mxu0 %v869
    %893 = vmatmul.f32.gmra.mxu0 %v872
    %v894 = vpop.f32.mrf.mxu0
    %v895 = vadd.f32 0.0, %v894
    %896 = vmatmul.f32.gmra.mxu0 %v875
    %v897 = vpop.f32.mrf.mxu0
    %v898 = vadd.f32 0.0, %v897
    %899 = vdwg.mxu0
    %900 = vrot.lane.b32.xlu0 %v431, 96
    %v901 = vpop.permute.xlu0 %900
    %v904 = vsel %vm443, %v854, 0
    %v907 = vsel %vm443, %v855, 0
    %909 = vmatpush.msra.mxu0 0.0
    %910 = vmatpush.msra.mxu0 0.0
    %911 = vmatpush.msra.mxu0 0.0
    %912 = vmatpush.msra.mxu0 0.0
    %913 = vmatpush.msra.mxu0 0.0
    %914 = vmatpush.msra.mxu0 0.0
    %915 = vmatpush.msra.mxu0 0.0
    %916 = vmatpush.msra.mxu0 0.0
    %917 = vmatpush.msra.mxu0 0.0
    %918 = vmatpush.msra.mxu0 0.0
    %919 = vmatpush.msra.mxu0 0.0
    %920 = vmatpush.msra.mxu0 0.0
    %921 = vmatpush.msra.mxu0 0.0
    %922 = vmatpush.msra.mxu0 0.0
    %923 = vmatpush.msra.mxu0 0.0
    %924 = vmatpush.msra.mxu0 %v901
    %925 = vmatmul.f32.gmra.mxu0 %v904
    %v926 = vpop.f32.mrf.mxu0
    %v927 = vadd.f32 0.0, %v926
    %928 = vmatmul.f32.gmra.mxu0 %v907
    %v929 = vpop.f32.mrf.mxu0
    %v930 = vadd.f32 0.0, %v929
    %931 = vdwg.mxu0
    %932 = vrot.lane.b32.xlu0 %v433, 96
    %v933 = vpop.permute.xlu0 %932
    %v936 = vsel %vm443, %v856, 0
    %v939 = vsel %vm443, %v857, 0
    %941 = vmatpush.msra.mxu0 0.0
    %942 = vmatpush.msra.mxu0 0.0
    %943 = vmatpush.msra.mxu0 0.0
    %944 = vmatpush.msra.mxu0 0.0
    %945 = vmatpush.msra.mxu0 0.0
    %946 = vmatpush.msra.mxu0 0.0
    %947 = vmatpush.msra.mxu0 0.0
    %948 = vmatpush.msra.mxu0 0.0
    %949 = vmatpush.msra.mxu0 0.0
    %950 = vmatpush.msra.mxu0 0.0
    %951 = vmatpush.msra.mxu0 0.0
    %952 = vmatpush.msra.mxu0 0.0
    %953 = vmatpush.msra.mxu0 0.0
    %954 = vmatpush.msra.mxu0 0.0
    %955 = vmatpush.msra.mxu0 0.0
    %956 = vmatpush.msra.mxu0 %v933
    %957 = vmatmul.f32.gmra.mxu0 %v936
    %v958 = vpop.f32.mrf.mxu0
    %v959 = vadd.f32 0.0, %v958
    %960 = vmatmul.f32.gmra.mxu0 %v939
    %v961 = vpop.f32.mrf.mxu0
    %v962 = vadd.f32 0.0, %v961
    %963 = vdwg.mxu0
    %964 = vrot.lane.b32.xlu0 %v435, 96
    %v965 = vpop.permute.xlu0 %964
    %v968 = vsel %vm443, %v858, 0
    %v971 = vsel %vm443, %v859, 0
    %973 = vmatpush.msra.mxu0 0.0
    %974 = vmatpush.msra.mxu0 0.0
    %975 = vmatpush.msra.mxu0 0.0
    %976 = vmatpush.msra.mxu0 0.0
    %977 = vmatpush.msra.mxu0 0.0
    %978 = vmatpush.msra.mxu0 0.0
    %979 = vmatpush.msra.mxu0 0.0
    %980 = vmatpush.msra.mxu0 0.0
    %981 = vmatpush.msra.mxu0 0.0
    %982 = vmatpush.msra.mxu0 0.0
    %983 = vmatpush.msra.mxu0 0.0
    %984 = vmatpush.msra.mxu0 0.0
    %985 = vmatpush.msra.mxu0 0.0
    %986 = vmatpush.msra.mxu0 0.0
    %987 = vmatpush.msra.mxu0 0.0
    %988 = vmatpush.msra.mxu0 %v965
    %989 = vmatmul.f32.gmra.mxu0 %v968
    %v990 = vpop.f32.mrf.mxu0
    %v991 = vadd.f32 0.0, %v990
    %992 = vmatmul.f32.gmra.mxu0 %v971
    %v993 = vpop.f32.mrf.mxu0
    %v994 = vadd.f32 0.0, %v993
    %995 = vdwg.mxu0
    %996 = vrot.lane.b32.xlu0 %v399, 96
    %v997 = vpop.permute.xlu0 %996
    %v1000 = vsel %vm443, %v860, 0
    %v1003 = vsel %vm443, %v861, 0
    %1005 = vmatpush.msra.mxu0 0.0
    %1006 = vmatpush.msra.mxu0 0.0
    %1007 = vmatpush.msra.mxu0 0.0
    %1008 = vmatpush.msra.mxu0 0.0
    %1009 = vmatpush.msra.mxu0 0.0
    %1010 = vmatpush.msra.mxu0 0.0
    %1011 = vmatpush.msra.mxu0 0.0
    %1012 = vmatpush.msra.mxu0 0.0
    %1013 = vmatpush.msra.mxu0 0.0
    %1014 = vmatpush.msra.mxu0 0.0
    %1015 = vmatpush.msra.mxu0 0.0
    %1016 = vmatpush.msra.mxu0 0.0
    %1017 = vmatpush.msra.mxu0 0.0
    %1018 = vmatpush.msra.mxu0 0.0
    %1019 = vmatpush.msra.mxu0 0.0
    %1020 = vmatpush.msra.mxu0 %v997
    %1021 = vmatmul.f32.gmra.mxu0 %v1000
    %v1022 = vpop.f32.mrf.mxu0
    %v1023 = vadd.f32 0.0, %v1022
    %1024 = vmatmul.f32.gmra.mxu0 %v1003
    %v1025 = vpop.f32.mrf.mxu0
    %v1026 = vadd.f32 0.0, %v1025
    %1027 = vdwg.mxu0
    %1028 = vrot.lane.b32.xlu0 %v438, 96
    %v1029 = vpop.permute.xlu0 %1028
    %v1032 = vsel %vm443, %v862, 0
    %v1035 = vsel %vm443, %v863, 0
    %1037 = vmatpush.msra.mxu0 0.0
    %1038 = vmatpush.msra.mxu0 0.0
    %1039 = vmatpush.msra.mxu0 0.0
    %1040 = vmatpush.msra.mxu0 0.0
    %1041 = vmatpush.msra.mxu0 0.0
    %1042 = vmatpush.msra.mxu0 0.0
    %1043 = vmatpush.msra.mxu0 0.0
    %1044 = vmatpush.msra.mxu0 0.0
    %1045 = vmatpush.msra.mxu0 0.0
    %1046 = vmatpush.msra.mxu0 0.0
    %1047 = vmatpush.msra.mxu0 0.0
    %1048 = vmatpush.msra.mxu0 0.0
    %1049 = vmatpush.msra.mxu0 0.0
    %1050 = vmatpush.msra.mxu0 0.0
    %1051 = vmatpush.msra.mxu0 0.0
    %1052 = vmatpush.msra.mxu0 %v1029
    %1053 = vmatmul.f32.gmra.mxu0 %v1032
    %v1054 = vpop.f32.mrf.mxu0
    %v1055 = vadd.f32 0.0, %v1054
    %1056 = vmatmul.f32.gmra.mxu0 %v1035
    %v1057 = vpop.f32.mrf.mxu0
    %v1058 = vadd.f32 0.0, %v1057
    %1059 = vdwg.mxu0
    %1060 = vrot.lane.b32.xlu0 %v440, 96
    %v1061 = vpop.permute.xlu0 %1060
    %v1064 = vsel %vm443, %v864, 0
    %v1067 = vsel %vm443, %v865, 0
    %1069 = vmatpush.msra.mxu0 0.0
    %1070 = vmatpush.msra.mxu0 0.0
    %1071 = vmatpush.msra.mxu0 0.0
    %1072 = vmatpush.msra.mxu0 0.0
    %1073 = vmatpush.msra.mxu0 0.0
    %1074 = vmatpush.msra.mxu0 0.0
    %1075 = vmatpush.msra.mxu0 0.0
    %1076 = vmatpush.msra.mxu0 0.0
    %1077 = vmatpush.msra.mxu0 0.0
    %1078 = vmatpush.msra.mxu0 0.0
    %1079 = vmatpush.msra.mxu0 0.0
    %1080 = vmatpush.msra.mxu0 0.0
    %1081 = vmatpush.msra.mxu0 0.0
    %1082 = vmatpush.msra.mxu0 0.0
    %1083 = vmatpush.msra.mxu0 0.0
    %1084 = vmatpush.msra.mxu0 %v1061
    %1085 = vmatmul.f32.gmra.mxu0 %v1064
    %v1086 = vpop.f32.mrf.mxu0
    %v1087 = vadd.f32 0.0, %v1086
    %1088 = vmatmul.f32.gmra.mxu0 %v1067
    %v1089 = vpop.f32.mrf.mxu0
    %v1090 = vadd.f32 0.0, %v1089
    %1091 = vdwg.mxu0
    %1092 = vrot.lane.b32.xlu0 %v442, 96
    %v1093 = vpop.permute.xlu0 %1092
    %v1096 = vsel %vm443, %v866, 0
    %v1099 = vsel %vm443, %v867, 0
    %1101 = vmatpush.msra.mxu0 0.0
    %1102 = vmatpush.msra.mxu0 0.0
    %1103 = vmatpush.msra.mxu0 0.0
    %1104 = vmatpush.msra.mxu0 0.0
    %1105 = vmatpush.msra.mxu0 0.0
    %1106 = vmatpush.msra.mxu0 0.0
    %1107 = vmatpush.msra.mxu0 0.0
    %1108 = vmatpush.msra.mxu0 0.0
    %1109 = vmatpush.msra.mxu0 0.0
    %1110 = vmatpush.msra.mxu0 0.0
    %1111 = vmatpush.msra.mxu0 0.0
    %1112 = vmatpush.msra.mxu0 0.0
    %1113 = vmatpush.msra.mxu0 0.0
    %1114 = vmatpush.msra.mxu0 0.0
    %1115 = vmatpush.msra.mxu0 0.0
    %1116 = vmatpush.msra.mxu0 %v1093
    %1117 = vmatmul.f32.gmra.mxu0 %v1096
    %v1118 = vpop.f32.mrf.mxu0
    %v1119 = vadd.f32 0.0, %v1118
    %1120 = vmatmul.f32.gmra.mxu0 %v1099
    %v1121 = vpop.f32.mrf.mxu0
    %v1122 = vadd.f32 0.0, %v1121
    %1123 = vdwg.mxu0
    %1126 = vrot.lane.b32.xlu0 %v927, 8
    %v1127 = vpop.permute.xlu0 %1126
    %1128 = vrot.lane.b32.xlu0 %v930, 8
    %v1129 = vpop.permute.xlu0 %1128
    %1134 = vrot.lane.b32.xlu0 %v959, 16
    %v1135 = vpop.permute.xlu0 %1134
    %1136 = vrot.lane.b32.xlu0 %v962, 16
    %v1137 = vpop.permute.xlu0 %1136
    %1142 = vrot.lane.b32.xlu0 %v991, 24
    %v1143 = vpop.permute.xlu0 %1142
    %1144 = vrot.lane.b32.xlu0 %v994, 24
    %v1145 = vpop.permute.xlu0 %1144
    %v1148 = vsel %vm443, %v895, %v1127
    %v1149 = vsel %vm443, %v898, %v1129
    %vm1150 = vcmask 130048
    %v1151 = vsel %vm1150, %v1148, %v1135
    %v1152 = vsel %vm1150, %v1149, %v1137
    %vm1153 = vcmask 195584
    %v1154 = vsel %vm1153, %v1151, %v1143
    %v1155 = vsel %vm1153, %v1152, %v1145
    %1158 = vrot.lane.b32.xlu0 %v1055, 8
    %v1159 = vpop.permute.xlu0 %1158
    %1160 = vrot.lane.b32.xlu0 %v1058, 8
    %v1161 = vpop.permute.xlu0 %1160
    %1166 = vrot.lane.b32.xlu0 %v1087, 16
    %v1167 = vpop.permute.xlu0 %1166
    %1168 = vrot.lane.b32.xlu0 %v1090, 16
    %v1169 = vpop.permute.xlu0 %1168
    %1174 = vrot.lane.b32.xlu0 %v1119, 24
    %v1175 = vpop.permute.xlu0 %1174
    %1176 = vrot.lane.b32.xlu0 %v1122, 24
    %v1177 = vpop.permute.xlu0 %1176
    %v1180 = vsel %vm443, %v1023, %v1159
    %v1181 = vsel %vm443, %v1026, %v1161
    %v1182 = vsel %vm1150, %v1180, %v1167
    %v1183 = vsel %vm1150, %v1181, %v1169
    %v1184 = vsel %vm1153, %v1182, %v1175
    %v1185 = vsel %vm1153, %v1183, %v1177
    %v1187 = vperm.slane %v323, 0
    %v1190 = vsel %vm327, %v1154, 0
    %v1193 = vsel %vm327, %v1155, 0
    %v1196 = vsel %vm327, %v1184, 0
    %v1199 = vsel %vm327, %v1185, 0
    %1201 = vmatpush.msra.mxu0 0.0
    %1202 = vmatpush.msra.mxu0 0.0
    %1203 = vmatpush.msra.mxu0 0.0
    %1204 = vmatpush.msra.mxu0 0.0
    %1205 = vmatpush.msra.mxu0 0.0
    %1206 = vmatpush.msra.mxu0 0.0
    %1207 = vmatpush.msra.mxu0 0.0
    %1208 = vmatpush.msra.mxu0 0.0
    %1209 = vmatpush.msra.mxu0 0.0
    %1210 = vmatpush.msra.mxu0 0.0
    %1211 = vmatpush.msra.mxu0 0.0
    %1212 = vmatpush.msra.mxu0 0.0
    %1213 = vmatpush.msra.mxu0 %v322
    %1214 = vmatpush.msra.mxu0 %v321
    %1215 = vmatpush.msra.mxu0 %v320
    %1216 = vmatpush.msra.mxu0 %v319
    %1217 = vmatmul.f32.gmra.mxu0 %v1190
    %v1218 = vpop.f32.mrf.mxu0
    %v1219 = vadd.f32 %v1187, %v1218
    %1220 = vmatmul.f32.gmra.mxu0 %v1193
    %v1221 = vpop.f32.mrf.mxu0
    %v1222 = vadd.f32 %v1187, %v1221
    %1223 = vmatmul.f32.gmra.mxu0 %v1196
    %v1224 = vpop.f32.mrf.mxu0
    %v1225 = vadd.f32 %v1187, %v1224
    %1226 = vmatmul.f32.gmra.mxu0 %v1199
    %v1227 = vpop.f32.mrf.mxu0
    %v1228 = vadd.f32 %v1187, %v1227
    %1229 = vdwg.mxu0
    %v1230 = vld [vmem:[%s17] sm:$0xff]
    %v1231 = vld [vmem:[%s17 + $0x8] sm:$0xff]
    %v1232 = vld [vmem:[%s17 + $0x10] sm:$0xff]
    %v1233 = vld [vmem:[%s17 + $0x18] sm:$0xff]
    %v1234 = vld [vmem:[%s19] sm:$0x1]
    %v1235 = vld [vmem:[#allocation5] sm:$0xff]
    %v1236 = vld [vmem:[#allocation5 + $0x8] sm:$0xff]
    %v1237 = vld [vmem:[#allocation5 + $0x10] sm:$0xff]
    %v1238 = vld [vmem:[#allocation5 + $0x18] sm:$0xff]
    %v1239 = vld [vmem:[%s23] sm:$0x1]
    %v1240 = vld [vmem:[#allocation7] sm:$0xff]
    %v1241 = vld [vmem:[#allocation7 + $0x8] sm:$0xff]
    %v1242 = vld [vmem:[#allocation7 + $0x10] sm:$0xff]
    %v1243 = vld [vmem:[#allocation7 + $0x18] sm:$0xff]
    %v1244 = vld [vmem:[%s27] sm:$0x1]
    %v1246 = vperm.slane %v1234, 0
    %1248 = vmatpush.msra.mxu0 0.0
    %1249 = vmatpush.msra.mxu0 0.0
    %1250 = vmatpush.msra.mxu0 0.0
    %1251 = vmatpush.msra.mxu0 0.0
    %1252 = vmatpush.msra.mxu0 0.0
    %1253 = vmatpush.msra.mxu0 0.0
    %1254 = vmatpush.msra.mxu0 0.0
    %1255 = vmatpush.msra.mxu0 0.0
    %1256 = vmatpush.msra.mxu0 0.0
    %1257 = vmatpush.msra.mxu0 0.0
    %1258 = vmatpush.msra.mxu0 0.0
    %1259 = vmatpush.msra.mxu0 0.0
    %1260 = vmatpush.msra.mxu0 %v1233
    %1261 = vmatpush.msra.mxu0 %v1232
    %1262 = vmatpush.msra.mxu0 %v1231
    %1263 = vmatpush.msra.mxu0 %v1230
    %1264 = vmatmul.f32.gmra.mxu0 %v373
    %v1265 = vpop.f32.mrf.mxu0
    %v1266 = vadd.f32 %v1246, %v1265
    %1267 = vmatmul.f32.gmra.mxu0 %v376
    %v1268 = vpop.f32.mrf.mxu0
    %v1269 = vadd.f32 %v1246, %v1268
    %1270 = vdwg.mxu0
    %v1272 = vperm.slane %v1239, 0
    %1274 = vmatpush.msra.mxu0 0.0
    %1275 = vmatpush.msra.mxu0 0.0
    %1276 = vmatpush.msra.mxu0 0.0
    %1277 = vmatpush.msra.mxu0 0.0
    %1278 = vmatpush.msra.mxu0 0.0
    %1279 = vmatpush.msra.mxu0 0.0
    %1280 = vmatpush.msra.mxu0 0.0
    %1281 = vmatpush.msra.mxu0 0.0
    %1282 = vmatpush.msra.mxu0 0.0
    %1283 = vmatpush.msra.mxu0 0.0
    %1284 = vmatpush.msra.mxu0 0.0
    %1285 = vmatpush.msra.mxu0 0.0
    %1286 = vmatpush.msra.mxu0 %v1238
    %1287 = vmatpush.msra.mxu0 %v1237
    %1288 = vmatpush.msra.mxu0 %v1236
    %1289 = vmatpush.msra.mxu0 %v1235
    %1290 = vmatmul.f32.gmra.mxu0 %v329
    %v1291 = vpop.f32.mrf.mxu0
    %v1292 = vadd.f32 %v1272, %v1291
    %1293 = vmatmul.f32.gmra.mxu0 %v332
    %v1294 = vpop.f32.mrf.mxu0
    %v1295 = vadd.f32 %v1272, %v1294
    %1296 = vmatmul.f32.gmra.mxu0 %v335
    %v1297 = vpop.f32.mrf.mxu0
    %v1298 = vadd.f32 %v1272, %v1297
    %1299 = vmatmul.f32.gmra.mxu0 %v338
    %v1300 = vpop.f32.mrf.mxu0
    %v1301 = vadd.f32 %v1272, %v1300
    %1302 = vdwg.mxu0
    %1304 = vrot.lane.b32.xlu0 %v1266, 120
    %v1305 = vpop.permute.xlu0 %1304
    %1306 = vrot.lane.b32.xlu0 %v1266, 112
    %v1307 = vpop.permute.xlu0 %1306
    %1308 = vrot.lane.b32.xlu0 %v1266, 104
    %v1309 = vpop.permute.xlu0 %1308
    %1311 = vrot.lane.b32.xlu0 %v1269, 120
    %v1312 = vpop.permute.xlu0 %1311
    %1313 = vrot.lane.b32.xlu0 %v1269, 112
    %v1314 = vpop.permute.xlu0 %1313
    %1315 = vrot.lane.b32.xlu0 %v1269, 104
    %v1316 = vpop.permute.xlu0 %1315
    %1319 = vrot.lane.b32.xlu0 %v1292, 120
    %v1320 = vpop.permute.xlu0 %1319
    %1321 = vrot.lane.b32.xlu0 %v1295, 120
    %v1322 = vpop.permute.xlu0 %1321
    %1323 = vrot.lane.b32.xlu0 %v1292, 112
    %v1324 = vpop.permute.xlu0 %1323
    %1325 = vrot.lane.b32.xlu0 %v1295, 112
    %v1326 = vpop.permute.xlu0 %1325
    %1327 = vrot.lane.b32.xlu0 %v1292, 104
    %v1328 = vpop.permute.xlu0 %1327
    %1329 = vrot.lane.b32.xlu0 %v1295, 104
    %v1330 = vpop.permute.xlu0 %1329
    %1333 = vrot.lane.b32.xlu0 %v1298, 120
    %v1334 = vpop.permute.xlu0 %1333
    %1335 = vrot.lane.b32.xlu0 %v1301, 120
    %v1336 = vpop.permute.xlu0 %1335
    %1337 = vrot.lane.b32.xlu0 %v1298, 112
    %v1338 = vpop.permute.xlu0 %1337
    %1339 = vrot.lane.b32.xlu0 %v1301, 112
    %v1340 = vpop.permute.xlu0 %1339
    %1341 = vrot.lane.b32.xlu0 %v1298, 104
    %v1342 = vpop.permute.xlu0 %1341
    %1343 = vrot.lane.b32.xlu0 %v1301, 104
    %v1344 = vpop.permute.xlu0 %1343
    %v1345 = vsel %vm443, %v1266, 0
    %v1347 = vsel %vm443, %v1292, 0
    %v1349 = vsel %vm443, %v1295, 0
    %1351 = vmatpush.xpose.msra.mxu0 0.0
    %1352 = vmatpush.xpose.msra.mxu0 0.0
    %1353 = vmatpush.xpose.msra.mxu0 0.0
    %1354 = vmatpush.xpose.msra.mxu0 0.0
    %1355 = vmatpush.xpose.msra.mxu0 0.0
    %1356 = vmatpush.xpose.msra.mxu0 0.0
    %1357 = vmatpush.xpose.msra.mxu0 0.0
    %1358 = vmatpush.xpose.msra.mxu0 0.0
    %1359 = vmatpush.xpose.msra.mxu0 0.0
    %1360 = vmatpush.xpose.msra.mxu0 0.0
    %1361 = vmatpush.xpose.msra.mxu0 0.0
    %1362 = vmatpush.xpose.msra.mxu0 0.0
    %1363 = vmatpush.xpose.msra.mxu0 0.0
    %1364 = vmatpush.xpose.msra.mxu0 0.0
    %1365 = vmatpush.xpose.msra.mxu0 %v1349
    %1366 = vmatpush.xpose.msra.mxu0 %v1347
    %1367 = vmatmul.f32.gmra.mxu0 %v1345
    %v1368 = vpop.f32.mrf.mxu0
    %v1369 = vadd.f32 0.0, %v1368
    %1370 = vdwg.mxu0
    %v1371 = vsel %vm443, %v1305, 0
    %v1373 = vsel %vm443, %v1320, 0
    %v1375 = vsel %vm443, %v1322, 0
    %1377 = vmatpush.xpose.msra.mxu0 0.0
    %1378 = vmatpush.xpose.msra.mxu0 0.0
    %1379 = vmatpush.xpose.msra.mxu0 0.0
    %1380 = vmatpush.xpose.msra.mxu0 0.0
    %1381 = vmatpush.xpose.msra.mxu0 0.0
    %1382 = vmatpush.xpose.msra.mxu0 0.0
    %1383 = vmatpush.xpose.msra.mxu0 0.0
    %1384 = vmatpush.xpose.msra.mxu0 0.0
    %1385 = vmatpush.xpose.msra.mxu0 0.0
    %1386 = vmatpush.xpose.msra.mxu0 0.0
    %1387 = vmatpush.xpose.msra.mxu0 0.0
    %1388 = vmatpush.xpose.msra.mxu0 0.0
    %1389 = vmatpush.xpose.msra.mxu0 0.0
    %1390 = vmatpush.xpose.msra.mxu0 0.0
    %1391 = vmatpush.xpose.msra.mxu0 %v1375
    %1392 = vmatpush.xpose.msra.mxu0 %v1373
    %1393 = vmatmul.f32.gmra.mxu0 %v1371
    %v1394 = vpop.f32.mrf.mxu0
    %v1395 = vadd.f32 0.0, %v1394
    %1396 = vdwg.mxu0
    %v1397 = vsel %vm443, %v1307, 0
    %v1399 = vsel %vm443, %v1324, 0
    %v1401 = vsel %vm443, %v1326, 0
    %1403 = vmatpush.xpose.msra.mxu0 0.0
    %1404 = vmatpush.xpose.msra.mxu0 0.0
    %1405 = vmatpush.xpose.msra.mxu0 0.0
    %1406 = vmatpush.xpose.msra.mxu0 0.0
    %1407 = vmatpush.xpose.msra.mxu0 0.0
    %1408 = vmatpush.xpose.msra.mxu0 0.0
    %1409 = vmatpush.xpose.msra.mxu0 0.0
    %1410 = vmatpush.xpose.msra.mxu0 0.0
    %1411 = vmatpush.xpose.msra.mxu0 0.0
    %1412 = vmatpush.xpose.msra.mxu0 0.0
    %1413 = vmatpush.xpose.msra.mxu0 0.0
    %1414 = vmatpush.xpose.msra.mxu0 0.0
    %1415 = vmatpush.xpose.msra.mxu0 0.0
    %1416 = vmatpush.xpose.msra.mxu0 0.0
    %1417 = vmatpush.xpose.msra.mxu0 %v1401
    %1418 = vmatpush.xpose.msra.mxu0 %v1399
    %1419 = vmatmul.f32.gmra.mxu0 %v1397
    %v1420 = vpop.f32.mrf.mxu0
    %v1421 = vadd.f32 0.0, %v1420
    %1422 = vdwg.mxu0
    %v1423 = vsel %vm443, %v1309, 0
    %v1425 = vsel %vm443, %v1328, 0
    %v1427 = vsel %vm443, %v1330, 0
    %1429 = vmatpush.xpose.msra.mxu0 0.0
    %1430 = vmatpush.xpose.msra.mxu0 0.0
    %1431 = vmatpush.xpose.msra.mxu0 0.0
    %1432 = vmatpush.xpose.msra.mxu0 0.0
    %1433 = vmatpush.xpose.msra.mxu0 0.0
    %1434 = vmatpush.xpose.msra.mxu0 0.0
    %1435 = vmatpush.xpose.msra.mxu0 0.0
    %1436 = vmatpush.xpose.msra.mxu0 0.0
    %1437 = vmatpush.xpose.msra.mxu0 0.0
    %1438 = vmatpush.xpose.msra.mxu0 0.0
    %1439 = vmatpush.xpose.msra.mxu0 0.0
    %1440 = vmatpush.xpose.msra.mxu0 0.0
    %1441 = vmatpush.xpose.msra.mxu0 0.0
    %1442 = vmatpush.xpose.msra.mxu0 0.0
    %1443 = vmatpush.xpose.msra.mxu0 %v1427
    %1444 = vmatpush.xpose.msra.mxu0 %v1425
    %1445 = vmatmul.f32.gmra.mxu0 %v1423
    %v1446 = vpop.f32.mrf.mxu0
    %v1447 = vadd.f32 0.0, %v1446
    %1448 = vdwg.mxu0
    %v1449 = vsel %vm443, %v1269, 0
    %v1451 = vsel %vm443, %v1298, 0
    %v1453 = vsel %vm443, %v1301, 0
    %1455 = vmatpush.xpose.msra.mxu0 0.0
    %1456 = vmatpush.xpose.msra.mxu0 0.0
    %1457 = vmatpush.xpose.msra.mxu0 0.0
    %1458 = vmatpush.xpose.msra.mxu0 0.0
    %1459 = vmatpush.xpose.msra.mxu0 0.0
    %1460 = vmatpush.xpose.msra.mxu0 0.0
    %1461 = vmatpush.xpose.msra.mxu0 0.0
    %1462 = vmatpush.xpose.msra.mxu0 0.0
    %1463 = vmatpush.xpose.msra.mxu0 0.0
    %1464 = vmatpush.xpose.msra.mxu0 0.0
    %1465 = vmatpush.xpose.msra.mxu0 0.0
    %1466 = vmatpush.xpose.msra.mxu0 0.0
    %1467 = vmatpush.xpose.msra.mxu0 0.0
    %1468 = vmatpush.xpose.msra.mxu0 0.0
    %1469 = vmatpush.xpose.msra.mxu0 %v1453
    %1470 = vmatpush.xpose.msra.mxu0 %v1451
    %1471 = vmatmul.f32.gmra.mxu0 %v1449
    %v1472 = vpop.f32.mrf.mxu0
    %v1473 = vadd.f32 0.0, %v1472
    %1474 = vdwg.mxu0
    %v1475 = vsel %vm443, %v1312, 0
    %v1477 = vsel %vm443, %v1334, 0
    %v1479 = vsel %vm443, %v1336, 0
    %1481 = vmatpush.xpose.msra.mxu0 0.0
    %1482 = vmatpush.xpose.msra.mxu0 0.0
    %1483 = vmatpush.xpose.msra.mxu0 0.0
    %1484 = vmatpush.xpose.msra.mxu0 0.0
    %1485 = vmatpush.xpose.msra.mxu0 0.0
    %1486 = vmatpush.xpose.msra.mxu0 0.0
    %1487 = vmatpush.xpose.msra.mxu0 0.0
    %1488 = vmatpush.xpose.msra.mxu0 0.0
    %1489 = vmatpush.xpose.msra.mxu0 0.0
    %1490 = vmatpush.xpose.msra.mxu0 0.0
    %1491 = vmatpush.xpose.msra.mxu0 0.0
    %1492 = vmatpush.xpose.msra.mxu0 0.0
    %1493 = vmatpush.xpose.msra.mxu0 0.0
    %1494 = vmatpush.xpose.msra.mxu0 0.0
    %1495 = vmatpush.xpose.msra.mxu0 %v1479
    %1496 = vmatpush.xpose.msra.mxu0 %v1477
    %1497 = vmatmul.f32.gmra.mxu0 %v1475
    %v1498 = vpop.f32.mrf.mxu0
    %v1499 = vadd.f32 0.0, %v1498
    %1500 = vdwg.mxu0
    %v1501 = vsel %vm443, %v1314, 0
    %v1503 = vsel %vm443, %v1338, 0
    %v1505 = vsel %vm443, %v1340, 0
    %1507 = vmatpush.xpose.msra.mxu0 0.0
    %1508 = vmatpush.xpose.msra.mxu0 0.0
    %1509 = vmatpush.xpose.msra.mxu0 0.0
    %1510 = vmatpush.xpose.msra.mxu0 0.0
    %1511 = vmatpush.xpose.msra.mxu0 0.0
    %1512 = vmatpush.xpose.msra.mxu0 0.0
    %1513 = vmatpush.xpose.msra.mxu0 0.0
    %1514 = vmatpush.xpose.msra.mxu0 0.0
    %1515 = vmatpush.xpose.msra.mxu0 0.0
    %1516 = vmatpush.xpose.msra.mxu0 0.0
    %1517 = vmatpush.xpose.msra.mxu0 0.0
    %1518 = vmatpush.xpose.msra.mxu0 0.0
    %1519 = vmatpush.xpose.msra.mxu0 0.0
    %1520 = vmatpush.xpose.msra.mxu0 0.0
    %1521 = vmatpush.xpose.msra.mxu0 %v1505
    %1522 = vmatpush.xpose.msra.mxu0 %v1503
    %1523 = vmatmul.f32.gmra.mxu0 %v1501
    %v1524 = vpop.f32.mrf.mxu0
    %v1525 = vadd.f32 0.0, %v1524
    %1526 = vdwg.mxu0
    %v1527 = vsel %vm443, %v1316, 0
    %v1529 = vsel %vm443, %v1342, 0
    %v1531 = vsel %vm443, %v1344, 0
    %1533 = vmatpush.xpose.msra.mxu0 0.0
    %1534 = vmatpush.xpose.msra.mxu0 0.0
    %1535 = vmatpush.xpose.msra.mxu0 0.0
    %1536 = vmatpush.xpose.msra.mxu0 0.0
    %1537 = vmatpush.xpose.msra.mxu0 0.0
    %1538 = vmatpush.xpose.msra.mxu0 0.0
    %1539 = vmatpush.xpose.msra.mxu0 0.0
    %1540 = vmatpush.xpose.msra.mxu0 0.0
    %1541 = vmatpush.xpose.msra.mxu0 0.0
    %1542 = vmatpush.xpose.msra.mxu0 0.0
    %1543 = vmatpush.xpose.msra.mxu0 0.0
    %1544 = vmatpush.xpose.msra.mxu0 0.0
    %1545 = vmatpush.xpose.msra.mxu0 0.0
    %1546 = vmatpush.xpose.msra.mxu0 0.0
    %1547 = vmatpush.xpose.msra.mxu0 %v1531
    %1548 = vmatpush.xpose.msra.mxu0 %v1529
    %1549 = vmatmul.f32.gmra.mxu0 %v1527
    %v1550 = vpop.f32.mrf.mxu0
    %v1551 = vadd.f32 0.0, %v1550
    %1552 = vdwg.mxu0
    %v1553 = vmul.f32 %v1369, 0.35355338
    %v1554 = vmul.f32 %v1395, 0.35355338
    %v1555 = vmul.f32 %v1421, 0.35355338
    %v1556 = vmul.f32 %v1447, 0.35355338
    %v1557 = vmul.f32 %v1473, 0.35355338
    %v1558 = vmul.f32 %v1499, 0.35355338
    %v1559 = vmul.f32 %v1525, 0.35355338
    %v1560 = vmul.f32 %v1551, 0.35355338
    %v1561 = vsel %vm1150, %v1553, -inf
    %1562 = vmax.xlane.f32.xlu0 %v1561
    %v1563 = vpop.xlane.xlu0 %1562
    %v1564 = vsel %vm1150, %v1554, -inf
    %1565 = vmax.xlane.f32.xlu0 %v1564
    %v1566 = vpop.xlane.xlu0 %1565
    %v1567 = vsel %vm1150, %v1555, -inf
    %1568 = vmax.xlane.f32.xlu0 %v1567
    %v1569 = vpop.xlane.xlu0 %1568
    %v1570 = vsel %vm1150, %v1556, -inf
    %1571 = vmax.xlane.f32.xlu0 %v1570
    %v1572 = vpop.xlane.xlu0 %1571
    %v1573 = vsel %vm1150, %v1557, -inf
    %1574 = vmax.xlane.f32.xlu0 %v1573
    %v1575 = vpop.xlane.xlu0 %1574
    %v1576 = vsel %vm1150, %v1558, -inf
    %1577 = vmax.xlane.f32.xlu0 %v1576
    %v1578 = vpop.xlane.xlu0 %1577
    %v1579 = vsel %vm1150, %v1559, -inf
    %1580 = vmax.xlane.f32.xlu0 %v1579
    %v1581 = vpop.xlane.xlu0 %1580
    %v1582 = vsel %vm1150, %v1560, -inf
    %1583 = vmax.xlane.f32.xlu0 %v1582
    %v1584 = vpop.xlane.xlu0 %1583
    %v1585 = vsub.f32 %v1553, %v1563
    %v1586 = vsub.f32 %v1554, %v1566
    %v1587 = vsub.f32 %v1555, %v1569
    %v1588 = vsub.f32 %v1556, %v1572
    %v1589 = vsub.f32 %v1557, %v1575
    %v1590 = vsub.f32 %v1558, %v1578
    %v1591 = vsub.f32 %v1559, %v1581
    %v1592 = vsub.f32 %v1560, %v1584
    %v1593 = vmul.f32 %v1585, 1.442695
    %v1594 = vpow.pop %v1593
    %v1595 = vmul.f32 %v1586, 1.442695
    %v1596 = vpow.pop %v1595
    %v1597 = vmul.f32 %v1587, 1.442695
    %v1598 = vpow.pop %v1597
    %v1599 = vmul.f32 %v1588, 1.442695
    %v1600 = vpow.pop %v1599
    %v1601 = vmul.f32 %v1589, 1.442695
    %v1602 = vpow.pop %v1601
    %v1603 = vmul.f32 %v1590, 1.442695
    %v1604 = vpow.pop %v1603
    %v1605 = vmul.f32 %v1591, 1.442695
    %v1606 = vpow.pop %v1605
    %v1607 = vmul.f32 %v1592, 1.442695
    %v1608 = vpow.pop %v1607
    %v1609 = vsel %vm1150, %v1594, 0.0
    %1610 = vadd.xlane.f32.xlu0 %v1609
    %v1611 = vpop.xlane.xlu0 %1610
    %v1612 = vsel %vm1150, %v1596, 0.0
    %1613 = vadd.xlane.f32.xlu0 %v1612
    %v1614 = vpop.xlane.xlu0 %1613
    %v1615 = vsel %vm1150, %v1598, 0.0
    %1616 = vadd.xlane.f32.xlu0 %v1615
    %v1617 = vpop.xlane.xlu0 %1616
    %v1618 = vsel %vm1150, %v1600, 0.0
    %1619 = vadd.xlane.f32.xlu0 %v1618
    %v1620 = vpop.xlane.xlu0 %1619
    %v1621 = vsel %vm1150, %v1602, 0.0
    %1622 = vadd.xlane.f32.xlu0 %v1621
    %v1623 = vpop.xlane.xlu0 %1622
    %v1624 = vsel %vm1150, %v1604, 0.0
    %1625 = vadd.xlane.f32.xlu0 %v1624
    %v1626 = vpop.xlane.xlu0 %1625
    %v1627 = vsel %vm1150, %v1606, 0.0
    %1628 = vadd.xlane.f32.xlu0 %v1627
    %v1629 = vpop.xlane.xlu0 %1628
    %v1630 = vsel %vm1150, %v1608, 0.0
    %1631 = vadd.xlane.f32.xlu0 %v1630
    %v1632 = vpop.xlane.xlu0 %1631
    %v1633 = vrcp.pop %v1611
    %v1634 = vrcp.pop %v1614
    %v1635 = vrcp.pop %v1617
    %v1636 = vrcp.pop %v1620
    %v1637 = vrcp.pop %v1623
    %v1638 = vrcp.pop %v1626
    %v1639 = vrcp.pop %v1629
    %v1640 = vrcp.pop %v1632
    %v1641 = vmul.f32 %v1594, %v1633
    %v1642 = vmul.f32 %v1596, %v1634
    %v1643 = vmul.f32 %v1598, %v1635
    %v1644 = vmul.f32 %v1600, %v1636
    %v1645 = vmul.f32 %v1602, %v1637
    %v1646 = vmul.f32 %v1604, %v1638
    %v1647 = vmul.f32 %v1606, %v1639
    %v1648 = vmul.f32 %v1608, %v1640
    %1649 = vrot.lane.b32.xlu0 %v1292, 96
    %v1650 = vpop.permute.xlu0 %1649
    %1651 = vrot.lane.b32.xlu0 %v1295, 96
    %v1652 = vpop.permute.xlu0 %1651
    %v1656 = vsel %vm1150, %v1641, 0
    %1658 = vmatpush.msra.mxu0 0.0
    %1659 = vmatpush.msra.mxu0 0.0
    %1660 = vmatpush.msra.mxu0 0.0
    %1661 = vmatpush.msra.mxu0 0.0
    %1662 = vmatpush.msra.mxu0 0.0
    %1663 = vmatpush.msra.mxu0 0.0
    %1664 = vmatpush.msra.mxu0 0.0
    %1665 = vmatpush.msra.mxu0 0.0
    %1666 = vmatpush.msra.mxu0 0.0
    %1667 = vmatpush.msra.mxu0 0.0
    %1668 = vmatpush.msra.mxu0 0.0
    %1669 = vmatpush.msra.mxu0 0.0
    %1670 = vmatpush.msra.mxu0 0.0
    %1671 = vmatpush.msra.mxu0 0.0
    %1672 = vmatpush.msra.mxu0 %v1652
    %1673 = vmatpush.msra.mxu0 %v1650
    %1674 = vmatmul.f32.gmra.mxu0 %v1656
    %v1675 = vpop.f32.mrf.mxu0
    %v1676 = vadd.f32 0.0, %v1675
    %1677 = vdwg.mxu0
    %1678 = vrot.lane.b32.xlu0 %v1320, 96
    %v1679 = vpop.permute.xlu0 %1678
    %1680 = vrot.lane.b32.xlu0 %v1322, 96
    %v1681 = vpop.permute.xlu0 %1680
    %v1685 = vsel %vm1150, %v1642, 0
    %1687 = vmatpush.msra.mxu0 0.0
    %1688 = vmatpush.msra.mxu0 0.0
    %1689 = vmatpush.msra.mxu0 0.0
    %1690 = vmatpush.msra.mxu0 0.0
    %1691 = vmatpush.msra.mxu0 0.0
    %1692 = vmatpush.msra.mxu0 0.0
    %1693 = vmatpush.msra.mxu0 0.0
    %1694 = vmatpush.msra.mxu0 0.0
    %1695 = vmatpush.msra.mxu0 0.0
    %1696 = vmatpush.msra.mxu0 0.0
    %1697 = vmatpush.msra.mxu0 0.0
    %1698 = vmatpush.msra.mxu0 0.0
    %1699 = vmatpush.msra.mxu0 0.0
    %1700 = vmatpush.msra.mxu0 0.0
    %1701 = vmatpush.msra.mxu0 %v1681
    %1702 = vmatpush.msra.mxu0 %v1679
    %1703 = vmatmul.f32.gmra.mxu0 %v1685
    %v1704 = vpop.f32.mrf.mxu0
    %v1705 = vadd.f32 0.0, %v1704
    %1706 = vdwg.mxu0
    %1707 = vrot.lane.b32.xlu0 %v1324, 96
    %v1708 = vpop.permute.xlu0 %1707
    %1709 = vrot.lane.b32.xlu0 %v1326, 96
    %v1710 = vpop.permute.xlu0 %1709
    %v1714 = vsel %vm1150, %v1643, 0
    %1716 = vmatpush.msra.mxu0 0.0
    %1717 = vmatpush.msra.mxu0 0.0
    %1718 = vmatpush.msra.mxu0 0.0
    %1719 = vmatpush.msra.mxu0 0.0
    %1720 = vmatpush.msra.mxu0 0.0
    %1721 = vmatpush.msra.mxu0 0.0
    %1722 = vmatpush.msra.mxu0 0.0
    %1723 = vmatpush.msra.mxu0 0.0
    %1724 = vmatpush.msra.mxu0 0.0
    %1725 = vmatpush.msra.mxu0 0.0
    %1726 = vmatpush.msra.mxu0 0.0
    %1727 = vmatpush.msra.mxu0 0.0
    %1728 = vmatpush.msra.mxu0 0.0
    %1729 = vmatpush.msra.mxu0 0.0
    %1730 = vmatpush.msra.mxu0 %v1710
    %1731 = vmatpush.msra.mxu0 %v1708
    %1732 = vmatmul.f32.gmra.mxu0 %v1714
    %v1733 = vpop.f32.mrf.mxu0
    %v1734 = vadd.f32 0.0, %v1733
    %1735 = vdwg.mxu0
    %1736 = vrot.lane.b32.xlu0 %v1328, 96
    %v1737 = vpop.permute.xlu0 %1736
    %1738 = vrot.lane.b32.xlu0 %v1330, 96
    %v1739 = vpop.permute.xlu0 %1738
    %v1743 = vsel %vm1150, %v1644, 0
    %1745 = vmatpush.msra.mxu0 0.0
    %1746 = vmatpush.msra.mxu0 0.0
    %1747 = vmatpush.msra.mxu0 0.0
    %1748 = vmatpush.msra.mxu0 0.0
    %1749 = vmatpush.msra.mxu0 0.0
    %1750 = vmatpush.msra.mxu0 0.0
    %1751 = vmatpush.msra.mxu0 0.0
    %1752 = vmatpush.msra.mxu0 0.0
    %1753 = vmatpush.msra.mxu0 0.0
    %1754 = vmatpush.msra.mxu0 0.0
    %1755 = vmatpush.msra.mxu0 0.0
    %1756 = vmatpush.msra.mxu0 0.0
    %1757 = vmatpush.msra.mxu0 0.0
    %1758 = vmatpush.msra.mxu0 0.0
    %1759 = vmatpush.msra.mxu0 %v1739
    %1760 = vmatpush.msra.mxu0 %v1737
    %1761 = vmatmul.f32.gmra.mxu0 %v1743
    %v1762 = vpop.f32.mrf.mxu0
    %v1763 = vadd.f32 0.0, %v1762
    %1764 = vdwg.mxu0
    %1765 = vrot.lane.b32.xlu0 %v1298, 96
    %v1766 = vpop.permute.xlu0 %1765
    %1767 = vrot.lane.b32.xlu0 %v1301, 96
    %v1768 = vpop.permute.xlu0 %1767
    %v1772 = vsel %vm1150, %v1645, 0
    %1774 = vmatpush.msra.mxu0 0.0
    %1775 = vmatpush.msra.mxu0 0.0
    %1776 = vmatpush.msra.mxu0 0.0
    %1777 = vmatpush.msra.mxu0 0.0
    %1778 = vmatpush.msra.mxu0 0.0
    %1779 = vmatpush.msra.mxu0 0.0
    %1780 = vmatpush.msra.mxu0 0.0
    %1781 = vmatpush.msra.mxu0 0.0
    %1782 = vmatpush.msra.mxu0 0.0
    %1783 = vmatpush.msra.mxu0 0.0
    %1784 = vmatpush.msra.mxu0 0.0
    %1785 = vmatpush.msra.mxu0 0.0
    %1786 = vmatpush.msra.mxu0 0.0
    %1787 = vmatpush.msra.mxu0 0.0
    %1788 = vmatpush.msra.mxu0 %v1768
    %1789 = vmatpush.msra.mxu0 %v1766
    %1790 = vmatmul.f32.gmra.mxu0 %v1772
    %v1791 = vpop.f32.mrf.mxu0
    %v1792 = vadd.f32 0.0, %v1791
    %1793 = vdwg.mxu0
    %1794 = vrot.lane.b32.xlu0 %v1334, 96
    %v1795 = vpop.permute.xlu0 %1794
    %1796 = vrot.lane.b32.xlu0 %v1336, 96
    %v1797 = vpop.permute.xlu0 %1796
    %v1801 = vsel %vm1150, %v1646, 0
    %1803 = vmatpush.msra.mxu0 0.0
    %1804 = vmatpush.msra.mxu0 0.0
    %1805 = vmatpush.msra.mxu0 0.0
    %1806 = vmatpush.msra.mxu0 0.0
    %1807 = vmatpush.msra.mxu0 0.0
    %1808 = vmatpush.msra.mxu0 0.0
    %1809 = vmatpush.msra.mxu0 0.0
    %1810 = vmatpush.msra.mxu0 0.0
    %1811 = vmatpush.msra.mxu0 0.0
    %1812 = vmatpush.msra.mxu0 0.0
    %1813 = vmatpush.msra.mxu0 0.0
    %1814 = vmatpush.msra.mxu0 0.0
    %1815 = vmatpush.msra.mxu0 0.0
    %1816 = vmatpush.msra.mxu0 0.0
    %1817 = vmatpush.msra.mxu0 %v1797
    %1818 = vmatpush.msra.mxu0 %v1795
    %1819 = vmatmul.f32.gmra.mxu0 %v1801
    %v1820 = vpop.f32.mrf.mxu0
    %v1821 = vadd.f32 0.0, %v1820
    %1822 = vdwg.mxu0
    %1823 = vrot.lane.b32.xlu0 %v1338, 96
    %v1824 = vpop.permute.xlu0 %1823
    %1825 = vrot.lane.b32.xlu0 %v1340, 96
    %v1826 = vpop.permute.xlu0 %1825
    %v1830 = vsel %vm1150, %v1647, 0
    %1832 = vmatpush.msra.mxu0 0.0
    %1833 = vmatpush.msra.mxu0 0.0
    %1834 = vmatpush.msra.mxu0 0.0
    %1835 = vmatpush.msra.mxu0 0.0
    %1836 = vmatpush.msra.mxu0 0.0
    %1837 = vmatpush.msra.mxu0 0.0
    %1838 = vmatpush.msra.mxu0 0.0
    %1839 = vmatpush.msra.mxu0 0.0
    %1840 = vmatpush.msra.mxu0 0.0
    %1841 = vmatpush.msra.mxu0 0.0
    %1842 = vmatpush.msra.mxu0 0.0
    %1843 = vmatpush.msra.mxu0 0.0
    %1844 = vmatpush.msra.mxu0 0.0
    %1845 = vmatpush.msra.mxu0 0.0
    %1846 = vmatpush.msra.mxu0 %v1826
    %1847 = vmatpush.msra.mxu0 %v1824
    %1848 = vmatmul.f32.gmra.mxu0 %v1830
    %v1849 = vpop.f32.mrf.mxu0
    %v1850 = vadd.f32 0.0, %v1849
    %1851 = vdwg.mxu0
    %1852 = vrot.lane.b32.xlu0 %v1342, 96
    %v1853 = vpop.permute.xlu0 %1852
    %1854 = vrot.lane.b32.xlu0 %v1344, 96
    %v1855 = vpop.permute.xlu0 %1854
    %v1859 = vsel %vm1150, %v1648, 0
    %1861 = vmatpush.msra.mxu0 0.0
    %1862 = vmatpush.msra.mxu0 0.0
    %1863 = vmatpush.msra.mxu0 0.0
    %1864 = vmatpush.msra.mxu0 0.0
    %1865 = vmatpush.msra.mxu0 0.0
    %1866 = vmatpush.msra.mxu0 0.0
    %1867 = vmatpush.msra.mxu0 0.0
    %1868 = vmatpush.msra.mxu0 0.0
    %1869 = vmatpush.msra.mxu0 0.0
    %1870 = vmatpush.msra.mxu0 0.0
    %1871 = vmatpush.msra.mxu0 0.0
    %1872 = vmatpush.msra.mxu0 0.0
    %1873 = vmatpush.msra.mxu0 0.0
    %1874 = vmatpush.msra.mxu0 0.0
    %1875 = vmatpush.msra.mxu0 %v1855
    %1876 = vmatpush.msra.mxu0 %v1853
    %1877 = vmatmul.f32.gmra.mxu0 %v1859
    %v1878 = vpop.f32.mrf.mxu0
    %v1879 = vadd.f32 0.0, %v1878
    %1880 = vdwg.mxu0
    %1882 = vrot.lane.b32.xlu0 %v1705, 8
    %v1883 = vpop.permute.xlu0 %1882
    %1886 = vrot.lane.b32.xlu0 %v1734, 16
    %v1887 = vpop.permute.xlu0 %1886
    %1890 = vrot.lane.b32.xlu0 %v1763, 24
    %v1891 = vpop.permute.xlu0 %1890
    %v1893 = vsel %vm443, %v1676, %v1883
    %v1894 = vsel %vm1150, %v1893, %v1887
    %v1895 = vsel %vm1153, %v1894, %v1891
    %1897 = vrot.lane.b32.xlu0 %v1821, 8
    %v1898 = vpop.permute.xlu0 %1897
    %1901 = vrot.lane.b32.xlu0 %v1850, 16
    %v1902 = vpop.permute.xlu0 %1901
    %1905 = vrot.lane.b32.xlu0 %v1879, 24
    %v1906 = vpop.permute.xlu0 %1905
    %v1908 = vsel %vm443, %v1792, %v1898
    %v1909 = vsel %vm1150, %v1908, %v1902
    %v1910 = vsel %vm1153, %v1909, %v1906
    %v1912 = vperm.slane %v1244, 0
    %v1915 = vsel %vm327, %v1895, 0
    %v1918 = vsel %vm327, %v1910, 0
    %1920 = vmatpush.msra.mxu0 0.0
    %1921 = vmatpush.msra.mxu0 0.0
    %1922 = vmatpush.msra.mxu0 0.0
    %1923 = vmatpush.msra.mxu0 0.0
    %1924 = vmatpush.msra.mxu0 0.0
    %1925 = vmatpush.msra.mxu0 0.0
    %1926 = vmatpush.msra.mxu0 0.0
    %1927 = vmatpush.msra.mxu0 0.0
    %1928 = vmatpush.msra.mxu0 0.0
    %1929 = vmatpush.msra.mxu0 0.0
    %1930 = vmatpush.msra.mxu0 0.0
    %1931 = vmatpush.msra.mxu0 0.0
    %1932 = vmatpush.msra.mxu0 %v1243
    %1933 = vmatpush.msra.mxu0 %v1242
    %1934 = vmatpush.msra.mxu0 %v1241
    %1935 = vmatpush.msra.mxu0 %v1240
    %1936 = vmatmul.f32.gmra.mxu0 %v1915
    %v1937 = vpop.f32.mrf.mxu0
    %v1938 = vadd.f32 %v1912, %v1937
    %1939 = vmatmul.f32.gmra.mxu0 %v1918
    %v1940 = vpop.f32.mrf.mxu0
    %v1941 = vadd.f32 %v1912, %v1940
    %1942 = vdwg.mxu0
    %v1943 = vld [vmem:[#allocation8] sm:$0xff]
    %v1944 = vld [vmem:[#allocation8 + $0x8] sm:$0xff]
    %v1945 = vld [vmem:[#allocation8 + $0x10] sm:$0xff]
    %v1946 = vld [vmem:[#allocation8 + $0x18] sm:$0xff]
    %v1947 = vld [vmem:[%s31] sm:$0x1]
    %v1948 = vld [vmem:[#allocation10] sm:$0xff]
    %v1949 = vld [vmem:[#allocation10 + $0x8] sm:$0xff]
    %v1950 = vld [vmem:[#allocation10 + $0x10] sm:$0xff]
    %v1951 = vld [vmem:[#allocation10 + $0x18] sm:$0xff]
    %v1952 = vld [vmem:[%s35] sm:$0x1]
    %v1953 = vld [vmem:[#allocation11] sm:$0xff]
    %v1954 = vld [vmem:[#allocation11 + $0x8] sm:$0xff]
    %v1955 = vld [vmem:[#allocation11 + $0x10] sm:$0xff]
    %v1956 = vld [vmem:[#allocation11 + $0x18] sm:$0xff]
    %v1957 = vld [vmem:[%s39] sm:$0x1]
    %v1958 = vld [vmem:[%s41] sm:$0xff]
    %v1959 = vld [vmem:[%s41 + $0x8] sm:$0xff]
    %v1960 = vld [vmem:[%s41 + $0x10] sm:$0xff]
    %v1961 = vld [vmem:[%s41 + $0x18] sm:$0xff]
    %v1962 = vld [vmem:[%s41 + $0x20] sm:$0xff]
    %v1963 = vld [vmem:[%s41 + $0x28] sm:$0xff]
    %v1964 = vld [vmem:[%s41 + $0x30] sm:$0xff]
    %v1965 = vld [vmem:[%s41 + $0x38] sm:$0xff]
    %v1966 = vld [vmem:[%s43] sm:$0x1]
    %v1967 = vld [vmem:[%s45] sm:$0x1]
    %v1968 = vld [vmem:[%s47] sm:$0x1]
    %v1969 = vld [vmem:[%s49] sm:$0x1]
    %v1970 = vld [vmem:[%s51] sm:$0x1]
    %v1972 = vperm.slane %v1947, 0
    %v1975 = vsel %vm327, %v1219, 0
    %v1978 = vsel %vm327, %v1222, 0
    %v1981 = vsel %vm327, %v1225, 0
    %v1984 = vsel %vm327, %v1228, 0
    %1986 = vmatpush.msra.mxu0 0.0
    %1987 = vmatpush.msra.mxu0 0.0
    %1988 = vmatpush.msra.mxu0 0.0
    %1989 = vmatpush.msra.mxu0 0.0
    %1990 = vmatpush.msra.mxu0 0.0
    %1991 = vmatpush.msra.mxu0 0.0
    %1992 = vmatpush.msra.mxu0 0.0
    %1993 = vmatpush.msra.mxu0 0.0
    %1994 = vmatpush.msra.mxu0 0.0
    %1995 = vmatpush.msra.mxu0 0.0
    %1996 = vmatpush.msra.mxu0 0.0
    %1997 = vmatpush.msra.mxu0 0.0
    %1998 = vmatpush.msra.mxu0 %v1946
    %1999 = vmatpush.msra.mxu0 %v1945
    %2000 = vmatpush.msra.mxu0 %v1944
    %2001 = vmatpush.msra.mxu0 %v1943
    %2002 = vmatmul.f32.gmra.mxu0 %v1975
    %v2003 = vpop.f32.mrf.mxu0
    %v2004 = vadd.f32 %v1972, %v2003
    %2005 = vmatmul.f32.gmra.mxu0 %v1978
    %v2006 = vpop.f32.mrf.mxu0
    %v2007 = vadd.f32 %v1972, %v2006
    %2008 = vmatmul.f32.gmra.mxu0 %v1981
    %v2009 = vpop.f32.mrf.mxu0
    %v2010 = vadd.f32 %v1972, %v2009
    %2011 = vmatmul.f32.gmra.mxu0 %v1984
    %v2012 = vpop.f32.mrf.mxu0
    %v2013 = vadd.f32 %v1972, %v2012
    %2014 = vdwg.mxu0
    %2017 = vrot.lane.b32.xlu0 %v2004, 120
    %v2018 = vpop.permute.xlu0 %2017
    %2019 = vrot.lane.b32.xlu0 %v2007, 120
    %v2020 = vpop.permute.xlu0 %2019
    %2021 = vrot.lane.b32.xlu0 %v2004, 112
    %v2022 = vpop.permute.xlu0 %2021
    %2023 = vrot.lane.b32.xlu0 %v2007, 112
    %v2024 = vpop.permute.xlu0 %2023
    %2025 = vrot.lane.b32.xlu0 %v2004, 104
    %v2026 = vpop.permute.xlu0 %2025
    %2027 = vrot.lane.b32.xlu0 %v2007, 104
    %v2028 = vpop.permute.xlu0 %2027
    %2031 = vrot.lane.b32.xlu0 %v2010, 120
    %v2032 = vpop.permute.xlu0 %2031
    %2033 = vrot.lane.b32.xlu0 %v2013, 120
    %v2034 = vpop.permute.xlu0 %2033
    %2035 = vrot.lane.b32.xlu0 %v2010, 112
    %v2036 = vpop.permute.xlu0 %2035
    %2037 = vrot.lane.b32.xlu0 %v2013, 112
    %v2038 = vpop.permute.xlu0 %2037
    %2039 = vrot.lane.b32.xlu0 %v2010, 104
    %v2040 = vpop.permute.xlu0 %2039
    %2041 = vrot.lane.b32.xlu0 %v2013, 104
    %v2042 = vpop.permute.xlu0 %2041
    %2043 = vrot.lane.b32.xlu0 %v2004, 96
    %v2044 = vpop.permute.xlu0 %2043
    %2045 = vrot.lane.b32.xlu0 %v2007, 96
    %v2046 = vpop.permute.xlu0 %2045
    %v2047 = vsel %vm443, %v2004, 0
    %v2049 = vsel %vm443, %v2007, 0
    %v2051 = vsel %vm443, %v2044, 0
    %v2053 = vsel %vm443, %v2046, 0
    %2055 = vmatpush.xpose.msra.mxu0 0.0
    %2056 = vmatpush.xpose.msra.mxu0 0.0
    %2057 = vmatpush.xpose.msra.mxu0 0.0
    %2058 = vmatpush.xpose.msra.mxu0 0.0
    %2059 = vmatpush.xpose.msra.mxu0 0.0
    %2060 = vmatpush.xpose.msra.mxu0 0.0
    %2061 = vmatpush.xpose.msra.mxu0 0.0
    %2062 = vmatpush.xpose.msra.mxu0 0.0
    %2063 = vmatpush.xpose.msra.mxu0 0.0
    %2064 = vmatpush.xpose.msra.mxu0 0.0
    %2065 = vmatpush.xpose.msra.mxu0 0.0
    %2066 = vmatpush.xpose.msra.mxu0 0.0
    %2067 = vmatpush.xpose.msra.mxu0 0.0
    %2068 = vmatpush.xpose.msra.mxu0 0.0
    %2069 = vmatpush.xpose.msra.mxu0 %v2053
    %2070 = vmatpush.xpose.msra.mxu0 %v2051
    %2071 = vmatmul.f32.gmra.mxu0 %v2047
    %v2072 = vpop.f32.mrf.mxu0
    %v2073 = vadd.f32 0.0, %v2072
    %2074 = vmatmul.f32.gmra.mxu0 %v2049
    %v2075 = vpop.f32.mrf.mxu0
    %v2076 = vadd.f32 0.0, %v2075
    %2077 = vdwg.mxu0
    %2078 = vrot.lane.b32.xlu0 %v2018, 96
    %v2079 = vpop.permute.xlu0 %2078
    %2080 = vrot.lane.b32.xlu0 %v2020, 96
    %v2081 = vpop.permute.xlu0 %2080
    %v2082 = vsel %vm443, %v2018, 0
    %v2084 = vsel %vm443, %v2020, 0
    %v2086 = vsel %vm443, %v2079, 0
    %v2088 = vsel %vm443, %v2081, 0
    %2090 = vmatpush.xpose.msra.mxu0 0.0
    %2091 = vmatpush.xpose.msra.mxu0 0.0
    %2092 = vmatpush.xpose.msra.mxu0 0.0
    %2093 = vmatpush.xpose.msra.mxu0 0.0
    %2094 = vmatpush.xpose.msra.mxu0 0.0
    %2095 = vmatpush.xpose.msra.mxu0 0.0
    %2096 = vmatpush.xpose.msra.mxu0 0.0
    %2097 = vmatpush.xpose.msra.mxu0 0.0
    %2098 = vmatpush.xpose.msra.mxu0 0.0
    %2099 = vmatpush.xpose.msra.mxu0 0.0
    %2100 = vmatpush.xpose.msra.mxu0 0.0
    %2101 = vmatpush.xpose.msra.mxu0 0.0
    %2102 = vmatpush.xpose.msra.mxu0 0.0
    %2103 = vmatpush.xpose.msra.mxu0 0.0
    %2104 = vmatpush.xpose.msra.mxu0 %v2088
    %2105 = vmatpush.xpose.msra.mxu0 %v2086
    %2106 = vmatmul.f32.gmra.mxu0 %v2082
    %v2107 = vpop.f32.mrf.mxu0
    %v2108 = vadd.f32 0.0, %v2107
    %2109 = vmatmul.f32.gmra.mxu0 %v2084
    %v2110 = vpop.f32.mrf.mxu0
    %v2111 = vadd.f32 0.0, %v2110
    %2112 = vdwg.mxu0
    %2113 = vrot.lane.b32.xlu0 %v2022, 96
    %v2114 = vpop.permute.xlu0 %2113
    %2115 = vrot.lane.b32.xlu0 %v2024, 96
    %v2116 = vpop.permute.xlu0 %2115
    %v2117 = vsel %vm443, %v2022, 0
    %v2119 = vsel %vm443, %v2024, 0
    %v2121 = vsel %vm443, %v2114, 0
    %v2123 = vsel %vm443, %v2116, 0
    %2125 = vmatpush.xpose.msra.mxu0 0.0
    %2126 = vmatpush.xpose.msra.mxu0 0.0
    %2127 = vmatpush.xpose.msra.mxu0 0.0
    %2128 = vmatpush.xpose.msra.mxu0 0.0
    %2129 = vmatpush.xpose.msra.mxu0 0.0
    %2130 = vmatpush.xpose.msra.mxu0 0.0
    %2131 = vmatpush.xpose.msra.mxu0 0.0
    %2132 = vmatpush.xpose.msra.mxu0 0.0
    %2133 = vmatpush.xpose.msra.mxu0 0.0
    %2134 = vmatpush.xpose.msra.mxu0 0.0
    %2135 = vmatpush.xpose.msra.mxu0 0.0
    %2136 = vmatpush.xpose.msra.mxu0 0.0
    %2137 = vmatpush.xpose.msra.mxu0 0.0
    %2138 = vmatpush.xpose.msra.mxu0 0.0
    %2139 = vmatpush.xpose.msra.mxu0 %v2123
    %2140 = vmatpush.xpose.msra.mxu0 %v2121
    %2141 = vmatmul.f32.gmra.mxu0 %v2117
    %v2142 = vpop.f32.mrf.mxu0
    %v2143 = vadd.f32 0.0, %v2142
    %2144 = vmatmul.f32.gmra.mxu0 %v2119
    %v2145 = vpop.f32.mrf.mxu0
    %v2146 = vadd.f32 0.0, %v2145
    %2147 = vdwg.mxu0
    %2148 = vrot.lane.b32.xlu0 %v2026, 96
    %v2149 = vpop.permute.xlu0 %2148
    %2150 = vrot.lane.b32.xlu0 %v2028, 96
    %v2151 = vpop.permute.xlu0 %2150
    %v2152 = vsel %vm443, %v2026, 0
    %v2154 = vsel %vm443, %v2028, 0
    %v2156 = vsel %vm443, %v2149, 0
    %v2158 = vsel %vm443, %v2151, 0
    %2160 = vmatpush.xpose.msra.mxu0 0.0
    %2161 = vmatpush.xpose.msra.mxu0 0.0
    %2162 = vmatpush.xpose.msra.mxu0 0.0
    %2163 = vmatpush.xpose.msra.mxu0 0.0
    %2164 = vmatpush.xpose.msra.mxu0 0.0
    %2165 = vmatpush.xpose.msra.mxu0 0.0
    %2166 = vmatpush.xpose.msra.mxu0 0.0
    %2167 = vmatpush.xpose.msra.mxu0 0.0
    %2168 = vmatpush.xpose.msra.mxu0 0.0
    %2169 = vmatpush.xpose.msra.mxu0 0.0
    %2170 = vmatpush.xpose.msra.mxu0 0.0
    %2171 = vmatpush.xpose.msra.mxu0 0.0
    %2172 = vmatpush.xpose.msra.mxu0 0.0
    %2173 = vmatpush.xpose.msra.mxu0 0.0
    %2174 = vmatpush.xpose.msra.mxu0 %v2158
    %2175 = vmatpush.xpose.msra.mxu0 %v2156
    %2176 = vmatmul.f32.gmra.mxu0 %v2152
    %v2177 = vpop.f32.mrf.mxu0
    %v2178 = vadd.f32 0.0, %v2177
    %2179 = vmatmul.f32.gmra.mxu0 %v2154
    %v2180 = vpop.f32.mrf.mxu0
    %v2181 = vadd.f32 0.0, %v2180
    %2182 = vdwg.mxu0
    %2183 = vrot.lane.b32.xlu0 %v2010, 96
    %v2184 = vpop.permute.xlu0 %2183
    %2185 = vrot.lane.b32.xlu0 %v2013, 96
    %v2186 = vpop.permute.xlu0 %2185
    %v2187 = vsel %vm443, %v2010, 0
    %v2189 = vsel %vm443, %v2013, 0
    %v2191 = vsel %vm443, %v2184, 0
    %v2193 = vsel %vm443, %v2186, 0
    %2195 = vmatpush.xpose.msra.mxu0 0.0
    %2196 = vmatpush.xpose.msra.mxu0 0.0
    %2197 = vmatpush.xpose.msra.mxu0 0.0
    %2198 = vmatpush.xpose.msra.mxu0 0.0
    %2199 = vmatpush.xpose.msra.mxu0 0.0
    %2200 = vmatpush.xpose.msra.mxu0 0.0
    %2201 = vmatpush.xpose.msra.mxu0 0.0
    %2202 = vmatpush.xpose.msra.mxu0 0.0
    %2203 = vmatpush.xpose.msra.mxu0 0.0
    %2204 = vmatpush.xpose.msra.mxu0 0.0
    %2205 = vmatpush.xpose.msra.mxu0 0.0
    %2206 = vmatpush.xpose.msra.mxu0 0.0
    %2207 = vmatpush.xpose.msra.mxu0 0.0
    %2208 = vmatpush.xpose.msra.mxu0 0.0
    %2209 = vmatpush.xpose.msra.mxu0 %v2193
    %2210 = vmatpush.xpose.msra.mxu0 %v2191
    %2211 = vmatmul.f32.gmra.mxu0 %v2187
    %v2212 = vpop.f32.mrf.mxu0
    %v2213 = vadd.f32 0.0, %v2212
    %2214 = vmatmul.f32.gmra.mxu0 %v2189
    %v2215 = vpop.f32.mrf.mxu0
    %v2216 = vadd.f32 0.0, %v2215
    %2217 = vdwg.mxu0
    %2218 = vrot.lane.b32.xlu0 %v2032, 96
    %v2219 = vpop.permute.xlu0 %2218
    %2220 = vrot.lane.b32.xlu0 %v2034, 96
    %v2221 = vpop.permute.xlu0 %2220
    %v2222 = vsel %vm443, %v2032, 0
    %v2224 = vsel %vm443, %v2034, 0
    %v2226 = vsel %vm443, %v2219, 0
    %v2228 = vsel %vm443, %v2221, 0
    %2230 = vmatpush.xpose.msra.mxu0 0.0
    %2231 = vmatpush.xpose.msra.mxu0 0.0
    %2232 = vmatpush.xpose.msra.mxu0 0.0
    %2233 = vmatpush.xpose.msra.mxu0 0.0
    %2234 = vmatpush.xpose.msra.mxu0 0.0
    %2235 = vmatpush.xpose.msra.mxu0 0.0
    %2236 = vmatpush.xpose.msra.mxu0 0.0
    %2237 = vmatpush.xpose.msra.mxu0 0.0
    %2238 = vmatpush.xpose.msra.mxu0 0.0
    %2239 = vmatpush.xpose.msra.mxu0 0.0
    %2240 = vmatpush.xpose.msra.mxu0 0.0
    %2241 = vmatpush.xpose.msra.mxu0 0.0
    %2242 = vmatpush.xpose.msra.mxu0 0.0
    %2243 = vmatpush.xpose.msra.mxu0 0.0
    %2244 = vmatpush.xpose.msra.mxu0 %v2228
    %2245 = vmatpush.xpose.msra.mxu0 %v2226
    %2246 = vmatmul.f32.gmra.mxu0 %v2222
    %v2247 = vpop.f32.mrf.mxu0
    %v2248 = vadd.f32 0.0, %v2247
    %2249 = vmatmul.f32.gmra.mxu0 %v2224
    %v2250 = vpop.f32.mrf.mxu0
    %v2251 = vadd.f32 0.0, %v2250
    %2252 = vdwg.mxu0
    %2253 = vrot.lane.b32.xlu0 %v2036, 96
    %v2254 = vpop.permute.xlu0 %2253
    %2255 = vrot.lane.b32.xlu0 %v2038, 96
    %v2256 = vpop.permute.xlu0 %2255
    %v2257 = vsel %vm443, %v2036, 0
    %v2259 = vsel %vm443, %v2038, 0
    %v2261 = vsel %vm443, %v2254, 0
    %v2263 = vsel %vm443, %v2256, 0
    %2265 = vmatpush.xpose.msra.mxu0 0.0
    %2266 = vmatpush.xpose.msra.mxu0 0.0
    %2267 = vmatpush.xpose.msra.mxu0 0.0
    %2268 = vmatpush.xpose.msra.mxu0 0.0
    %2269 = vmatpush.xpose.msra.mxu0 0.0
    %2270 = vmatpush.xpose.msra.mxu0 0.0
    %2271 = vmatpush.xpose.msra.mxu0 0.0
    %2272 = vmatpush.xpose.msra.mxu0 0.0
    %2273 = vmatpush.xpose.msra.mxu0 0.0
    %2274 = vmatpush.xpose.msra.mxu0 0.0
    %2275 = vmatpush.xpose.msra.mxu0 0.0
    %2276 = vmatpush.xpose.msra.mxu0 0.0
    %2277 = vmatpush.xpose.msra.mxu0 0.0
    %2278 = vmatpush.xpose.msra.mxu0 0.0
    %2279 = vmatpush.xpose.msra.mxu0 %v2263
    %2280 = vmatpush.xpose.msra.mxu0 %v2261
    %2281 = vmatmul.f32.gmra.mxu0 %v2257
    %v2282 = vpop.f32.mrf.mxu0
    %v2283 = vadd.f32 0.0, %v2282
    %2284 = vmatmul.f32.gmra.mxu0 %v2259
    %v2285 = vpop.f32.mrf.mxu0
    %v2286 = vadd.f32 0.0, %v2285
    %2287 = vdwg.mxu0
    %2288 = vrot.lane.b32.xlu0 %v2040, 96
    %v2289 = vpop.permute.xlu0 %2288
    %2290 = vrot.lane.b32.xlu0 %v2042, 96
    %v2291 = vpop.permute.xlu0 %2290
    %v2292 = vsel %vm443, %v2040, 0
    %v2294 = vsel %vm443, %v2042, 0
    %v2296 = vsel %vm443, %v2289, 0
    %v2298 = vsel %vm443, %v2291, 0
    %2300 = vmatpush.xpose.msra.mxu0 0.0
    %2301 = vmatpush.xpose.msra.mxu0 0.0
    %2302 = vmatpush.xpose.msra.mxu0 0.0
    %2303 = vmatpush.xpose.msra.mxu0 0.0
    %2304 = vmatpush.xpose.msra.mxu0 0.0
    %2305 = vmatpush.xpose.msra.mxu0 0.0
    %2306 = vmatpush.xpose.msra.mxu0 0.0
    %2307 = vmatpush.xpose.msra.mxu0 0.0
    %2308 = vmatpush.xpose.msra.mxu0 0.0
    %2309 = vmatpush.xpose.msra.mxu0 0.0
    %2310 = vmatpush.xpose.msra.mxu0 0.0
    %2311 = vmatpush.xpose.msra.mxu0 0.0
    %2312 = vmatpush.xpose.msra.mxu0 0.0
    %2313 = vmatpush.xpose.msra.mxu0 0.0
    %2314 = vmatpush.xpose.msra.mxu0 %v2298
    %2315 = vmatpush.xpose.msra.mxu0 %v2296
    %2316 = vmatmul.f32.gmra.mxu0 %v2292
    %v2317 = vpop.f32.mrf.mxu0
    %v2318 = vadd.f32 0.0, %v2317
    %2319 = vmatmul.f32.gmra.mxu0 %v2294
    %v2320 = vpop.f32.mrf.mxu0
    %v2321 = vadd.f32 0.0, %v2320
    %2322 = vdwg.mxu0
    %v2323 = vmul.f32 %v2073, 0.35355338
    %v2324 = vmul.f32 %v2076, 0.35355338
    %v2325 = vmul.f32 %v2108, 0.35355338
    %v2326 = vmul.f32 %v2111, 0.35355338
    %v2327 = vmul.f32 %v2143, 0.35355338
    %v2328 = vmul.f32 %v2146, 0.35355338
    %v2329 = vmul.f32 %v2178, 0.35355338
    %v2330 = vmul.f32 %v2181, 0.35355338
    %v2331 = vmul.f32 %v2213, 0.35355338
    %v2332 = vmul.f32 %v2216, 0.35355338
    %v2333 = vmul.f32 %v2248, 0.35355338
    %v2334 = vmul.f32 %v2251, 0.35355338
    %v2335 = vmul.f32 %v2283, 0.35355338
    %v2336 = vmul.f32 %v2286, 0.35355338
    %v2337 = vmul.f32 %v2318, 0.35355338
    %v2338 = vmul.f32 %v2321, 0.35355338
    %v2339 = vsel %vm1150, %v2323, -inf
    %2340 = vmax.xlane.f32.xlu0 %v2339
    %v2341 = vpop.xlane.xlu0 %2340
    %v2342 = vsel %vm1150, %v2324, -inf
    %2343 = vmax.xlane.f32.xlu0 %v2342
    %v2344 = vpop.xlane.xlu0 %2343
    %v2345 = vsel %vm1150, %v2325, -inf
    %2346 = vmax.xlane.f32.xlu0 %v2345
    %v2347 = vpop.xlane.xlu0 %2346
    %v2348 = vsel %vm1150, %v2326, -inf
    %2349 = vmax.xlane.f32.xlu0 %v2348
    %v2350 = vpop.xlane.xlu0 %2349
    %v2351 = vsel %vm1150, %v2327, -inf
    %2352 = vmax.xlane.f32.xlu0 %v2351
    %v2353 = vpop.xlane.xlu0 %2352
    %v2354 = vsel %vm1150, %v2328, -inf
    %2355 = vmax.xlane.f32.xlu0 %v2354
    %v2356 = vpop.xlane.xlu0 %2355
    %v2357 = vsel %vm1150, %v2329, -inf
    %2358 = vmax.xlane.f32.xlu0 %v2357
    %v2359 = vpop.xlane.xlu0 %2358
    %v2360 = vsel %vm1150, %v2330, -inf
    %2361 = vmax.xlane.f32.xlu0 %v2360
    %v2362 = vpop.xlane.xlu0 %2361
    %v2363 = vsel %vm1150, %v2331, -inf
    %2364 = vmax.xlane.f32.xlu0 %v2363
    %v2365 = vpop.xlane.xlu0 %2364
    %v2366 = vsel %vm1150, %v2332, -inf
    %2367 = vmax.xlane.f32.xlu0 %v2366
    %v2368 = vpop.xlane.xlu0 %2367
    %v2369 = vsel %vm1150, %v2333, -inf
    %2370 = vmax.xlane.f32.xlu0 %v2369
    %v2371 = vpop.xlane.xlu0 %2370
    %v2372 = vsel %vm1150, %v2334, -inf
    %2373 = vmax.xlane.f32.xlu0 %v2372
    %v2374 = vpop.xlane.xlu0 %2373
    %v2375 = vsel %vm1150, %v2335, -inf
    %2376 = vmax.xlane.f32.xlu0 %v2375
    %v2377 = vpop.xlane.xlu0 %2376
    %v2378 = vsel %vm1150, %v2336, -inf
    %2379 = vmax.xlane.f32.xlu0 %v2378
    %v2380 = vpop.xlane.xlu0 %2379
    %v2381 = vsel %vm1150, %v2337, -inf
    %2382 = vmax.xlane.f32.xlu0 %v2381
    %v2383 = vpop.xlane.xlu0 %2382
    %v2384 = vsel %vm1150, %v2338, -inf
    %2385 = vmax.xlane.f32.xlu0 %v2384
    %v2386 = vpop.xlane.xlu0 %2385
    %v2387 = vsub.f32 %v2323, %v2341
    %v2388 = vsub.f32 %v2324, %v2344
    %v2389 = vsub.f32 %v2325, %v2347
    %v2390 = vsub.f32 %v2326, %v2350
    %v2391 = vsub.f32 %v2327, %v2353
    %v2392 = vsub.f32 %v2328, %v2356
    %v2393 = vsub.f32 %v2329, %v2359
    %v2394 = vsub.f32 %v2330, %v2362
    %v2395 = vsub.f32 %v2331, %v2365
    %v2396 = vsub.f32 %v2332, %v2368
    %v2397 = vsub.f32 %v2333, %v2371
    %v2398 = vsub.f32 %v2334, %v2374
    %v2399 = vsub.f32 %v2335, %v2377
    %v2400 = vsub.f32 %v2336, %v2380
    %v2401 = vsub.f32 %v2337, %v2383
    %v2402 = vsub.f32 %v2338, %v2386
    %v2403 = vmul.f32 %v2387, 1.442695
    %v2404 = vpow.pop %v2403
    %v2405 = vmul.f32 %v2388, 1.442695
    %v2406 = vpow.pop %v2405
    %v2407 = vmul.f32 %v2389, 1.442695
    %v2408 = vpow.pop %v2407
    %v2409 = vmul.f32 %v2390, 1.442695
    %v2410 = vpow.pop %v2409
    %v2411 = vmul.f32 %v2391, 1.442695
    %v2412 = vpow.pop %v2411
    %v2413 = vmul.f32 %v2392, 1.442695
    %v2414 = vpow.pop %v2413
    %v2415 = vmul.f32 %v2393, 1.442695
    %v2416 = vpow.pop %v2415
    %v2417 = vmul.f32 %v2394, 1.442695
    %v2418 = vpow.pop %v2417
    %v2419 = vmul.f32 %v2395, 1.442695
    %v2420 = vpow.pop %v2419
    %v2421 = vmul.f32 %v2396, 1.442695
    %v2422 = vpow.pop %v2421
    %v2423 = vmul.f32 %v2397, 1.442695
    %v2424 = vpow.pop %v2423
    %v2425 = vmul.f32 %v2398, 1.442695
    %v2426 = vpow.pop %v2425
    %v2427 = vmul.f32 %v2399, 1.442695
    %v2428 = vpow.pop %v2427
    %v2429 = vmul.f32 %v2400, 1.442695
    %v2430 = vpow.pop %v2429
    %v2431 = vmul.f32 %v2401, 1.442695
    %v2432 = vpow.pop %v2431
    %v2433 = vmul.f32 %v2402, 1.442695
    %v2434 = vpow.pop %v2433
    %v2435 = vsel %vm1150, %v2404, 0.0
    %2436 = vadd.xlane.f32.xlu0 %v2435
    %v2437 = vpop.xlane.xlu0 %2436
    %v2438 = vsel %vm1150, %v2406, 0.0
    %2439 = vadd.xlane.f32.xlu0 %v2438
    %v2440 = vpop.xlane.xlu0 %2439
    %v2441 = vsel %vm1150, %v2408, 0.0
    %2442 = vadd.xlane.f32.xlu0 %v2441
    %v2443 = vpop.xlane.xlu0 %2442
    %v2444 = vsel %vm1150, %v2410, 0.0
    %2445 = vadd.xlane.f32.xlu0 %v2444
    %v2446 = vpop.xlane.xlu0 %2445
    %v2447 = vsel %vm1150, %v2412, 0.0
    %2448 = vadd.xlane.f32.xlu0 %v2447
    %v2449 = vpop.xlane.xlu0 %2448
    %v2450 = vsel %vm1150, %v2414, 0.0
    %2451 = vadd.xlane.f32.xlu0 %v2450
    %v2452 = vpop.xlane.xlu0 %2451
    %v2453 = vsel %vm1150, %v2416, 0.0
    %2454 = vadd.xlane.f32.xlu0 %v2453
    %v2455 = vpop.xlane.xlu0 %2454
    %v2456 = vsel %vm1150, %v2418, 0.0
    %2457 = vadd.xlane.f32.xlu0 %v2456
    %v2458 = vpop.xlane.xlu0 %2457
    %v2459 = vsel %vm1150, %v2420, 0.0
    %2460 = vadd.xlane.f32.xlu0 %v2459
    %v2461 = vpop.xlane.xlu0 %2460
    %v2462 = vsel %vm1150, %v2422, 0.0
    %2463 = vadd.xlane.f32.xlu0 %v2462
    %v2464 = vpop.xlane.xlu0 %2463
    %v2465 = vsel %vm1150, %v2424, 0.0
    %2466 = vadd.xlane.f32.xlu0 %v2465
    %v2467 = vpop.xlane.xlu0 %2466
    %v2468 = vsel %vm1150, %v2426, 0.0
    %2469 = vadd.xlane.f32.xlu0 %v2468
    %v2470 = vpop.xlane.xlu0 %2469
    %v2471 = vsel %vm1150, %v2428, 0.0
    %2472 = vadd.xlane.f32.xlu0 %v2471
    %v2473 = vpop.xlane.xlu0 %2472
    %v2474 = vsel %vm1150, %v2430, 0.0
    %2475 = vadd.xlane.f32.xlu0 %v2474
    %v2476 = vpop.xlane.xlu0 %2475
    %v2477 = vsel %vm1150, %v2432, 0.0
    %2478 = vadd.xlane.f32.xlu0 %v2477
    %v2479 = vpop.xlane.xlu0 %2478
    %v2480 = vsel %vm1150, %v2434, 0.0
    %2481 = vadd.xlane.f32.xlu0 %v2480
    %v2482 = vpop.xlane.xlu0 %2481
    %v2483 = vrcp.pop %v2437
    %v2484 = vrcp.pop %v2440
    %v2485 = vrcp.pop %v2443
    %v2486 = vrcp.pop %v2446
    %v2487 = vrcp.pop %v2449
    %v2488 = vrcp.pop %v2452
    %v2489 = vrcp.pop %v2455
    %v2490 = vrcp.pop %v2458
    %v2491 = vrcp.pop %v2461
    %v2492 = vrcp.pop %v2464
    %v2493 = vrcp.pop %v2467
    %v2494 = vrcp.pop %v2470
    %v2495 = vrcp.pop %v2473
    %v2496 = vrcp.pop %v2476
    %v2497 = vrcp.pop %v2479
    %v2498 = vrcp.pop %v2482
    %v2499 = vmul.f32 %v2404, %v2483
    %v2500 = vmul.f32 %v2406, %v2484
    %v2501 = vmul.f32 %v2408, %v2485
    %v2502 = vmul.f32 %v2410, %v2486
    %v2503 = vmul.f32 %v2412, %v2487
    %v2504 = vmul.f32 %v2414, %v2488
    %v2505 = vmul.f32 %v2416, %v2489
    %v2506 = vmul.f32 %v2418, %v2490
    %v2507 = vmul.f32 %v2420, %v2491
    %v2508 = vmul.f32 %v2422, %v2492
    %v2509 = vmul.f32 %v2424, %v2493
    %v2510 = vmul.f32 %v2426, %v2494
    %v2511 = vmul.f32 %v2428, %v2495
    %v2512 = vmul.f32 %v2430, %v2496
    %v2513 = vmul.f32 %v2432, %v2497
    %v2514 = vmul.f32 %v2434, %v2498
    %2515 = vrot.lane.b32.xlu0 %v2004, 64
    %v2516 = vpop.permute.xlu0 %2515
    %2517 = vrot.lane.b32.xlu0 %v2007, 64
    %v2518 = vpop.permute.xlu0 %2517
    %v2522 = vsel %vm1150, %v2499, 0
    %v2525 = vsel %vm1150, %v2500, 0
    %2527 = vmatpush.msra.mxu0 0.0
    %2528 = vmatpush.msra.mxu0 0.0
    %2529 = vmatpush.msra.mxu0 0.0
    %2530 = vmatpush.msra.mxu0 0.0
    %2531 = vmatpush.msra.mxu0 0.0
    %2532 = vmatpush.msra.mxu0 0.0
    %2533 = vmatpush.msra.mxu0 0.0
    %2534 = vmatpush.msra.mxu0 0.0
    %2535 = vmatpush.msra.mxu0 0.0
    %2536 = vmatpush.msra.mxu0 0.0
    %2537 = vmatpush.msra.mxu0 0.0
    %2538 = vmatpush.msra.mxu0 0.0
    %2539 = vmatpush.msra.mxu0 0.0
    %2540 = vmatpush.msra.mxu0 0.0
    %2541 = vmatpush.msra.mxu0 %v2518
    %2542 = vmatpush.msra.mxu0 %v2516
    %2543 = vmatmul.f32.gmra.mxu0 %v2522
    %v2544 = vpop.f32.mrf.mxu0
    %v2545 = vadd.f32 0.0, %v2544
    %2546 = vmatmul.f32.gmra.mxu0 %v2525
    %v2547 = vpop.f32.mrf.mxu0
    %v2548 = vadd.f32 0.0, %v2547
    %2549 = vdwg.mxu0
    %2550 = vrot.lane.b32.xlu0 %v2018, 64
    %v2551 = vpop.permute.xlu0 %2550
    %2552 = vrot.lane.b32.xlu0 %v2020, 64
    %v2553 = vpop.permute.xlu0 %2552
    %v2557 = vsel %vm1150, %v2501, 0
    %v2560 = vsel %vm1150, %v2502, 0
    %2562 = vmatpush.msra.mxu0 0.0
    %2563 = vmatpush.msra.mxu0 0.0
    %2564 = vmatpush.msra.mxu0 0.0
    %2565 = vmatpush.msra.mxu0 0.0
    %2566 = vmatpush.msra.mxu0 0.0
    %2567 = vmatpush.msra.mxu0 0.0
    %2568 = vmatpush.msra.mxu0 0.0
    %2569 = vmatpush.msra.mxu0 0.0
    %2570 = vmatpush.msra.mxu0 0.0
    %2571 = vmatpush.msra.mxu0 0.0
    %2572 = vmatpush.msra.mxu0 0.0
    %2573 = vmatpush.msra.mxu0 0.0
    %2574 = vmatpush.msra.mxu0 0.0
    %2575 = vmatpush.msra.mxu0 0.0
    %2576 = vmatpush.msra.mxu0 %v2553
    %2577 = vmatpush.msra.mxu0 %v2551
    %2578 = vmatmul.f32.gmra.mxu0 %v2557
    %v2579 = vpop.f32.mrf.mxu0
    %v2580 = vadd.f32 0.0, %v2579
    %2581 = vmatmul.f32.gmra.mxu0 %v2560
    %v2582 = vpop.f32.mrf.mxu0
    %v2583 = vadd.f32 0.0, %v2582
    %2584 = vdwg.mxu0
    %2585 = vrot.lane.b32.xlu0 %v2022, 64
    %v2586 = vpop.permute.xlu0 %2585
    %2587 = vrot.lane.b32.xlu0 %v2024, 64
    %v2588 = vpop.permute.xlu0 %2587
    %v2592 = vsel %vm1150, %v2503, 0
    %v2595 = vsel %vm1150, %v2504, 0
    %2597 = vmatpush.msra.mxu0 0.0
    %2598 = vmatpush.msra.mxu0 0.0
    %2599 = vmatpush.msra.mxu0 0.0
    %2600 = vmatpush.msra.mxu0 0.0
    %2601 = vmatpush.msra.mxu0 0.0
    %2602 = vmatpush.msra.mxu0 0.0
    %2603 = vmatpush.msra.mxu0 0.0
    %2604 = vmatpush.msra.mxu0 0.0
    %2605 = vmatpush.msra.mxu0 0.0
    %2606 = vmatpush.msra.mxu0 0.0
    %2607 = vmatpush.msra.mxu0 0.0
    %2608 = vmatpush.msra.mxu0 0.0
    %2609 = vmatpush.msra.mxu0 0.0
    %2610 = vmatpush.msra.mxu0 0.0
    %2611 = vmatpush.msra.mxu0 %v2588
    %2612 = vmatpush.msra.mxu0 %v2586
    %2613 = vmatmul.f32.gmra.mxu0 %v2592
    %v2614 = vpop.f32.mrf.mxu0
    %v2615 = vadd.f32 0.0, %v2614
    %2616 = vmatmul.f32.gmra.mxu0 %v2595
    %v2617 = vpop.f32.mrf.mxu0
    %v2618 = vadd.f32 0.0, %v2617
    %2619 = vdwg.mxu0
    %2620 = vrot.lane.b32.xlu0 %v2026, 64
    %v2621 = vpop.permute.xlu0 %2620
    %2622 = vrot.lane.b32.xlu0 %v2028, 64
    %v2623 = vpop.permute.xlu0 %2622
    %v2627 = vsel %vm1150, %v2505, 0
    %v2630 = vsel %vm1150, %v2506, 0
    %2632 = vmatpush.msra.mxu0 0.0
    %2633 = vmatpush.msra.mxu0 0.0
    %2634 = vmatpush.msra.mxu0 0.0
    %2635 = vmatpush.msra.mxu0 0.0
    %2636 = vmatpush.msra.mxu0 0.0
    %2637 = vmatpush.msra.mxu0 0.0
    %2638 = vmatpush.msra.mxu0 0.0
    %2639 = vmatpush.msra.mxu0 0.0
    %2640 = vmatpush.msra.mxu0 0.0
    %2641 = vmatpush.msra.mxu0 0.0
    %2642 = vmatpush.msra.mxu0 0.0
    %2643 = vmatpush.msra.mxu0 0.0
    %2644 = vmatpush.msra.mxu0 0.0
    %2645 = vmatpush.msra.mxu0 0.0
    %2646 = vmatpush.msra.mxu0 %v2623
    %2647 = vmatpush.msra.mxu0 %v2621
    %2648 = vmatmul.f32.gmra.mxu0 %v2627
    %v2649 = vpop.f32.mrf.mxu0
    %v2650 = vadd.f32 0.0, %v2649
    %2651 = vmatmul.f32.gmra.mxu0 %v2630
    %v2652 = vpop.f32.mrf.mxu0
    %v2653 = vadd.f32 0.0, %v2652
    %2654 = vdwg.mxu0
    %2655 = vrot.lane.b32.xlu0 %v2010, 64
    %v2656 = vpop.permute.xlu0 %2655
    %2657 = vrot.lane.b32.xlu0 %v2013, 64
    %v2658 = vpop.permute.xlu0 %2657
    %v2662 = vsel %vm1150, %v2507, 0
    %v2665 = vsel %vm1150, %v2508, 0
    %2667 = vmatpush.msra.mxu0 0.0
    %2668 = vmatpush.msra.mxu0 0.0
    %2669 = vmatpush.msra.mxu0 0.0
    %2670 = vmatpush.msra.mxu0 0.0
    %2671 = vmatpush.msra.mxu0 0.0
    %2672 = vmatpush.msra.mxu0 0.0
    %2673 = vmatpush.msra.mxu0 0.0
    %2674 = vmatpush.msra.mxu0 0.0
    %2675 = vmatpush.msra.mxu0 0.0
    %2676 = vmatpush.msra.mxu0 0.0
    %2677 = vmatpush.msra.mxu0 0.0
    %2678 = vmatpush.msra.mxu0 0.0
    %2679 = vmatpush.msra.mxu0 0.0
    %2680 = vmatpush.msra.mxu0 0.0
    %2681 = vmatpush.msra.mxu0 %v2658
    %2682 = vmatpush.msra.mxu0 %v2656
    %2683 = vmatmul.f32.gmra.mxu0 %v2662
    %v2684 = vpop.f32.mrf.mxu0
    %v2685 = vadd.f32 0.0, %v2684
    %2686 = vmatmul.f32.gmra.mxu0 %v2665
    %v2687 = vpop.f32.mrf.mxu0
    %v2688 = vadd.f32 0.0, %v2687
    %2689 = vdwg.mxu0
    %2690 = vrot.lane.b32.xlu0 %v2032, 64
    %v2691 = vpop.permute.xlu0 %2690
    %2692 = vrot.lane.b32.xlu0 %v2034, 64
    %v2693 = vpop.permute.xlu0 %2692
    %v2697 = vsel %vm1150, %v2509, 0
    %v2700 = vsel %vm1150, %v2510, 0
    %2702 = vmatpush.msra.mxu0 0.0
    %2703 = vmatpush.msra.mxu0 0.0
    %2704 = vmatpush.msra.mxu0 0.0
    %2705 = vmatpush.msra.mxu0 0.0
    %2706 = vmatpush.msra.mxu0 0.0
    %2707 = vmatpush.msra.mxu0 0.0
    %2708 = vmatpush.msra.mxu0 0.0
    %2709 = vmatpush.msra.mxu0 0.0
    %2710 = vmatpush.msra.mxu0 0.0
    %2711 = vmatpush.msra.mxu0 0.0
    %2712 = vmatpush.msra.mxu0 0.0
    %2713 = vmatpush.msra.mxu0 0.0
    %2714 = vmatpush.msra.mxu0 0.0
    %2715 = vmatpush.msra.mxu0 0.0
    %2716 = vmatpush.msra.mxu0 %v2693
    %2717 = vmatpush.msra.mxu0 %v2691
    %2718 = vmatmul.f32.gmra.mxu0 %v2697
    %v2719 = vpop.f32.mrf.mxu0
    %v2720 = vadd.f32 0.0, %v2719
    %2721 = vmatmul.f32.gmra.mxu0 %v2700
    %v2722 = vpop.f32.mrf.mxu0
    %v2723 = vadd.f32 0.0, %v2722
    %2724 = vdwg.mxu0
    %2725 = vrot.lane.b32.xlu0 %v2036, 64
    %v2726 = vpop.permute.xlu0 %2725
    %2727 = vrot.lane.b32.xlu0 %v2038, 64
    %v2728 = vpop.permute.xlu0 %2727
    %v2732 = vsel %vm1150, %v2511, 0
    %v2735 = vsel %vm1150, %v2512, 0
    %2737 = vmatpush.msra.mxu0 0.0
    %2738 = vmatpush.msra.mxu0 0.0
    %2739 = vmatpush.msra.mxu0 0.0
    %2740 = vmatpush.msra.mxu0 0.0
    %2741 = vmatpush.msra.mxu0 0.0
    %2742 = vmatpush.msra.mxu0 0.0
    %2743 = vmatpush.msra.mxu0 0.0
    %2744 = vmatpush.msra.mxu0 0.0
    %2745 = vmatpush.msra.mxu0 0.0
    %2746 = vmatpush.msra.mxu0 0.0
    %2747 = vmatpush.msra.mxu0 0.0
    %2748 = vmatpush.msra.mxu0 0.0
    %2749 = vmatpush.msra.mxu0 0.0
    %2750 = vmatpush.msra.mxu0 0.0
    %2751 = vmatpush.msra.mxu0 %v2728
    %2752 = vmatpush.msra.mxu0 %v2726
    %2753 = vmatmul.f32.gmra.mxu0 %v2732
    %v2754 = vpop.f32.mrf.mxu0
    %v2755 = vadd.f32 0.0, %v2754
    %2756 = vmatmul.f32.gmra.mxu0 %v2735
    %v2757 = vpop.f32.mrf.mxu0
    %v2758 = vadd.f32 0.0, %v2757
    %2759 = vdwg.mxu0
    %2760 = vrot.lane.b32.xlu0 %v2040, 64
    %v2761 = vpop.permute.xlu0 %2760
    %2762 = vrot.lane.b32.xlu0 %v2042, 64
    %v2763 = vpop.permute.xlu0 %2762
    %v2767 = vsel %vm1150, %v2513, 0
    %v2770 = vsel %vm1150, %v2514, 0
    %2772 = vmatpush.msra.mxu0 0.0
    %2773 = vmatpush.msra.mxu0 0.0
    %2774 = vmatpush.msra.mxu0 0.0
    %2775 = vmatpush.msra.mxu0 0.0
    %2776 = vmatpush.msra.mxu0 0.0
    %2777 = vmatpush.msra.mxu0 0.0
    %2778 = vmatpush.msra.mxu0 0.0
    %2779 = vmatpush.msra.mxu0 0.0
    %2780 = vmatpush.msra.mxu0 0.0
    %2781 = vmatpush.msra.mxu0 0.0
    %2782 = vmatpush.msra.mxu0 0.0
    %2783 = vmatpush.msra.mxu0 0.0
    %2784 = vmatpush.msra.mxu0 0.0
    %2785 = vmatpush.msra.mxu0 0.0
    %2786 = vmatpush.msra.mxu0 %v2763
    %2787 = vmatpush.msra.mxu0 %v2761
    %2788 = vmatmul.f32.gmra.mxu0 %v2767
    %v2789 = vpop.f32.mrf.mxu0
    %v2790 = vadd.f32 0.0, %v2789
    %2791 = vmatmul.f32.gmra.mxu0 %v2770
    %v2792 = vpop.f32.mrf.mxu0
    %v2793 = vadd.f32 0.0, %v2792
    %2794 = vdwg.mxu0
    %2797 = vrot.lane.b32.xlu0 %v2580, 8
    %v2798 = vpop.permute.xlu0 %2797
    %2799 = vrot.lane.b32.xlu0 %v2583, 8
    %v2800 = vpop.permute.xlu0 %2799
    %2805 = vrot.lane.b32.xlu0 %v2615, 16
    %v2806 = vpop.permute.xlu0 %2805
    %2807 = vrot.lane.b32.xlu0 %v2618, 16
    %v2808 = vpop.permute.xlu0 %2807
    %2813 = vrot.lane.b32.xlu0 %v2650, 24
    %v2814 = vpop.permute.xlu0 %2813
    %2815 = vrot.lane.b32.xlu0 %v2653, 24
    %v2816 = vpop.permute.xlu0 %2815
    %v2819 = vsel %vm443, %v2545, %v2798
    %v2820 = vsel %vm443, %v2548, %v2800
    %v2821 = vsel %vm1150, %v2819, %v2806
    %v2822 = vsel %vm1150, %v2820, %v2808
    %v2823 = vsel %vm1153, %v2821, %v2814
    %v2824 = vsel %vm1153, %v2822, %v2816
    %2827 = vrot.lane.b32.xlu0 %v2720, 8
    %v2828 = vpop.permute.xlu0 %2827
    %2829 = vrot.lane.b32.xlu0 %v2723, 8
    %v2830 = vpop.permute.xlu0 %2829
    %2835 = vrot.lane.b32.xlu0 %v2755, 16
    %v2836 = vpop.permute.xlu0 %2835
    %2837 = vrot.lane.b32.xlu0 %v2758, 16
    %v2838 = vpop.permute.xlu0 %2837
    %2843 = vrot.lane.b32.xlu0 %v2790, 24
    %v2844 = vpop.permute.xlu0 %2843
    %2845 = vrot.lane.b32.xlu0 %v2793, 24
    %v2846 = vpop.permute.xlu0 %2845
    %v2849 = vsel %vm443, %v2685, %v2828
    %v2850 = vsel %vm443, %v2688, %v2830
    %v2851 = vsel %vm1150, %v2849, %v2836
    %v2852 = vsel %vm1150, %v2850, %v2838
    %v2853 = vsel %vm1153, %v2851, %v2844
    %v2854 = vsel %vm1153, %v2852, %v2846
    %v2856 = vperm.slane %v1952, 0
    %v2859 = vsel %vm327, %v2823, 0
    %v2862 = vsel %vm327, %v2824, 0
    %v2865 = vsel %vm327, %v2853, 0
    %v2868 = vsel %vm327, %v2854, 0
    %2870 = vmatpush.msra.mxu0 0.0
    %2871 = vmatpush.msra.mxu0 0.0
    %2872 = vmatpush.msra.mxu0 0.0
    %2873 = vmatpush.msra.mxu0 0.0
    %2874 = vmatpush.msra.mxu0 0.0
    %2875 = vmatpush.msra.mxu0 0.0
    %2876 = vmatpush.msra.mxu0 0.0
    %2877 = vmatpush.msra.mxu0 0.0
    %2878 = vmatpush.msra.mxu0 0.0
    %2879 = vmatpush.msra.mxu0 0.0
    %2880 = vmatpush.msra.mxu0 0.0
    %2881 = vmatpush.msra.mxu0 0.0
    %2882 = vmatpush.msra.mxu0 %v1951
    %2883 = vmatpush.msra.mxu0 %v1950
    %2884 = vmatpush.msra.mxu0 %v1949
    %2885 = vmatpush.msra.mxu0 %v1948
    %2886 = vmatmul.f32.gmra.mxu0 %v2859
    %v2887 = vpop.f32.mrf.mxu0
    %v2888 = vadd.f32 %v2856, %v2887
    %2889 = vmatmul.f32.gmra.mxu0 %v2862
    %v2890 = vpop.f32.mrf.mxu0
    %v2891 = vadd.f32 %v2856, %v2890
    %2892 = vmatmul.f32.gmra.mxu0 %v2865
    %v2893 = vpop.f32.mrf.mxu0
    %v2894 = vadd.f32 %v2856, %v2893
    %2895 = vmatmul.f32.gmra.mxu0 %v2868
    %v2896 = vpop.f32.mrf.mxu0
    %v2897 = vadd.f32 %v2856, %v2896
    %2898 = vdwg.mxu0
    %v2899 = vadd.f32 %v1219, %v2888
    %v2900 = vadd.f32 %v1222, %v2891
    %v2901 = vadd.f32 %v1225, %v2894
    %v2902 = vadd.f32 %v1228, %v2897
    %v2903 = vsel %vm327, %v2899, 0.0
    %2904 = vadd.xlane.f32.xlu0 %v2903
    %v2905 = vpop.xlane.xlu0 %2904
    %v2906 = vsel %vm327, %v2900, 0.0
    %2907 = vadd.xlane.f32.xlu0 %v2906
    %v2908 = vpop.xlane.xlu0 %2907
    %v2909 = vsel %vm327, %v2901, 0.0
    %2910 = vadd.xlane.f32.xlu0 %v2909
    %v2911 = vpop.xlane.xlu0 %2910
    %v2912 = vsel %vm327, %v2902, 0.0
    %2913 = vadd.xlane.f32.xlu0 %v2912
    %v2914 = vpop.xlane.xlu0 %2913
    %v2915 = vrcp.pop 32.0
    %v2916 = vmul.f32 32.0, %v2915
    %v2917 = vsub.f32 1.0, %v2916
    %v2918 = vmul.f32 %v2915, %v2917
    %v2919 = vadd.f32 %v2915, %v2918
    %vm2920 = vweird.f32 %v2915
    %v2921 = vsel %vm2920, %v2915, %v2919
    %v2922 = vmul.f32 %v2905, %v2921
    %v2923 = vmul.f32 %v2908, %v2921
    %v2924 = vmul.f32 %v2911, %v2921
    %v2925 = vmul.f32 %v2914, %v2921
    %v2926 = vsub.f32 %v2899, %v2922
    %v2927 = vsub.f32 %v2900, %v2923
    %v2928 = vsub.f32 %v2901, %v2924
    %v2929 = vsub.f32 %v2902, %v2925
    %v2930 = vmul.f32 %v2926, %v2926
    %v2931 = vmul.f32 %v2927, %v2927
    %v2932 = vmul.f32 %v2928, %v2928
    %v2933 = vmul.f32 %v2929, %v2929
    %v2934 = vsel %vm327, %v2930, 0.0
    %2935 = vadd.xlane.f32.xlu0 %v2934
    %v2936 = vpop.xlane.xlu0 %2935
    %v2937 = vsel %vm327, %v2931, 0.0
    %2938 = vadd.xlane.f32.xlu0 %v2937
    %v2939 = vpop.xlane.xlu0 %2938
    %v2940 = vsel %vm327, %v2932, 0.0
    %2941 = vadd.xlane.f32.xlu0 %v2940
    %v2942 = vpop.xlane.xlu0 %2941
    %v2943 = vsel %vm327, %v2933, 0.0
    %2944 = vadd.xlane.f32.xlu0 %v2943
    %v2945 = vpop.xlane.xlu0 %2944
    %v2946 = vmul.f32 %v2936, %v2921
    %v2947 = vmul.f32 %v2939, %v2921
    %v2948 = vmul.f32 %v2942, %v2921
    %v2949 = vmul.f32 %v2945, %v2921
    %v2950 = vadd.f32 %v2946, 1e-05
    %v2951 = vadd.f32 %v2947, 1e-05
    %v2952 = vadd.f32 %v2948, 1e-05
    %v2953 = vadd.f32 %v2949, 1e-05
    %v2954 = vrsqrt.pop %v2950
    %v2955 = vmul.f32 %v2954, %v2950
    %v2956 = vmul.f32 %v2955, %v2954
    %v2957 = vmul.f32 0.5, %v2956
    %v2958 = vsub.f32 1.5, %v2957
    %v2959 = vmul.f32 %v2954, %v2958
    %vm2960 = vweird.f32 %v2950
    %vm2961 = vweird.f32 %v2954
    %vm2962 = vmor %vm2960, %vm2961
    %v2963 = vsel %vm2962, %v2954, %v2959
    %v2964 = vrsqrt.pop %v2951
    %v2965 = vmul.f32 %v2964, %v2951
    %v2966 = vmul.f32 %v2965, %v2964
    %v2967 = vmul.f32 0.5, %v2966
    %v2968 = vsub.f32 1.5, %v2967
    %v2969 = vmul.f32 %v2964, %v2968
    %vm2970 = vweird.f32 %v2951
    %vm2971 = vweird.f32 %v2964
    %vm2972 = vmor %vm2970, %vm2971
    %v2973 = vsel %vm2972, %v2964, %v2969
    %v2974 = vrsqrt.pop %v2952
    %v2975 = vmul.f32 %v2974, %v2952
    %v2976 = vmul.f32 %v2975, %v2974
    %v2977 = vmul.f32 0.5, %v2976
    %v2978 = vsub.f32 1.5, %v2977
    %v2979 = vmul.f32 %v2974, %v2978
    %vm2980 = vweird.f32 %v2952
    %vm2981 = vweird.f32 %v2974
    %vm2982 = vmor %vm2980, %vm2981
    %v2983 = vsel %vm2982, %v2974, %v2979
    %v2984 = vrsqrt.pop %v2953
    %v2985 = vmul.f32 %v2984, %v2953
    %v2986 = vmul.f32 %v2985, %v2984
    %v2987 = vmul.f32 0.5, %v2986
    %v2988 = vsub.f32 1.5, %v2987
    %v2989 = vmul.f32 %v2984, %v2988
    %vm2990 = vweird.f32 %v2953
    %vm2991 = vweird.f32 %v2984
    %vm2992 = vmor %vm2990, %vm2991
    %v2993 = vsel %vm2992, %v2984, %v2989
    %v2994 = vmul.f32 %v2926, %v2963
    %v2995 = vmul.f32 %v2927, %v2973
    %v2996 = vmul.f32 %v2928, %v2983
    %v2997 = vmul.f32 %v2929, %v2993
    %v2999 = vperm.slane %v1967, 0
    %v3001 = vmul.f32 %v2994, %v2999
    %v3002 = vmul.f32 %v2995, %v2999
    %v3003 = vmul.f32 %v2996, %v2999
    %v3004 = vmul.f32 %v2997, %v2999
    %v3006 = vperm.slane %v1968, 0
    %v3008 = vadd.f32 %v3001, %v3006
    %v3009 = vadd.f32 %v3002, %v3006
    %v3010 = vadd.f32 %v3003, %v3006
    %v3011 = vadd.f32 %v3004, %v3006
    %v3013 = vperm.slane %v1957, 0
    %v3016 = vsel %vm327, %v3008, 0
    %v3019 = vsel %vm327, %v3009, 0
    %v3022 = vsel %vm327, %v3010, 0
    %v3025 = vsel %vm327, %v3011, 0
    %3027 = vmatpush.msra.mxu0 0.0
    %3028 = vmatpush.msra.mxu0 0.0
    %3029 = vmatpush.msra.mxu0 0.0
    %3030 = vmatpush.msra.mxu0 0.0
    %3031 = vmatpush.msra.mxu0 0.0
    %3032 = vmatpush.msra.mxu0 0.0
    %3033 = vmatpush.msra.mxu0 0.0
    %3034 = vmatpush.msra.mxu0 0.0
    %3035 = vmatpush.msra.mxu0 0.0
    %3036 = vmatpush.msra.mxu0 0.0
    %3037 = vmatpush.msra.mxu0 0.0
    %3038 = vmatpush.msra.mxu0 0.0
    %3039 = vmatpush.msra.mxu0 %v1956
    %3040 = vmatpush.msra.mxu0 %v1955
    %3041 = vmatpush.msra.mxu0 %v1954
    %3042 = vmatpush.msra.mxu0 %v1953
    %3043 = vmatmul.f32.gmra.mxu0 %v3016
    %v3044 = vpop.f32.mrf.mxu0
    %v3045 = vadd.f32 %v3013, %v3044
    %3046 = vmatmul.f32.gmra.mxu0 %v3019
    %v3047 = vpop.f32.mrf.mxu0
    %v3048 = vadd.f32 %v3013, %v3047
    %3049 = vmatmul.f32.gmra.mxu0 %v3022
    %v3050 = vpop.f32.mrf.mxu0
    %v3051 = vadd.f32 %v3013, %v3050
    %3052 = vmatmul.f32.gmra.mxu0 %v3025
    %v3053 = vpop.f32.mrf.mxu0
    %v3054 = vadd.f32 %v3013, %v3053
    %3055 = vdwg.mxu0
    %v3056 = vmax.f32 %v3045, 0.0
    %v3057 = vmax.f32 %v3048, 0.0
    %v3058 = vmax.f32 %v3051, 0.0
    %v3059 = vmax.f32 %v3054, 0.0
    %v3061 = vperm.slane %v1966, 0
    %vm3063 = vcmask 523264
    %v3065 = vsel %vm3063, %v3056, 0
    %v3068 = vsel %vm3063, %v3057, 0
    %v3071 = vsel %vm3063, %v3058, 0
    %v3074 = vsel %vm3063, %v3059, 0
    %3076 = vmatpush.msra.mxu0 0.0
    %3077 = vmatpush.msra.mxu0 0.0
    %3078 = vmatpush.msra.mxu0 0.0
    %3079 = vmatpush.msra.mxu0 0.0
    %3080 = vmatpush.msra.mxu0 0.0
    %3081 = vmatpush.msra.mxu0 0.0
    %3082 = vmatpush.msra.mxu0 0.0
    %3083 = vmatpush.msra.mxu0 0.0
    %3084 = vmatpush.msra.mxu0 %v1965
    %3085 = vmatpush.msra.mxu0 %v1964
    %3086 = vmatpush.msra.mxu0 %v1963
    %3087 = vmatpush.msra.mxu0 %v1962
    %3088 = vmatpush.msra.mxu0 %v1961
    %3089 = vmatpush.msra.mxu0 %v1960
    %3090 = vmatpush.msra.mxu0 %v1959
    %3091 = vmatpush.msra.mxu0 %v1958
    %3092 = vmatmul.f32.gmra.mxu0 %v3065
    %v3093 = vpop.f32.mrf.mxu0
    %v3094 = vadd.f32 %v3061, %v3093
    %3095 = vmatmul.f32.gmra.mxu0 %v3068
    %v3096 = vpop.f32.mrf.mxu0
    %v3097 = vadd.f32 %v3061, %v3096
    %3098 = vmatmul.f32.gmra.mxu0 %v3071
    %v3099 = vpop.f32.mrf.mxu0
    %v3100 = vadd.f32 %v3061, %v3099
    %3101 = vmatmul.f32.gmra.mxu0 %v3074
    %v3102 = vpop.f32.mrf.mxu0
    %v3103 = vadd.f32 %v3061, %v3102
    %3104 = vdwg.mxu0
    %v3105 = vadd.f32 %v3008, %v3094
    %v3106 = vadd.f32 %v3009, %v3097
    %v3107 = vadd.f32 %v3010, %v3100
    %v3108 = vadd.f32 %v3011, %v3103
    %v3109 = vsel %vm327, %v3105, 0.0
    %3110 = vadd.xlane.f32.xlu0 %v3109
    %v3111 = vpop.xlane.xlu0 %3110
    %v3112 = vsel %vm327, %v3106, 0.0
    %3113 = vadd.xlane.f32.xlu0 %v3112
    %v3114 = vpop.xlane.xlu0 %3113
    %v3115 = vsel %vm327, %v3107, 0.0
    %3116 = vadd.xlane.f32.xlu0 %v3115
    %v3117 = vpop.xlane.xlu0 %3116
    %v3118 = vsel %vm327, %v3108, 0.0
    %3119 = vadd.xlane.f32.xlu0 %v3118
    %v3120 = vpop.xlane.xlu0 %3119
    %v3121 = vmul.f32 %v3111, %v2921
    %v3122 = vmul.f32 %v3114, %v2921
    %v3123 = vmul.f32 %v3117, %v2921
    %v3124 = vmul.f32 %v3120, %v2921
    %v3125 = vsub.f32 %v3105, %v3121
    %v3126 = vsub.f32 %v3106, %v3122
    %v3127 = vsub.f32 %v3107, %v3123
    %v3128 = vsub.f32 %v3108, %v3124
    %v3129 = vmul.f32 %v3125, %v3125
    %v3130 = vmul.f32 %v3126, %v3126
    %v3131 = vmul.f32 %v3127, %v3127
    %v3132 = vmul.f32 %v3128, %v3128
    %v3133 = vsel %vm327, %v3129, 0.0
    %3134 = vadd.xlane.f32.xlu0 %v3133
    %v3135 = vpop.xlane.xlu0 %3134
    %v3136 = vsel %vm327, %v3130, 0.0
    %3137 = vadd.xlane.f32.xlu0 %v3136
    %v3138 = vpop.xlane.xlu0 %3137
    %v3139 = vsel %vm327, %v3131, 0.0
    %3140 = vadd.xlane.f32.xlu0 %v3139
    %v3141 = vpop.xlane.xlu0 %3140
    %v3142 = vsel %vm327, %v3132, 0.0
    %3143 = vadd.xlane.f32.xlu0 %v3142
    %v3144 = vpop.xlane.xlu0 %3143
    %v3145 = vmul.f32 %v3135, %v2921
    %v3146 = vmul.f32 %v3138, %v2921
    %v3147 = vmul.f32 %v3141, %v2921
    %v3148 = vmul.f32 %v3144, %v2921
    %v3149 = vadd.f32 %v3145, 1e-05
    %v3150 = vadd.f32 %v3146, 1e-05
    %v3151 = vadd.f32 %v3147, 1e-05
    %v3152 = vadd.f32 %v3148, 1e-05
    %v3153 = vrsqrt.pop %v3149
    %v3154 = vmul.f32 %v3153, %v3149
    %v3155 = vmul.f32 %v3154, %v3153
    %v3156 = vmul.f32 0.5, %v3155
    %v3157 = vsub.f32 1.5, %v3156
    %v3158 = vmul.f32 %v3153, %v3157
    %vm3159 = vweird.f32 %v3149
    %vm3160 = vweird.f32 %v3153
    %vm3161 = vmor %vm3159, %vm3160
    %v3162 = vsel %vm3161, %v3153, %v3158
    %v3163 = vrsqrt.pop %v3150
    %v3164 = vmul.f32 %v3163, %v3150
    %v3165 = vmul.f32 %v3164, %v3163
    %v3166 = vmul.f32 0.5, %v3165
    %v3167 = vsub.f32 1.5, %v3166
    %v3168 = vmul.f32 %v3163, %v3167
    %vm3169 = vweird.f32 %v3150
    %vm3170 = vweird.f32 %v3163
    %vm3171 = vmor %vm3169, %vm3170
    %v3172 = vsel %vm3171, %v3163, %v3168
    %v3173 = vrsqrt.pop %v3151
    %v3174 = vmul.f32 %v3173, %v3151
    %v3175 = vmul.f32 %v3174, %v3173
    %v3176 = vmul.f32 0.5, %v3175
    %v3177 = vsub.f32 1.5, %v3176
    %v3178 = vmul.f32 %v3173, %v3177
    %vm3179 = vweird.f32 %v3151
    %vm3180 = vweird.f32 %v3173
    %vm3181 = vmor %vm3179, %vm3180
    %v3182 = vsel %vm3181, %v3173, %v3178
    %v3183 = vrsqrt.pop %v3152
    %v3184 = vmul.f32 %v3183, %v3152
    %v3185 = vmul.f32 %v3184, %v3183
    %v3186 = vmul.f32 0.5, %v3185
    %v3187 = vsub.f32 1.5, %v3186
    %v3188 = vmul.f32 %v3183, %v3187
    %vm3189 = vweird.f32 %v3152
    %vm3190 = vweird.f32 %v3183
    %vm3191 = vmor %vm3189, %vm3190
    %v3192 = vsel %vm3191, %v3183, %v3188
    %v3193 = vmul.f32 %v3125, %v3162
    %v3194 = vmul.f32 %v3126, %v3172
    %v3195 = vmul.f32 %v3127, %v3182
    %v3196 = vmul.f32 %v3128, %v3192
    %v3198 = vperm.slane %v1969, 0
    %v3200 = vmul.f32 %v3193, %v3198
    %v3201 = vmul.f32 %v3194, %v3198
    %v3202 = vmul.f32 %v3195, %v3198
    %v3203 = vmul.f32 %v3196, %v3198
    %v3205 = vperm.slane %v1970, 0
    %v3207 = vadd.f32 %v3200, %v3205
    %v3208 = vadd.f32 %v3201, %v3205
    %v3209 = vadd.f32 %v3202, %v3205
    %v3210 = vadd.f32 %v3203, %v3205
    %3211 = vst.msk [vmem:[#allocation17] sm:$0xff] %vm327, %v3207
    %3212 = vst.msk [vmem:[#allocation17 + $0x8] sm:$0xff] %vm327, %v3208
    %3213 = vst.msk [vmem:[#allocation17 + $0x10] sm:$0xff] %vm327, %v3209
    %3214 = vst.msk [vmem:[#allocation17 + $0x18] sm:$0xff] %vm327, %v3210
    %v3215 = vld [vmem:[#allocation13] sm:$0xff]
    %v3216 = vld [vmem:[#allocation13 + $0x8] sm:$0xff]
    %v3217 = vld [vmem:[#allocation13 + $0x10] sm:$0xff]
    %v3218 = vld [vmem:[#allocation13 + $0x18] sm:$0xff]
    %v3219 = vld [vmem:[%s55] sm:$0x1]
    %v3220 = vld [vmem:[#allocation14] sm:$0xff]
    %v3221 = vld [vmem:[#allocation14 + $0x8] sm:$0xff]
    %v3222 = vld [vmem:[#allocation14 + $0x10] sm:$0xff]
    %v3223 = vld [vmem:[#allocation14 + $0x18] sm:$0xff]
    %v3224 = vld [vmem:[%s59] sm:$0x1]
    %v3225 = vld [vmem:[#allocation16] sm:$0xff]
    %v3226 = vld [vmem:[#allocation16 + $0x8] sm:$0xff]
    %v3227 = vld [vmem:[#allocation16 + $0x10] sm:$0xff]
    %v3228 = vld [vmem:[#allocation16 + $0x18] sm:$0xff]
    %v3229 = vld [vmem:[%s63] sm:$0x1]
    %v3230 = vld [vmem:[%s65] sm:$0xff]
    %v3231 = vld [vmem:[%s65 + $0x8] sm:$0xff]
    %v3232 = vld [vmem:[%s65 + $0x10] sm:$0xff]
    %v3233 = vld [vmem:[%s65 + $0x18] sm:$0xff]
    %v3234 = vld [vmem:[%s65 + $0x20] sm:$0xff]
    %v3235 = vld [vmem:[%s65 + $0x28] sm:$0xff]
    %v3236 = vld [vmem:[%s65 + $0x30] sm:$0xff]
    %v3237 = vld [vmem:[%s65 + $0x38] sm:$0xff]
    %v3238 = vld [vmem:[%s67] sm:$0x1]
    %v3239 = vld [vmem:[%s69] sm:$0x1]
    %v3240 = vld [vmem:[%s71] sm:$0x1]
    %v3241 = vld [vmem:[%s73] sm:$0x1]
    %v3242 = vld [vmem:[%s75] sm:$0x1]
    %v3244 = vperm.slane %v3219, 0
    %v3247 = vsel %vm327, %v1938, 0
    %v3250 = vsel %vm327, %v1941, 0
    %3252 = vmatpush.msra.mxu0 0.0
    %3253 = vmatpush.msra.mxu0 0.0
    %3254 = vmatpush.msra.mxu0 0.0
    %3255 = vmatpush.msra.mxu0 0.0
    %3256 = vmatpush.msra.mxu0 0.0
    %3257 = vmatpush.msra.mxu0 0.0
    %3258 = vmatpush.msra.mxu0 0.0
    %3259 = vmatpush.msra.mxu0 0.0
    %3260 = vmatpush.msra.mxu0 0.0
    %3261 = vmatpush.msra.mxu0 0.0
    %3262 = vmatpush.msra.mxu0 0.0
    %3263 = vmatpush.msra.mxu0 0.0
    %3264 = vmatpush.msra.mxu0 %v3218
    %3265 = vmatpush.msra.mxu0 %v3217
    %3266 = vmatpush.msra.mxu0 %v3216
    %3267 = vmatpush.msra.mxu0 %v3215
    %3268 = vmatmul.f32.gmra.mxu0 %v3247
    %v3269 = vpop.f32.mrf.mxu0
    %v3270 = vadd.f32 %v3244, %v3269
    %3271 = vmatmul.f32.gmra.mxu0 %v3250
    %v3272 = vpop.f32.mrf.mxu0
    %v3273 = vadd.f32 %v3244, %v3272
    %3274 = vdwg.mxu0
    %3276 = vrot.lane.b32.xlu0 %v3270, 120
    %v3277 = vpop.permute.xlu0 %3276
    %3278 = vrot.lane.b32.xlu0 %v3270, 112
    %v3279 = vpop.permute.xlu0 %3278
    %3280 = vrot.lane.b32.xlu0 %v3270, 104
    %v3281 = vpop.permute.xlu0 %3280
    %3283 = vrot.lane.b32.xlu0 %v3273, 120
    %v3284 = vpop.permute.xlu0 %3283
    %3285 = vrot.lane.b32.xlu0 %v3273, 112
    %v3286 = vpop.permute.xlu0 %3285
    %3287 = vrot.lane.b32.xlu0 %v3273, 104
    %v3288 = vpop.permute.xlu0 %3287
    %3289 = vrot.lane.b32.xlu0 %v3270, 96
    %v3290 = vpop.permute.xlu0 %3289
    %v3291 = vsel %vm443, %v3270, 0
    %v3293 = vsel %vm443, %v3290, 0
    %3295 = vmatpush.xpose.msra.mxu0 0.0
    %3296 = vmatpush.xpose.msra.mxu0 0.0
    %3297 = vmatpush.xpose.msra.mxu0 0.0
    %3298 = vmatpush.xpose.msra.mxu0 0.0
    %3299 = vmatpush.xpose.msra.mxu0 0.0
    %3300 = vmatpush.xpose.msra.mxu0 0.0
    %3301 = vmatpush.xpose.msra.mxu0 0.0
    %3302 = vmatpush.xpose.msra.mxu0 0.0
    %3303 = vmatpush.xpose.msra.mxu0 0.0
    %3304 = vmatpush.xpose.msra.mxu0 0.0
    %3305 = vmatpush.xpose.msra.mxu0 0.0
    %3306 = vmatpush.xpose.msra.mxu0 0.0
    %3307 = vmatpush.xpose.msra.mxu0 0.0
    %3308 = vmatpush.xpose.msra.mxu0 0.0
    %3309 = vmatpush.xpose.msra.mxu0 0.0
    %3310 = vmatpush.xpose.msra.mxu0 %v3293
    %3311 = vmatmul.f32.gmra.mxu0 %v3291
    %v3312 = vpop.f32.mrf.mxu0
    %v3313 = vadd.f32 0.0, %v3312
    %3314 = vdwg.mxu0
    %3315 = vrot.lane.b32.xlu0 %v3277, 96
    %v3316 = vpop.permute.xlu0 %3315
    %v3317 = vsel %vm443, %v3277, 0
    %v3319 = vsel %vm443, %v3316, 0
    %3321 = vmatpush.xpose.msra.mxu0 0.0
    %3322 = vmatpush.xpose.msra.mxu0 0.0
    %3323 = vmatpush.xpose.msra.mxu0 0.0
    %3324 = vmatpush.xpose.msra.mxu0 0.0
    %3325 = vmatpush.xpose.msra.mxu0 0.0
    %3326 = vmatpush.xpose.msra.mxu0 0.0
    %3327 = vmatpush.xpose.msra.mxu0 0.0
    %3328 = vmatpush.xpose.msra.mxu0 0.0
    %3329 = vmatpush.xpose.msra.mxu0 0.0
    %3330 = vmatpush.xpose.msra.mxu0 0.0
    %3331 = vmatpush.xpose.msra.mxu0 0.0
    %3332 = vmatpush.xpose.msra.mxu0 0.0
    %3333 = vmatpush.xpose.msra.mxu0 0.0
    %3334 = vmatpush.xpose.msra.mxu0 0.0
    %3335 = vmatpush.xpose.msra.mxu0 0.0
    %3336 = vmatpush.xpose.msra.mxu0 %v3319
    %3337 = vmatmul.f32.gmra.mxu0 %v3317
    %v3338 = vpop.f32.mrf.mxu0
    %v3339 = vadd.f32 0.0, %v3338
    %3340 = vdwg.mxu0
    %3341 = vrot.lane.b32.xlu0 %v3279, 96
    %v3342 = vpop.permute.xlu0 %3341
    %v3343 = vsel %vm443, %v3279, 0
    %v3345 = vsel %vm443, %v3342, 0
    %3347 = vmatpush.xpose.msra.mxu0 0.0
    %3348 = vmatpush.xpose.msra.mxu0 0.0
    %3349 = vmatpush.xpose.msra.mxu0 0.0
    %3350 = vmatpush.xpose.msra.mxu0 0.0
    %3351 = vmatpush.xpose.msra.mxu0 0.0
    %3352 = vmatpush.xpose.msra.mxu0 0.0
    %3353 = vmatpush.xpose.msra.mxu0 0.0
    %3354 = vmatpush.xpose.msra.mxu0 0.0
    %3355 = vmatpush.xpose.msra.mxu0 0.0
    %3356 = vmatpush.xpose.msra.mxu0 0.0
    %3357 = vmatpush.xpose.msra.mxu0 0.0
    %3358 = vmatpush.xpose.msra.mxu0 0.0
    %3359 = vmatpush.xpose.msra.mxu0 0.0
    %3360 = vmatpush.xpose.msra.mxu0 0.0
    %3361 = vmatpush.xpose.msra.mxu0 0.0
    %3362 = vmatpush.xpose.msra.mxu0 %v3345
    %3363 = vmatmul.f32.gmra.mxu0 %v3343
    %v3364 = vpop.f32.mrf.mxu0
    %v3365 = vadd.f32 0.0, %v3364
    %3366 = vdwg.mxu0
    %3367 = vrot.lane.b32.xlu0 %v3281, 96
    %v3368 = vpop.permute.xlu0 %3367
    %v3369 = vsel %vm443, %v3281, 0
    %v3371 = vsel %vm443, %v3368, 0
    %3373 = vmatpush.xpose.msra.mxu0 0.0
    %3374 = vmatpush.xpose.msra.mxu0 0.0
    %3375 = vmatpush.xpose.msra.mxu0 0.0
    %3376 = vmatpush.xpose.msra.mxu0 0.0
    %3377 = vmatpush.xpose.msra.mxu0 0.0
    %3378 = vmatpush.xpose.msra.mxu0 0.0
    %3379 = vmatpush.xpose.msra.mxu0 0.0
    %3380 = vmatpush.xpose.msra.mxu0 0.0
    %3381 = vmatpush.xpose.msra.mxu0 0.0
    %3382 = vmatpush.xpose.msra.mxu0 0.0
    %3383 = vmatpush.xpose.msra.mxu0 0.0
    %3384 = vmatpush.xpose.msra.mxu0 0.0
    %3385 = vmatpush.xpose.msra.mxu0 0.0
    %3386 = vmatpush.xpose.msra.mxu0 0.0
    %3387 = vmatpush.xpose.msra.mxu0 0.0
    %3388 = vmatpush.xpose.msra.mxu0 %v3371
    %3389 = vmatmul.f32.gmra.mxu0 %v3369
    %v3390 = vpop.f32.mrf.mxu0
    %v3391 = vadd.f32 0.0, %v3390
    %3392 = vdwg.mxu0
    %3393 = vrot.lane.b32.xlu0 %v3273, 96
    %v3394 = vpop.permute.xlu0 %3393
    %v3395 = vsel %vm443, %v3273, 0
    %v3397 = vsel %vm443, %v3394, 0
    %3399 = vmatpush.xpose.msra.mxu0 0.0
    %3400 = vmatpush.xpose.msra.mxu0 0.0
    %3401 = vmatpush.xpose.msra.mxu0 0.0
    %3402 = vmatpush.xpose.msra.mxu0 0.0
    %3403 = vmatpush.xpose.msra.mxu0 0.0
    %3404 = vmatpush.xpose.msra.mxu0 0.0
    %3405 = vmatpush.xpose.msra.mxu0 0.0
    %3406 = vmatpush.xpose.msra.mxu0 0.0
    %3407 = vmatpush.xpose.msra.mxu0 0.0
    %3408 = vmatpush.xpose.msra.mxu0 0.0
    %3409 = vmatpush.xpose.msra.mxu0 0.0
    %3410 = vmatpush.xpose.msra.mxu0 0.0
    %3411 = vmatpush.xpose.msra.mxu0 0.0
    %3412 = vmatpush.xpose.msra.mxu0 0.0
    %3413 = vmatpush.xpose.msra.mxu0 0.0
    %3414 = vmatpush.xpose.msra.mxu0 %v3397
    %3415 = vmatmul.f32.gmra.mxu0 %v3395
    %v3416 = vpop.f32.mrf.mxu0
    %v3417 = vadd.f32 0.0, %v3416
    %3418 = vdwg.mxu0
    %3419 = vrot.lane.b32.xlu0 %v3284, 96
    %v3420 = vpop.permute.xlu0 %3419
    %v3421 = vsel %vm443, %v3284, 0
    %v3423 = vsel %vm443, %v3420, 0
    %3425 = vmatpush.xpose.msra.mxu0 0.0
    %3426 = vmatpush.xpose.msra.mxu0 0.0
    %3427 = vmatpush.xpose.msra.mxu0 0.0
    %3428 = vmatpush.xpose.msra.mxu0 0.0
    %3429 = vmatpush.xpose.msra.mxu0 0.0
    %3430 = vmatpush.xpose.msra.mxu0 0.0
    %3431 = vmatpush.xpose.msra.mxu0 0.0
    %3432 = vmatpush.xpose.msra.mxu0 0.0
    %3433 = vmatpush.xpose.msra.mxu0 0.0
    %3434 = vmatpush.xpose.msra.mxu0 0.0
    %3435 = vmatpush.xpose.msra.mxu0 0.0
    %3436 = vmatpush.xpose.msra.mxu0 0.0
    %3437 = vmatpush.xpose.msra.mxu0 0.0
    %3438 = vmatpush.xpose.msra.mxu0 0.0
    %3439 = vmatpush.xpose.msra.mxu0 0.0
    %3440 = vmatpush.xpose.msra.mxu0 %v3423
    %3441 = vmatmul.f32.gmra.mxu0 %v3421
    %v3442 = vpop.f32.mrf.mxu0
    %v3443 = vadd.f32 0.0, %v3442
    %3444 = vdwg.mxu0
    %3445 = vrot.lane.b32.xlu0 %v3286, 96
    %v3446 = vpop.permute.xlu0 %3445
    %v3447 = vsel %vm443, %v3286, 0
    %v3449 = vsel %vm443, %v3446, 0
    %3451 = vmatpush.xpose.msra.mxu0 0.0
    %3452 = vmatpush.xpose.msra.mxu0 0.0
    %3453 = vmatpush.xpose.msra.mxu0 0.0
    %3454 = vmatpush.xpose.msra.mxu0 0.0
    %3455 = vmatpush.xpose.msra.mxu0 0.0
    %3456 = vmatpush.xpose.msra.mxu0 0.0
    %3457 = vmatpush.xpose.msra.mxu0 0.0
    %3458 = vmatpush.xpose.msra.mxu0 0.0
    %3459 = vmatpush.xpose.msra.mxu0 0.0
    %3460 = vmatpush.xpose.msra.mxu0 0.0
    %3461 = vmatpush.xpose.msra.mxu0 0.0
    %3462 = vmatpush.xpose.msra.mxu0 0.0
    %3463 = vmatpush.xpose.msra.mxu0 0.0
    %3464 = vmatpush.xpose.msra.mxu0 0.0
    %3465 = vmatpush.xpose.msra.mxu0 0.0
    %3466 = vmatpush.xpose.msra.mxu0 %v3449
    %3467 = vmatmul.f32.gmra.mxu0 %v3447
    %v3468 = vpop.f32.mrf.mxu0
    %v3469 = vadd.f32 0.0, %v3468
    %3470 = vdwg.mxu0
    %3471 = vrot.lane.b32.xlu0 %v3288, 96
    %v3472 = vpop.permute.xlu0 %3471
    %v3473 = vsel %vm443, %v3288, 0
    %v3475 = vsel %vm443, %v3472, 0
    %3477 = vmatpush.xpose.msra.mxu0 0.0
    %3478 = vmatpush.xpose.msra.mxu0 0.0
    %3479 = vmatpush.xpose.msra.mxu0 0.0
    %3480 = vmatpush.xpose.msra.mxu0 0.0
    %3481 = vmatpush.xpose.msra.mxu0 0.0
    %3482 = vmatpush.xpose.msra.mxu0 0.0
    %3483 = vmatpush.xpose.msra.mxu0 0.0
    %3484 = vmatpush.xpose.msra.mxu0 0.0
    %3485 = vmatpush.xpose.msra.mxu0 0.0
    %3486 = vmatpush.xpose.msra.mxu0 0.0
    %3487 = vmatpush.xpose.msra.mxu0 0.0
    %3488 = vmatpush.xpose.msra.mxu0 0.0
    %3489 = vmatpush.xpose.msra.mxu0 0.0
    %3490 = vmatpush.xpose.msra.mxu0 0.0
    %3491 = vmatpush.xpose.msra.mxu0 0.0
    %3492 = vmatpush.xpose.msra.mxu0 %v3475
    %3493 = vmatmul.f32.gmra.mxu0 %v3473
    %v3494 = vpop.f32.mrf.mxu0
    %v3495 = vadd.f32 0.0, %v3494
    %3496 = vdwg.mxu0
    %v3497 = vmul.f32 %v3313, 0.35355338
    %v3498 = vmul.f32 %v3339, 0.35355338
    %v3499 = vmul.f32 %v3365, 0.35355338
    %v3500 = vmul.f32 %v3391, 0.35355338
    %v3501 = vmul.f32 %v3417, 0.35355338
    %v3502 = vmul.f32 %v3443, 0.35355338
    %v3503 = vmul.f32 %v3469, 0.35355338
    %v3504 = vmul.f32 %v3495, 0.35355338
    %v3505 = vsel %vm443, %v3497, -inf
    %3506 = vmax.xlane.f32.xlu0 %v3505
    %v3507 = vpop.xlane.xlu0 %3506
    %v3508 = vsel %vm443, %v3498, -inf
    %3509 = vmax.xlane.f32.xlu0 %v3508
    %v3510 = vpop.xlane.xlu0 %3509
    %v3511 = vsel %vm443, %v3499, -inf
    %3512 = vmax.xlane.f32.xlu0 %v3511
    %v3513 = vpop.xlane.xlu0 %3512
    %v3514 = vsel %vm443, %v3500, -inf
    %3515 = vmax.xlane.f32.xlu0 %v3514
    %v3516 = vpop.xlane.xlu0 %3515
    %v3517 = vsel %vm443, %v3501, -inf
    %3518 = vmax.xlane.f32.xlu0 %v3517
    %v3519 = vpop.xlane.xlu0 %3518
    %v3520 = vsel %vm443, %v3502, -inf
    %3521 = vmax.xlane.f32.xlu0 %v3520
    %v3522 = vpop.xlane.xlu0 %3521
    %v3523 = vsel %vm443, %v3503, -inf
    %3524 = vmax.xlane.f32.xlu0 %v3523
    %v3525 = vpop.xlane.xlu0 %3524
    %v3526 = vsel %vm443, %v3504, -inf
    %3527 = vmax.xlane.f32.xlu0 %v3526
    %v3528 = vpop.xlane.xlu0 %3527
    %v3529 = vsub.f32 %v3497, %v3507
    %v3530 = vsub.f32 %v3498, %v3510
    %v3531 = vsub.f32 %v3499, %v3513
    %v3532 = vsub.f32 %v3500, %v3516
    %v3533 = vsub.f32 %v3501, %v3519
    %v3534 = vsub.f32 %v3502, %v3522
    %v3535 = vsub.f32 %v3503, %v3525
    %v3536 = vsub.f32 %v3504, %v3528
    %v3537 = vmul.f32 %v3529, 1.442695
    %v3538 = vpow.pop %v3537
    %v3539 = vmul.f32 %v3530, 1.442695
    %v3540 = vpow.pop %v3539
    %v3541 = vmul.f32 %v3531, 1.442695
    %v3542 = vpow.pop %v3541
    %v3543 = vmul.f32 %v3532, 1.442695
    %v3544 = vpow.pop %v3543
    %v3545 = vmul.f32 %v3533, 1.442695
    %v3546 = vpow.pop %v3545
    %v3547 = vmul.f32 %v3534, 1.442695
    %v3548 = vpow.pop %v3547
    %v3549 = vmul.f32 %v3535, 1.442695
    %v3550 = vpow.pop %v3549
    %v3551 = vmul.f32 %v3536, 1.442695
    %v3552 = vpow.pop %v3551
    %v3553 = vsel %vm443, %v3538, 0.0
    %3554 = vadd.xlane.f32.xlu0 %v3553
    %v3555 = vpop.xlane.xlu0 %3554
    %v3556 = vsel %vm443, %v3540, 0.0
    %3557 = vadd.xlane.f32.xlu0 %v3556
    %v3558 = vpop.xlane.xlu0 %3557
    %v3559 = vsel %vm443, %v3542, 0.0
    %3560 = vadd.xlane.f32.xlu0 %v3559
    %v3561 = vpop.xlane.xlu0 %3560
    %v3562 = vsel %vm443, %v3544, 0.0
    %3563 = vadd.xlane.f32.xlu0 %v3562
    %v3564 = vpop.xlane.xlu0 %3563
    %v3565 = vsel %vm443, %v3546, 0.0
    %3566 = vadd.xlane.f32.xlu0 %v3565
    %v3567 = vpop.xlane.xlu0 %3566
    %v3568 = vsel %vm443, %v3548, 0.0
    %3569 = vadd.xlane.f32.xlu0 %v3568
    %v3570 = vpop.xlane.xlu0 %3569
    %v3571 = vsel %vm443, %v3550, 0.0
    %3572 = vadd.xlane.f32.xlu0 %v3571
    %v3573 = vpop.xlane.xlu0 %3572
    %v3574 = vsel %vm443, %v3552, 0.0
    %3575 = vadd.xlane.f32.xlu0 %v3574
    %v3576 = vpop.xlane.xlu0 %3575
    %v3577 = vrcp.pop %v3555
    %v3578 = vrcp.pop %v3558
    %v3579 = vrcp.pop %v3561
    %v3580 = vrcp.pop %v3564
    %v3581 = vrcp.pop %v3567
    %v3582 = vrcp.pop %v3570
    %v3583 = vrcp.pop %v3573
    %v3584 = vrcp.pop %v3576
    %v3585 = vmul.f32 %v3538, %v3577
    %v3586 = vmul.f32 %v3540, %v3578
    %v3587 = vmul.f32 %v3542, %v3579
    %v3588 = vmul.f32 %v3544, %v3580
    %v3589 = vmul.f32 %v3546, %v3581
    %v3590 = vmul.f32 %v3548, %v3582
    %v3591 = vmul.f32 %v3550, %v3583
    %v3592 = vmul.f32 %v3552, %v3584
    %3593 = vrot.lane.b32.xlu0 %v3270, 64
    %v3594 = vpop.permute.xlu0 %3593
    %v3597 = vsel %vm443, %v3585, 0
    %3599 = vmatpush.msra.mxu0 0.0
    %3600 = vmatpush.msra.mxu0 0.0
    %3601 = vmatpush.msra.mxu0 0.0
    %3602 = vmatpush.msra.mxu0 0.0
    %3603 = vmatpush.msra.mxu0 0.0
    %3604 = vmatpush.msra.mxu0 0.0
    %3605 = vmatpush.msra.mxu0 0.0
    %3606 = vmatpush.msra.mxu0 0.0
    %3607 = vmatpush.msra.mxu0 0.0
    %3608 = vmatpush.msra.mxu0 0.0
    %3609 = vmatpush.msra.mxu0 0.0
    %3610 = vmatpush.msra.mxu0 0.0
    %3611 = vmatpush.msra.mxu0 0.0
    %3612 = vmatpush.msra.mxu0 0.0
    %3613 = vmatpush.msra.mxu0 0.0
    %3614 = vmatpush.msra.mxu0 %v3594
    %3615 = vmatmul.f32.gmra.mxu0 %v3597
    %v3616 = vpop.f32.mrf.mxu0
    %v3617 = vadd.f32 0.0, %v3616
    %3618 = vdwg.mxu0
    %3619 = vrot.lane.b32.xlu0 %v3277, 64
    %v3620 = vpop.permute.xlu0 %3619
    %v3623 = vsel %vm443, %v3586, 0
    %3625 = vmatpush.msra.mxu0 0.0
    %3626 = vmatpush.msra.mxu0 0.0
    %3627 = vmatpush.msra.mxu0 0.0
    %3628 = vmatpush.msra.mxu0 0.0
    %3629 = vmatpush.msra.mxu0 0.0
    %3630 = vmatpush.msra.mxu0 0.0
    %3631 = vmatpush.msra.mxu0 0.0
    %3632 = vmatpush.msra.mxu0 0.0
    %3633 = vmatpush.msra.mxu0 0.0
    %3634 = vmatpush.msra.mxu0 0.0
    %3635 = vmatpush.msra.mxu0 0.0
    %3636 = vmatpush.msra.mxu0 0.0
    %3637 = vmatpush.msra.mxu0 0.0
    %3638 = vmatpush.msra.mxu0 0.0
    %3639 = vmatpush.msra.mxu0 0.0
    %3640 = vmatpush.msra.mxu0 %v3620
    %3641 = vmatmul.f32.gmra.mxu0 %v3623
    %v3642 = vpop.f32.mrf.mxu0
    %v3643 = vadd.f32 0.0, %v3642
    %3644 = vdwg.mxu0
    %3645 = vrot.lane.b32.xlu0 %v3279, 64
    %v3646 = vpop.permute.xlu0 %3645
    %v3649 = vsel %vm443, %v3587, 0
    %3651 = vmatpush.msra.mxu0 0.0
    %3652 = vmatpush.msra.mxu0 0.0
    %3653 = vmatpush.msra.mxu0 0.0
    %3654 = vmatpush.msra.mxu0 0.0
    %3655 = vmatpush.msra.mxu0 0.0
    %3656 = vmatpush.msra.mxu0 0.0
    %3657 = vmatpush.msra.mxu0 0.0
    %3658 = vmatpush.msra.mxu0 0.0
    %3659 = vmatpush.msra.mxu0 0.0
    %3660 = vmatpush.msra.mxu0 0.0
    %3661 = vmatpush.msra.mxu0 0.0
    %3662 = vmatpush.msra.mxu0 0.0
    %3663 = vmatpush.msra.mxu0 0.0
    %3664 = vmatpush.msra.mxu0 0.0
    %3665 = vmatpush.msra.mxu0 0.0
    %3666 = vmatpush.msra.mxu0 %v3646
    %3667 = vmatmul.f32.gmra.mxu0 %v3649
    %v3668 = vpop.f32.mrf.mxu0
    %v3669 = vadd.f32 0.0, %v3668
    %3670 = vdwg.mxu0
    %3671 = vrot.lane.b32.xlu0 %v3281, 64
    %v3672 = vpop.permute.xlu0 %3671
    %v3675 = vsel %vm443, %v3588, 0
    %3677 = vmatpush.msra.mxu0 0.0
    %3678 = vmatpush.msra.mxu0 0.0
    %3679 = vmatpush.msra.mxu0 0.0
    %3680 = vmatpush.msra.mxu0 0.0
    %3681 = vmatpush.msra.mxu0 0.0
    %3682 = vmatpush.msra.mxu0 0.0
    %3683 = vmatpush.msra.mxu0 0.0
    %3684 = vmatpush.msra.mxu0 0.0
    %3685 = vmatpush.msra.mxu0 0.0
    %3686 = vmatpush.msra.mxu0 0.0
    %3687 = vmatpush.msra.mxu0 0.0
    %3688 = vmatpush.msra.mxu0 0.0
    %3689 = vmatpush.msra.mxu0 0.0
    %3690 = vmatpush.msra.mxu0 0.0
    %3691 = vmatpush.msra.mxu0 0.0
    %3692 = vmatpush.msra.mxu0 %v3672
    %3693 = vmatmul.f32.gmra.mxu0 %v3675
    %v3694 = vpop.f32.mrf.mxu0
    %v3695 = vadd.f32 0.0, %v3694
    %3696 = vdwg.mxu0
    %3697 = vrot.lane.b32.xlu0 %v3273, 64
    %v3698 = vpop.permute.xlu0 %3697
    %v3701 = vsel %vm443, %v3589, 0
    %3703 = vmatpush.msra.mxu0 0.0
    %3704 = vmatpush.msra.mxu0 0.0
    %3705 = vmatpush.msra.mxu0 0.0
    %3706 = vmatpush.msra.mxu0 0.0
    %3707 = vmatpush.msra.mxu0 0.0
    %3708 = vmatpush.msra.mxu0 0.0
    %3709 = vmatpush.msra.mxu0 0.0
    %3710 = vmatpush.msra.mxu0 0.0
    %3711 = vmatpush.msra.mxu0 0.0
    %3712 = vmatpush.msra.mxu0 0.0
    %3713 = vmatpush.msra.mxu0 0.0
    %3714 = vmatpush.msra.mxu0 0.0
    %3715 = vmatpush.msra.mxu0 0.0
    %3716 = vmatpush.msra.mxu0 0.0
    %3717 = vmatpush.msra.mxu0 0.0
    %3718 = vmatpush.msra.mxu0 %v3698
    %3719 = vmatmul.f32.gmra.mxu0 %v3701
    %v3720 = vpop.f32.mrf.mxu0
    %v3721 = vadd.f32 0.0, %v3720
    %3722 = vdwg.mxu0
    %3723 = vrot.lane.b32.xlu0 %v3284, 64
    %v3724 = vpop.permute.xlu0 %3723
    %v3727 = vsel %vm443, %v3590, 0
    %3729 = vmatpush.msra.mxu0 0.0
    %3730 = vmatpush.msra.mxu0 0.0
    %3731 = vmatpush.msra.mxu0 0.0
    %3732 = vmatpush.msra.mxu0 0.0
    %3733 = vmatpush.msra.mxu0 0.0
    %3734 = vmatpush.msra.mxu0 0.0
    %3735 = vmatpush.msra.mxu0 0.0
    %3736 = vmatpush.msra.mxu0 0.0
    %3737 = vmatpush.msra.mxu0 0.0
    %3738 = vmatpush.msra.mxu0 0.0
    %3739 = vmatpush.msra.mxu0 0.0
    %3740 = vmatpush.msra.mxu0 0.0
    %3741 = vmatpush.msra.mxu0 0.0
    %3742 = vmatpush.msra.mxu0 0.0
    %3743 = vmatpush.msra.mxu0 0.0
    %3744 = vmatpush.msra.mxu0 %v3724
    %3745 = vmatmul.f32.gmra.mxu0 %v3727
    %v3746 = vpop.f32.mrf.mxu0
    %v3747 = vadd.f32 0.0, %v3746
    %3748 = vdwg.mxu0
    %3749 = vrot.lane.b32.xlu0 %v3286, 64
    %v3750 = vpop.permute.xlu0 %3749
    %v3753 = vsel %vm443, %v3591, 0
    %3755 = vmatpush.msra.mxu0 0.0
    %3756 = vmatpush.msra.mxu0 0.0
    %3757 = vmatpush.msra.mxu0 0.0
    %3758 = vmatpush.msra.mxu0 0.0
    %3759 = vmatpush.msra.mxu0 0.0
    %3760 = vmatpush.msra.mxu0 0.0
    %3761 = vmatpush.msra.mxu0 0.0
    %3762 = vmatpush.msra.mxu0 0.0
    %3763 = vmatpush.msra.mxu0 0.0
    %3764 = vmatpush.msra.mxu0 0.0
    %3765 = vmatpush.msra.mxu0 0.0
    %3766 = vmatpush.msra.mxu0 0.0
    %3767 = vmatpush.msra.mxu0 0.0
    %3768 = vmatpush.msra.mxu0 0.0
    %3769 = vmatpush.msra.mxu0 0.0
    %3770 = vmatpush.msra.mxu0 %v3750
    %3771 = vmatmul.f32.gmra.mxu0 %v3753
    %v3772 = vpop.f32.mrf.mxu0
    %v3773 = vadd.f32 0.0, %v3772
    %3774 = vdwg.mxu0
    %3775 = vrot.lane.b32.xlu0 %v3288, 64
    %v3776 = vpop.permute.xlu0 %3775
    %v3779 = vsel %vm443, %v3592, 0
    %3781 = vmatpush.msra.mxu0 0.0
    %3782 = vmatpush.msra.mxu0 0.0
    %3783 = vmatpush.msra.mxu0 0.0
    %3784 = vmatpush.msra.mxu0 0.0
    %3785 = vmatpush.msra.mxu0 0.0
    %3786 = vmatpush.msra.mxu0 0.0
    %3787 = vmatpush.msra.mxu0 0.0
    %3788 = vmatpush.msra.mxu0 0.0
    %3789 = vmatpush.msra.mxu0 0.0
    %3790 = vmatpush.msra.mxu0 0.0
    %3791 = vmatpush.msra.mxu0 0.0
    %3792 = vmatpush.msra.mxu0 0.0
    %3793 = vmatpush.msra.mxu0 0.0
    %3794 = vmatpush.msra.mxu0 0.0
    %3795 = vmatpush.msra.mxu0 0.0
    %3796 = vmatpush.msra.mxu0 %v3776
    %3797 = vmatmul.f32.gmra.mxu0 %v3779
    %v3798 = vpop.f32.mrf.mxu0
    %v3799 = vadd.f32 0.0, %v3798
    %3800 = vdwg.mxu0
    %3802 = vrot.lane.b32.xlu0 %v3643, 8
    %v3803 = vpop.permute.xlu0 %3802
    %3806 = vrot.lane.b32.xlu0 %v3669, 16
    %v3807 = vpop.permute.xlu0 %3806
    %3810 = vrot.lane.b32.xlu0 %v3695, 24
    %v3811 = vpop.permute.xlu0 %3810
    %v3813 = vsel %vm443, %v3617, %v3803
    %v3814 = vsel %vm1150, %v3813, %v3807
    %v3815 = vsel %vm1153, %v3814, %v3811
    %3817 = vrot.lane.b32.xlu0 %v3747, 8
    %v3818 = vpop.permute.xlu0 %3817
    %3821 = vrot.lane.b32.xlu0 %v3773, 16
    %v3822 = vpop.permute.xlu0 %3821
    %3825 = vrot.lane.b32.xlu0 %v3799, 24
    %v3826 = vpop.permute.xlu0 %3825
    %v3828 = vsel %vm443, %v3721, %v3818
    %v3829 = vsel %vm1150, %v3828, %v3822
    %v3830 = vsel %vm1153, %v3829, %v3826
    %v3832 = vperm.slane %v3224, 0
    %v3835 = vsel %vm327, %v3815, 0
    %v3838 = vsel %vm327, %v3830, 0
    %3840 = vmatpush.msra.mxu0 0.0
    %3841 = vmatpush.msra.mxu0 0.0
    %3842 = vmatpush.msra.mxu0 0.0
    %3843 = vmatpush.msra.mxu0 0.0
    %3844 = vmatpush.msra.mxu0 0.0
    %3845 = vmatpush.msra.mxu0 0.0
    %3846 = vmatpush.msra.mxu0 0.0
    %3847 = vmatpush.msra.mxu0 0.0
    %3848 = vmatpush.msra.mxu0 0.0
    %3849 = vmatpush.msra.mxu0 0.0
    %3850 = vmatpush.msra.mxu0 0.0
    %3851 = vmatpush.msra.mxu0 0.0
    %3852 = vmatpush.msra.mxu0 %v3223
    %3853 = vmatpush.msra.mxu0 %v3222
    %3854 = vmatpush.msra.mxu0 %v3221
    %3855 = vmatpush.msra.mxu0 %v3220
    %3856 = vmatmul.f32.gmra.mxu0 %v3835
    %v3857 = vpop.f32.mrf.mxu0
    %v3858 = vadd.f32 %v3832, %v3857
    %3859 = vmatmul.f32.gmra.mxu0 %v3838
    %v3860 = vpop.f32.mrf.mxu0
    %v3861 = vadd.f32 %v3832, %v3860
    %3862 = vdwg.mxu0
    %v3863 = vadd.f32 %v1938, %v3858
    %v3864 = vadd.f32 %v1941, %v3861
    %v3865 = vsel %vm327, %v3863, 0.0
    %3866 = vadd.xlane.f32.xlu0 %v3865
    %v3867 = vpop.xlane.xlu0 %3866
    %v3868 = vsel %vm327, %v3864, 0.0
    %3869 = vadd.xlane.f32.xlu0 %v3868
    %v3870 = vpop.xlane.xlu0 %3869
    %v3871 = vmul.f32 %v3867, %v2921
    %v3872 = vmul.f32 %v3870, %v2921
    %v3873 = vsub.f32 %v3863, %v3871
    %v3874 = vsub.f32 %v3864, %v3872
    %v3875 = vmul.f32 %v3873, %v3873
    %v3876 = vmul.f32 %v3874, %v3874
    %v3877 = vsel %vm327, %v3875, 0.0
    %3878 = vadd.xlane.f32.xlu0 %v3877
    %v3879 = vpop.xlane.xlu0 %3878
    %v3880 = vsel %vm327, %v3876, 0.0
    %3881 = vadd.xlane.f32.xlu0 %v3880
    %v3882 = vpop.xlane.xlu0 %3881
    %v3883 = vmul.f32 %v3879, %v2921
    %v3884 = vmul.f32 %v3882, %v2921
    %v3885 = vadd.f32 %v3883, 1e-05
    %v3886 = vadd.f32 %v3884, 1e-05
    %v3887 = vrsqrt.pop %v3885
    %v3888 = vmul.f32 %v3887, %v3885
    %v3889 = vmul.f32 %v3888, %v3887
    %v3890 = vmul.f32 0.5, %v3889
    %v3891 = vsub.f32 1.5, %v3890
    %v3892 = vmul.f32 %v3887, %v3891
    %vm3893 = vweird.f32 %v3885
    %vm3894 = vweird.f32 %v3887
    %vm3895 = vmor %vm3893, %vm3894
    %v3896 = vsel %vm3895, %v3887, %v3892
    %v3897 = vrsqrt.pop %v3886
    %v3898 = vmul.f32 %v3897, %v3886
    %v3899 = vmul.f32 %v3898, %v3897
    %v3900 = vmul.f32 0.5, %v3899
    %v3901 = vsub.f32 1.5, %v3900
    %v3902 = vmul.f32 %v3897, %v3901
    %vm3903 = vweird.f32 %v3886
    %vm3904 = vweird.f32 %v3897
    %vm3905 = vmor %vm3903, %vm3904
    %v3906 = vsel %vm3905, %v3897, %v3902
    %v3907 = vmul.f32 %v3873, %v3896
    %v3908 = vmul.f32 %v3874, %v3906
    %v3910 = vperm.slane %v3239, 0
    %v3912 = vmul.f32 %v3907, %v3910
    %v3913 = vmul.f32 %v3908, %v3910
    %v3915 = vperm.slane %v3240, 0
    %v3917 = vadd.f32 %v3912, %v3915
    %v3918 = vadd.f32 %v3913, %v3915
    %v3920 = vperm.slane %v3229, 0
    %v3923 = vsel %vm327, %v3917, 0
    %v3926 = vsel %vm327, %v3918, 0
    %3928 = vmatpush.msra.mxu0 0.0
    %3929 = vmatpush.msra.mxu0 0.0
    %3930 = vmatpush.msra.mxu0 0.0
    %3931 = vmatpush.msra.mxu0 0.0
    %3932 = vmatpush.msra.mxu0 0.0
    %3933 = vmatpush.msra.mxu0 0.0
    %3934 = vmatpush.msra.mxu0 0.0
    %3935 = vmatpush.msra.mxu0 0.0
    %3936 = vmatpush.msra.mxu0 0.0
    %3937 = vmatpush.msra.mxu0 0.0
    %3938 = vmatpush.msra.mxu0 0.0
    %3939 = vmatpush.msra.mxu0 0.0
    %3940 = vmatpush.msra.mxu0 %v3228
    %3941 = vmatpush.msra.mxu0 %v3227
    %3942 = vmatpush.msra.mxu0 %v3226
    %3943 = vmatpush.msra.mxu0 %v3225
    %3944 = vmatmul.f32.gmra.mxu0 %v3923
    %v3945 = vpop.f32.mrf.mxu0
    %v3946 = vadd.f32 %v3920, %v3945
    %3947 = vmatmul.f32.gmra.mxu0 %v3926
    %v3948 = vpop.f32.mrf.mxu0
    %v3949 = vadd.f32 %v3920, %v3948
    %3950 = vdwg.mxu0
    %v3951 = vmax.f32 %v3946, 0.0
    %v3952 = vmax.f32 %v3949, 0.0
    %v3954 = vperm.slane %v3238, 0
    %v3957 = vsel %vm3063, %v3951, 0
    %v3960 = vsel %vm3063, %v3952, 0
    %3962 = vmatpush.msra.mxu0 0.0
    %3963 = vmatpush.msra.mxu0 0.0
    %3964 = vmatpush.msra.mxu0 0.0
    %3965 = vmatpush.msra.mxu0 0.0
    %3966 = vmatpush.msra.mxu0 0.0
    %3967 = vmatpush.msra.mxu0 0.0
    %3968 = vmatpush.msra.mxu0 0.0
    %3969 = vmatpush.msra.mxu0 0.0
    %3970 = vmatpush.msra.mxu0 %v3237
    %3971 = vmatpush.msra.mxu0 %v3236
    %3972 = vmatpush.msra.mxu0 %v3235
    %3973 = vmatpush.msra.mxu0 %v3234
    %3974 = vmatpush.msra.mxu0 %v3233
    %3975 = vmatpush.msra.mxu0 %v3232
    %3976 = vmatpush.msra.mxu0 %v3231
    %3977 = vmatpush.msra.mxu0 %v3230
    %3978 = vmatmul.f32.gmra.mxu0 %v3957
    %v3979 = vpop.f32.mrf.mxu0
    %v3980 = vadd.f32 %v3954, %v3979
    %3981 = vmatmul.f32.gmra.mxu0 %v3960
    %v3982 = vpop.f32.mrf.mxu0
    %v3983 = vadd.f32 %v3954, %v3982
    %3984 = vdwg.mxu0
    %v3985 = vadd.f32 %v3917, %v3980
    %v3986 = vadd.f32 %v3918, %v3983
    %v3987 = vsel %vm327, %v3985, 0.0
    %3988 = vadd.xlane.f32.xlu0 %v3987
    %v3989 = vpop.xlane.xlu0 %3988
    %v3990 = vsel %vm327, %v3986, 0.0
    %3991 = vadd.xlane.f32.xlu0 %v3990
    %v3992 = vpop.xlane.xlu0 %3991
    %v3993 = vmul.f32 %v3989, %v2921
    %v3994 = vmul.f32 %v3992, %v2921
    %v3995 = vsub.f32 %v3985, %v3993
    %v3996 = vsub.f32 %v3986, %v3994
    %v3997 = vmul.f32 %v3995, %v3995
    %v3998 = vmul.f32 %v3996, %v3996
    %v3999 = vsel %vm327, %v3997, 0.0
    %4000 = vadd.xlane.f32.xlu0 %v3999
    %v4001 = vpop.xlane.xlu0 %4000
    %v4002 = vsel %vm327, %v3998, 0.0
    %4003 = vadd.xlane.f32.xlu0 %v4002
    %v4004 = vpop.xlane.xlu0 %4003
    %v4005 = vmul.f32 %v4001, %v2921
    %v4006 = vmul.f32 %v4004, %v2921
    %v4007 = vadd.f32 %v4005, 1e-05
    %v4008 = vadd.f32 %v4006, 1e-05
    %v4009 = vrsqrt.pop %v4007
    %v4010 = vmul.f32 %v4009, %v4007
    %v4011 = vmul.f32 %v4010, %v4009
    %v4012 = vmul.f32 0.5, %v4011
    %v4013 = vsub.f32 1.5, %v4012
    %v4014 = vmul.f32 %v4009, %v4013
    %vm4015 = vweird.f32 %v4007
    %vm4016 = vweird.f32 %v4009
    %vm4017 = vmor %vm4015, %vm4016
    %v4018 = vsel %vm4017, %v4009, %v4014
    %v4019 = vrsqrt.pop %v4008
    %v4020 = vmul.f32 %v4019, %v4008
    %v4021 = vmul.f32 %v4020, %v4019
    %v4022 = vmul.f32 0.5, %v4021
    %v4023 = vsub.f32 1.5, %v4022
    %v4024 = vmul.f32 %v4019, %v4023
    %vm4025 = vweird.f32 %v4008
    %vm4026 = vweird.f32 %v4019
    %vm4027 = vmor %vm4025, %vm4026
    %v4028 = vsel %vm4027, %v4019, %v4024
    %v4029 = vmul.f32 %v3995, %v4018
    %v4030 = vmul.f32 %v3996, %v4028
    %v4032 = vperm.slane %v3241, 0
    %v4034 = vmul.f32 %v4029, %v4032
    %v4035 = vmul.f32 %v4030, %v4032
    %v4037 = vperm.slane %v3242, 0
    %v4039 = vadd.f32 %v4034, %v4037
    %v4040 = vadd.f32 %v4035, %v4037
    %4041 = vst.msk [vmem:[#allocation18] sm:$0xff] %vm327, %v4039
    %4042 = vst.msk [vmem:[#allocation18 + $0x8] sm:$0xff] %vm327, %v4040
    // Predicated region
    $region190: #{cross_layer_forward.1} parent=1 // pred_check
      _
    $region191: #{cross_layer_forward.1} parent=1 // pred_check_branch
      %4044 = sbr.rel (0) target = $region193
    $region192: #{cross_layer_forward.1} parent=1 // pred_region
      %4046 = vsyncadd [#allocation4], 0
      %s4047 = sshll.u32 [#allocation17], 4
      %s4048 = int_to_ptr.vmem [resolvable:$true] %s4047
      %s4049 = sshll.u32 %s77, 4
      %s4050 = int_to_ptr.hbm [resolvable:$true] %s4049
      %4055 = dma.vmem_to_hbm [thread:$0]  %s4048, 512, %s4050, [#allocation4], 128, 128, 8
    $region193: #{cross_layer_forward.1} parent=1 // pred_fallthru
      _
    // Predicated region
    $region194: #{cross_layer_forward.1} parent=1 // pred_check
      _
    $region195: #{cross_layer_forward.1} parent=1 // pred_check_branch
      %4057 = sbr.rel (0) target = $region197
    $region196: #{cross_layer_forward.1} parent=1 // pred_region
      %4059 = vsyncadd [#allocation19], 0
      %s4060 = sshll.u32 [#allocation18], 4
      %s4061 = int_to_ptr.vmem [resolvable:$true] %s4060
      %s4062 = sshll.u32 %s79, 4
      %s4063 = int_to_ptr.hbm [resolvable:$true] %s4062
      %4068 = dma.vmem_to_hbm [thread:$0]  %s4061, 256, %s4063, [#allocation19], 128, 128, 8
    $region197: #{cross_layer_forward.1} parent=1 // pred_fallthru
      _
    // Predicated region
    $region198: #{cross_layer_forward.1} parent=1 // pred_check
      _
    $region199: #{cross_layer_forward.1} parent=1 // pred_check_branch
      %4070 = sbr.rel (0) target = $region201
    $region200: #{cross_layer_forward.1} parent=1 // pred_region
      %4072 = dma.done [#allocation4], 512
    $region201: #{cross_layer_forward.1} parent=1 // pred_fallthru
      _
    // Predicated region
    $region202: #{cross_layer_forward.1} parent=1 // pred_check
      _
    $region203: #{cross_layer_forward.1} parent=1 // pred_check_branch
      %4074 = sbr.rel (0) target = $region205
    $region204: #{cross_layer_forward.1} parent=1 // pred_region
      %4076 = dma.done [#allocation19], 256
    $region205: #{cross_layer_forward.1} parent=1 // pred_fallthru
      _
    %4077 = vsyncpa [#allocation3], 1
    %4078 = vsyncpa [#allocation6], 1
    %4079 = vsyncpa [#allocation9], 1
    %4080 = vsyncpa [#allocation12], 1
    %4081 = vsyncpa [#allocation15], 1
    %4082 = vsyncpa [#allocation4], 1
    %4083 = vsyncpa [#allocation19], 1

</llo_original>
